<compile_context>
chip_gen: v5e
topology: v5e:2x2
jax: 0.10.0
libtpu: 0.0.40
codegen_flags: <defaults>
</compile_context>

<pallas_src>
import functools

import jax
import jax.numpy as jnp
from jax.experimental import pallas as pl
from jax.experimental.pallas import tpu as pltpu


# ----------------------------- kernels ------------------------------------ #

def _pw_conv_bn_silu_kernel(x_ref, w_ref, b_ref, o_ref):
    # x: (TM, Cin)  w: (Cin, Cout)  b: (1, Cout)  ->  o: (TM, Cout)
    # bf16 MXU operands (full rate on v6e/v7x), f32 accumulate, f32 epilogue
    # (bias + SiLU stay f32, which is also what v5e's VPU/EUP want).
    x = x_ref[...].astype(jnp.bfloat16)
    w = w_ref[...].astype(jnp.bfloat16)
    acc = jnp.dot(x, w, preferred_element_type=jnp.float32)
    acc = acc + b_ref[...]
    o_ref[...] = (acc * jax.nn.sigmoid(acc)).astype(o_ref.dtype)  # SiLU


def _shift_rows(v, dy):
    # y[h] = v[h + dy] with zero fill (static dy); H is the un-tiled major axis.
    h = v.shape[0]
    if dy == 0:
        return v
    zeros = jnp.zeros((abs(dy),) + v.shape[1:], v.dtype)
    if dy > 0:
        return jnp.concatenate([v[dy:], zeros], axis=0)
    return jnp.concatenate([zeros, v[:h + dy]], axis=0)


def _shift_cols(v, dx):
    # y[:, w] = v[:, w + dx] with zero fill (static dx).
    w = v.shape[1]
    if dx == 0:
        return v
    zeros = jnp.zeros((v.shape[0], abs(dx)) + v.shape[2:], v.dtype)
    if dx > 0:
        return jnp.concatenate([v[:, dx:], zeros], axis=1)
    return jnp.concatenate([zeros, v[:, :w + dx]], axis=1)


def _dw5_bn_silu_shuffle_kernel(x_ref, w_ref, b_ref, o_ref):
    # x: (H, W, CT)    activated cv1 output tile (batch dim squeezed by BlockSpec)
    # w: (25, CT)      5x5 depthwise taps (row-major ky*5+kx), BN-folded
    # b: (1, CT)       folded BN bias
    # o: (2, H, W, CT) o[0] = x (cv1 passthrough -> even channels after shuffle)
    #                  o[1] = SiLU(dwconv5x5(x) + b)  (-> odd channels)
    H, W, CT = x_ref.shape
    x = x_ref[...].astype(jnp.float32)
    w = w_ref[...].astype(jnp.float32)

    # Hoist the column shifts out of the tap loop: 5 column-shifted copies +
    # 5 row shifts instead of 25 shifted windows (zero-padding is done here,
    # so no wrapper-side jnp.pad pass over the activation).
    # TODO(synk): the column shifts could move to the idle XLU slot via
    # pltpu.roll + edge masks instead of slice+concat.
    xs = [_shift_cols(x, dx) for dx in range(-2, 3)]

    acc = jnp.zeros((H, W, CT), jnp.float32)
    for ky in range(5):                       # statically unrolled 5x5 taps
        row = jnp.zeros((H, W, CT), jnp.float32)
        for kx in range(5):
            row = row + xs[kx] * w[ky * 5 + kx:ky * 5 + kx + 1, :]
        acc = acc + _shift_rows(row, ky - 2)

    z = acc + b_ref[...]
    y = z * jax.nn.sigmoid(z)                 # SiLU
    o_ref[0] = x.astype(o_ref.dtype)
    o_ref[1] = y.astype(o_ref.dtype)


# ----------------------------- wrappers ------------------------------------ #

def pw_conv_bn_silu(x_nhwc, w, b, *, block_m=1024):
    """cv1: 1x1 conv + folded BN + SiLU, tiled & pipelined over M = N*H*W."""
    N, H, W, Cin = x_nhwc.shape
    Cout = w.shape[1]
    M = N * H * W
    xm = x_nhwc.reshape(M, Cin)
    bm = b.reshape(1, Cout)

    tm = max(8, (min(block_m, M) // 8) * 8)          # sublane-aligned row tile
    grid_m = pl.cdiv(M, tm)                          # OOB rows in the last block
    #                                                  are masked on store.
    blk_bytes = 4 * (tm * Cin + Cin * Cout + Cout + tm * Cout)
    vmem_limit = int(min(100 * 2**20, max(32 * 2**20, 2 * blk_bytes + (8 << 20))))

    out = pl.pallas_call(
        _pw_conv_bn_silu_kernel,
        out_shape=jax.ShapeDtypeStruct((M, Cout), x_nhwc.dtype),
        grid=(grid_m,),
        in_specs=[pl.BlockSpec((tm, Cin), lambda i: (i, 0)),
                  pl.BlockSpec((Cin, Cout), lambda i: (0, 0)),
                  pl.BlockSpec((1, Cout), lambda i: (0, 0))],
        out_specs=pl.BlockSpec((tm, Cout), lambda i: (i, 0)),
        compiler_params=pltpu.CompilerParams(
            dimension_semantics=("parallel",),
            vmem_limit_bytes=vmem_limit),
        cost_estimate=pl.CostEstimate(
            flops=int(2 * M * Cin * Cout),
            transcendentals=int(M * Cout),
            bytes_accessed=int(4 * (M * Cin + Cin * Cout + Cout + M * Cout))),
    )(xm, w, bm)
    return out.reshape(N, H, W, Cout)


def dw5_bn_silu_shuffle(x1_nhwc, w25, b, *, max_ct=128):
    """cv2 (5x5 depthwise + folded BN + SiLU) fused with GSConv's concat +
    channel shuffle.  Returns (N, 2, H, W, C): group 0 = x1, group 1 = cv2(x1).
    Grid = (batch, channel-tiles): two parallel axes (v7x megacore) and channel
    tiling bounds per-step VMEM (v7x has only 64 MiB).
    TODO(synk): add H-strip tiling with manual halo DMA for very large H*W."""
    N, H, W, C = x1_nhwc.shape
    ct = max_ct if C % max_ct == 0 else C            # 128-lane tiles when possible
    grid = (N, C // ct)
    bm = b.reshape(1, C)

    blk_bytes = 4 * (3 * H * W * ct + 26 * ct)       # x tile + 2x out tile + params
    vmem_limit = int(min(100 * 2**20, max(32 * 2**20, 2 * blk_bytes + (8 << 20))))

    return pl.pallas_call(
        _dw5_bn_silu_shuffle_kernel,
        out_shape=jax.ShapeDtypeStruct((N, 2, H, W, C), x1_nhwc.dtype),
        grid=grid,
        in_specs=[pl.BlockSpec((None, H, W, ct), lambda n, c: (n, 0, 0, c)),
                  pl.BlockSpec((25, ct), lambda n, c: (0, c)),
                  pl.BlockSpec((1, ct), lambda n, c: (0, c))],
        out_specs=pl.BlockSpec((None, 2, H, W, ct), lambda n, c: (n, 0, 0, 0, c)),
        compiler_params=pltpu.CompilerParams(
            dimension_semantics=("parallel", "parallel"),
            vmem_limit_bytes=vmem_limit),
        cost_estimate=pl.CostEstimate(
            flops=int(2 * N * H * W * C * 25),
            transcendentals=int(N * H * W * C),
            bytes_accessed=int(4 * (3 * N * H * W * C + 26 * C))),
    )(x1_nhwc, w25, bm)


@functools.partial(jax.jit, static_argnames=("block_m",))
def gsconv_forward(x_nchw, params, *, block_m=1024):
    """GSConv.forward (NCHW in, NCHW out)."""
    x = jnp.transpose(x_nchw, (0, 2, 3, 1))                     # NCHW -> NHWC
    x1 = pw_conv_bn_silu(x, params["w1"], params["b1"], block_m=block_m)
    grp = dw5_bn_silu_shuffle(x1, params["w2"], params["b2"])   # (N,2,H,W,c_)
    N, _, H, W, c_ = grp.shape
    # channel shuffle out[:, 2c+g] = grp[:, g, :, :, c], folded into the single
    # NHWC->NCHW transpose the external contract needs anyway.
    return jnp.transpose(grp, (0, 4, 1, 2, 3)).reshape(N, 2 * c_, H, W)


# ----------------------------- param init / reference ---------------------- #

def _fold_bn(scale_shape, w_raw, keys, eps=1e-3):
    gamma = 1.0 + 0.1 * jax.random.normal(keys[0], scale_shape)
    beta = 0.1 * jax.random.normal(keys[1], scale_shape)
    mean = 0.1 * jax.random.normal(keys[2], scale_shape)
    var = jnp.abs(jax.random.normal(keys[3], scale_shape)) + 0.5
    scale = gamma / jnp.sqrt(var + eps)
    w_fold = w_raw * scale                   # broadcast over out-channel axis
    b_fold = beta - mean * scale
    return w_fold, b_fold


def _conv_ref(x_nhwc, w_hwio, b, groups=1):
    out = jax.lax.conv_general_dilated(
        x_nhwc, w_hwio, (1, 1), "SAME",
        dimension_numbers=("NHWC", "HWIO", "NHWC"),
        feature_group_count=groups)
    out = out + b
    return out * jax.nn.sigmoid(out)


if __name__ == "__main__":
    N, c1, c2, H, W = 2, 4, 8, 16, 16
    c_ = c2 // 2
    key = jax.random.PRNGKey(0)
    keys = jax.random.split(key, 11)

    x = jax.random.normal(keys[0], (N, c1, H, W), jnp.float32)

    # cv1: 1x1 conv weights (Cin, c_) with BN folded in
    w1_raw = 0.2 * jax.random.normal(keys[1], (c1, c_), jnp.float32)
    w1, b1 = _fold_bn((c_,), w1_raw, keys[2:6])

    # cv2: 5x5 depthwise weights (5, 5, c_) with BN folded in
    w2_raw = 0.1 * jax.random.normal(keys[6], (5, 5, c_), jnp.float32)
    w2, b2 = _fold_bn((c_,), w2_raw, keys[7:11])

    params = {"w1": w1, "b1": b1, "w2": w2.reshape(25, c_), "b2": b2}

    out = jax.block_until_ready(gsconv_forward(x, params, block_m=128))

    # plain-JAX reference of the same (BN-folded, eval-mode) forward
    x_nhwc = jnp.transpose(x, (0, 2, 3, 1))
    y1 = _conv_ref(x_nhwc, w1.reshape(1, 1, c1, c_), b1)                 # cv1
    y2 = _conv_ref(y1, w2.reshape(5, 5, 1, c_), b2, groups=c_)           # cv2 (dw)
    ref = jnp.stack([y1, y2], axis=-1).reshape(N, H, W, 2 * c_)          # shuffle
    ref = jnp.transpose(ref, (0, 3, 1, 2))                               # -> NCHW

    assert out.shape == (N, c2, H, W)
    err = float(jnp.max(jnp.abs(out - ref)))
    assert jnp.allclose(out, ref, atol=3e-2, rtol=3e-2), f"max abs err {err}"
    print("KERNEL_OK")
</pallas_src>

<mosaic_0001>
module attributes {stable_mosaic.version = 11 : i64} {
  func.func @_pw_conv_bn_silu_kernel(%arg0: i32, %arg1: memref<128x4xf32, #tpu.memory_space<vmem>>, %arg2: memref<4x4xf32, #tpu.memory_space<vmem>>, %arg3: memref<1x4xf32, #tpu.memory_space<vmem>>, %arg4: memref<128x4xf32, #tpu.memory_space<vmem>>) attributes {dimension_semantics = [#tpu.dimension_semantics<parallel>], iteration_bounds = array<i64: 4>, scalar_prefetch = 0 : i64, scratch_operands = 0 : i64, tpu.core_type = #tpu.core_type<tc>, window_params = [{transform_indices = @transform_0, window_bounds = array<i64: 128, 4>}, {pipeline_mode = #tpu.pipeline_mode<synchronous>, transform_indices = @transform_1, window_bounds = array<i64: 4, 4>}, {pipeline_mode = #tpu.pipeline_mode<synchronous>, transform_indices = @transform_2, window_bounds = array<i64: 1, 4>}, {transform_indices = @transform_3, window_bounds = array<i64: 128, 4>}]} {
    %c0 = arith.constant 0 : index
    %c0_0 = arith.constant 0 : index
    %0 = vector.load %arg1[%c0, %c0_0] : memref<128x4xf32, #tpu.memory_space<vmem>>, vector<128x4xf32>
    %1 = arith.truncf %0 : vector<128x4xf32> to vector<128x4xbf16>
    %c0_1 = arith.constant 0 : index
    %c0_2 = arith.constant 0 : index
    %2 = vector.load %arg2[%c0_1, %c0_2] : memref<4x4xf32, #tpu.memory_space<vmem>>, vector<4x4xf32>
    %3 = arith.truncf %2 : vector<4x4xf32> to vector<4x4xbf16>
    %cst = arith.constant dense<0.000000e+00> : vector<128x4xf32>
    %4 = tpu.matmul %1, %3, %cst {dimension_numbers = #tpu.dot_dimension_numbers<[1], [0], [0], [1], [0, 0, 1, 1], [], []>} : vector<128x4xbf16>, vector<4x4xbf16>, vector<128x4xf32> -> vector<128x4xf32>
    %c0_3 = arith.constant 0 : index
    %c0_4 = arith.constant 0 : index
    %5 = vector.load %arg3[%c0_3, %c0_4] : memref<1x4xf32, #tpu.memory_space<vmem>>, vector<1x4xf32>
    %6 = vector.broadcast %5 : vector<1x4xf32> to vector<128x4xf32>
    %7 = arith.addf %4, %6 : vector<128x4xf32>
    %8 = arith.negf %7 : vector<128x4xf32>
    %9 = math.exp %8 : vector<128x4xf32>
    %cst_5 = arith.constant 1.000000e+00 : f32
    %10 = vector.broadcast %cst_5 : f32 to vector<128x4xf32>
    %11 = arith.addf %10, %9 : vector<128x4xf32>
    %12 = arith.divf %10, %11 : vector<128x4xf32>
    %13 = arith.mulf %7, %12 : vector<128x4xf32>
    %c0_6 = arith.constant 0 : index
    %c0_7 = arith.constant 0 : index
    %14 = vector.load %arg4[%c0_6, %c0_7] : memref<128x4xf32, #tpu.memory_space<vmem>>, vector<128x4xf32>
    tpu.vector_store %arg4[%c0_6, %c0_7], %13 {strides = array<i32>} : memref<128x4xf32, #tpu.memory_space<vmem>>, vector<128x4xf32>,
    return
  }
  func.func @transform_0(%arg0: i32) -> (i32, i32) {
    %c0_i32 = arith.constant 0 : i32
    %c0_i32_0 = arith.constant 0 : i32
    return %arg0, %c0_i32 : i32, i32
  }
  func.func @transform_1(%arg0: i32) -> (i32, i32) {
    %c0_i32 = arith.constant 0 : i32
    %c0_i32_0 = arith.constant 0 : i32
    %c0_i32_1 = arith.constant 0 : i32
    return %c0_i32, %c0_i32_0 : i32, i32
  }
  func.func @transform_2(%arg0: i32) -> (i32, i32) {
    %c0_i32 = arith.constant 0 : i32
    %c0_i32_0 = arith.constant 0 : i32
    %c0_i32_1 = arith.constant 0 : i32
    return %c0_i32, %c0_i32_0 : i32, i32
  }
  func.func @transform_3(%arg0: i32) -> (i32, i32) {
    %c0_i32 = arith.constant 0 : i32
    %c0_i32_0 = arith.constant 0 : i32
    return %arg0, %c0_i32 : i32, i32
  }
}

module attributes {stable_mosaic.version = 11 : i64} {
  func.func @_dw5_bn_silu_shuffle_kernel(%arg0: i32, %arg1: i32, %arg2: memref<1x16x16x4xf32, #tpu.memory_space<vmem>>, %arg3: memref<25x4xf32, #tpu.memory_space<vmem>>, %arg4: memref<1x4xf32, #tpu.memory_space<vmem>>, %arg5: memref<1x2x16x16x4xf32, #tpu.memory_space<vmem>>) attributes {dimension_semantics = [#tpu.dimension_semantics<parallel>, #tpu.dimension_semantics<parallel>], iteration_bounds = array<i64: 2, 1>, scalar_prefetch = 0 : i64, scratch_operands = 0 : i64, tpu.core_type = #tpu.core_type<tc>, window_params = [{transform_indices = @transform_0, window_bounds = array<i64: 1, 16, 16, 4>}, {transform_indices = @transform_1, window_bounds = array<i64: 25, 4>}, {transform_indices = @transform_2, window_bounds = array<i64: 1, 4>}, {transform_indices = @transform_3, window_bounds = array<i64: 1, 2, 16, 16, 4>}]} {
    %c0 = arith.constant 0 : index
    %c0_0 = arith.constant 0 : index
    %c0_1 = arith.constant 0 : index
    %c0_2 = arith.constant 0 : index
    %0 = vector.load %arg2[%c0, %c0_0, %c0_1, %c0_2] : memref<1x16x16x4xf32, #tpu.memory_space<vmem>>, vector<1x16x16x4xf32>
    %1 = vector.shape_cast %0 : vector<1x16x16x4xf32> to vector<16x16x4xf32>
    %c0_3 = arith.constant 0 : index
    %c0_4 = arith.constant 0 : index
    %2 = vector.load %arg3[%c0_3, %c0_4] : memref<25x4xf32, #tpu.memory_space<vmem>>, vector<25x4xf32>
    %cst = arith.constant 0.000000e+00 : f32
    %3 = vector.broadcast %cst : f32 to vector<16x2x4xf32>
    %4 = vector.extract_strided_slice %1 {offsets = [0, 0, 0], sizes = [16, 14, 4], strides = [1, 1, 1]} : vector<16x16x4xf32> to vector<16x14x4xf32>
    %5 = tpu.concatenate %3, %4 in 1 : vector<16x2x4xf32>, vector<16x14x4xf32> -> vector<16x16x4xf32>
    %cst_5 = arith.constant 0.000000e+00 : f32
    %6 = vector.broadcast %cst_5 : f32 to vector<16x1x4xf32>
    %7 = vector.extract_strided_slice %1 {offsets = [0, 0, 0], sizes = [16, 15, 4], strides = [1, 1, 1]} : vector<16x16x4xf32> to vector<16x15x4xf32>
    %8 = tpu.concatenate %6, %7 in 1 : vector<16x1x4xf32>, vector<16x15x4xf32> -> vector<16x16x4xf32>
    %cst_6 = arith.constant 0.000000e+00 : f32
    %9 = vector.broadcast %cst_6 : f32 to vector<16x1x4xf32>
    %10 = vector.extract_strided_slice %1 {offsets = [0, 1, 0], sizes = [16, 15, 4], strides = [1, 1, 1]} : vector<16x16x4xf32> to vector<16x15x4xf32>
    %11 = tpu.concatenate %10, %9 in 1 : vector<16x15x4xf32>, vector<16x1x4xf32> -> vector<16x16x4xf32>
    %cst_7 = arith.constant 0.000000e+00 : f32
    %12 = vector.broadcast %cst_7 : f32 to vector<16x2x4xf32>
    %13 = vector.extract_strided_slice %1 {offsets = [0, 2, 0], sizes = [16, 14, 4], strides = [1, 1, 1]} : vector<16x16x4xf32> to vector<16x14x4xf32>
    %14 = tpu.concatenate %13, %12 in 1 : vector<16x14x4xf32>, vector<16x2x4xf32> -> vector<16x16x4xf32>
    %cst_8 = arith.constant 0.000000e+00 : f32
    %15 = vector.broadcast %cst_8 : f32 to vector<16x16x4xf32>
    %cst_9 = arith.constant 0.000000e+00 : f32
    %16 = vector.broadcast %cst_9 : f32 to vector<16x16x4xf32>
    %17 = vector.extract_strided_slice %2 {offsets = [0, 0], sizes = [1, 4], strides = [1, 1]} : vector<25x4xf32> to vector<1x4xf32>
    %18 = vector.shape_cast %17 : vector<1x4xf32> to vector<1x1x4xf32>
    %19 = vector.broadcast %18 : vector<1x1x4xf32> to vector<16x16x4xf32>
    %20 = arith.mulf %5, %19 : vector<16x16x4xf32>
    %21 = arith.addf %16, %20 : vector<16x16x4xf32>
    %22 = vector.extract_strided_slice %2 {offsets = [1, 0], sizes = [1, 4], strides = [1, 1]} : vector<25x4xf32> to vector<1x4xf32>
    %23 = vector.shape_cast %22 : vector<1x4xf32> to vector<1x1x4xf32>
    %24 = vector.broadcast %23 : vector<1x1x4xf32> to vector<16x16x4xf32>
    %25 = arith.mulf %8, %24 : vector<16x16x4xf32>
    %26 = arith.addf %21, %25 : vector<16x16x4xf32>
    %27 = vector.extract_strided_slice %2 {offsets = [2, 0], sizes = [1, 4], strides = [1, 1]} : vector<25x4xf32> to vector<1x4xf32>
    %28 = vector.shape_cast %27 : vector<1x4xf32> to vector<1x1x4xf32>
    %29 = vector.broadcast %28 : vector<1x1x4xf32> to vector<16x16x4xf32>
    %30 = arith.mulf %1, %29 : vector<16x16x4xf32>
    %31 = arith.addf %26, %30 : vector<16x16x4xf32>
    %32 = vector.extract_strided_slice %2 {offsets = [3, 0], sizes = [1, 4], strides = [1, 1]} : vector<25x4xf32> to vector<1x4xf32>
    %33 = vector.shape_cast %32 : vector<1x4xf32> to vector<1x1x4xf32>
    %34 = vector.broadcast %33 : vector<1x1x4xf32> to vector<16x16x4xf32>
    %35 = arith.mulf %11, %34 : vector<16x16x4xf32>
    %36 = arith.addf %31, %35 : vector<16x16x4xf32>
    %37 = vector.extract_strided_slice %2 {offsets = [4, 0], sizes = [1, 4], strides = [1, 1]} : vector<25x4xf32> to vector<1x4xf32>
    %38 = vector.shape_cast %37 : vector<1x4xf32> to vector<1x1x4xf32>
    %39 = vector.broadcast %38 : vector<1x1x4xf32> to vector<16x16x4xf32>
    %40 = arith.mulf %14, %39 : vector<16x16x4xf32>
    %41 = arith.addf %36, %40 : vector<16x16x4xf32>
    %cst_10 = arith.constant 0.000000e+00 : f32
    %42 = vector.broadcast %cst_10 : f32 to vector<2x16x4xf32>
    %43 = vector.extract_strided_slice %41 {offsets = [0, 0, 0], sizes = [14, 16, 4], strides = [1, 1, 1]} : vector<16x16x4xf32> to vector<14x16x4xf32>
    %44 = tpu.concatenate %42, %43 in 0 : vector<2x16x4xf32>, vector<14x16x4xf32> -> vector<16x16x4xf32>
    %45 = arith.addf %15, %44 : vector<16x16x4xf32>
    %cst_11 = arith.constant 0.000000e+00 : f32
    %46 = vector.broadcast %cst_11 : f32 to vector<16x16x4xf32>
    %47 = vector.extract_strided_slice %2 {offsets = [5, 0], sizes = [1, 4], strides = [1, 1]} : vector<25x4xf32> to vector<1x4xf32>
    %48 = vector.shape_cast %47 : vector<1x4xf32> to vector<1x1x4xf32>
    %49 = vector.broadcast %48 : vector<1x1x4xf32> to vector<16x16x4xf32>
    %50 = arith.mulf %5, %49 : vector<16x16x4xf32>
    %51 = arith.addf %46, %50 : vector<16x16x4xf32>
    %52 = vector.extract_strided_slice %2 {offsets = [6, 0], sizes = [1, 4], strides = [1, 1]} : vector<25x4xf32> to vector<1x4xf32>
    %53 = vector.shape_cast %52 : vector<1x4xf32> to vector<1x1x4xf32>
    %54 = vector.broadcast %53 : vector<1x1x4xf32> to vector<16x16x4xf32>
    %55 = arith.mulf %8, %54 : vector<16x16x4xf32>
    %56 = arith.addf %51, %55 : vector<16x16x4xf32>
    %57 = vector.extract_strided_slice %2 {offsets = [7, 0], sizes = [1, 4], strides = [1, 1]} : vector<25x4xf32> to vector<1x4xf32>
    %58 = vector.shape_cast %57 : vector<1x4xf32> to vector<1x1x4xf32>
    %59 = vector.broadcast %58 : vector<1x1x4xf32> to vector<16x16x4xf32>
    %60 = arith.mulf %1, %59 : vector<16x16x4xf32>
    %61 = arith.addf %56, %60 : vector<16x16x4xf32>
    %62 = vector.extract_strided_slice %2 {offsets = [8, 0], sizes = [1, 4], strides = [1, 1]} : vector<25x4xf32> to vector<1x4xf32>
    %63 = vector.shape_cast %62 : vector<1x4xf32> to vector<1x1x4xf32>
    %64 = vector.broadcast %63 : vector<1x1x4xf32> to vector<16x16x4xf32>
    %65 = arith.mulf %11, %64 : vector<16x16x4xf32>
    %66 = arith.addf %61, %65 : vector<16x16x4xf32>
    %67 = vector.extract_strided_slice %2 {offsets = [9, 0], sizes = [1, 4], strides = [1, 1]} : vector<25x4xf32> to vector<1x4xf32>
    %68 = vector.shape_cast %67 : vector<1x4xf32> to vector<1x1x4xf32>
    %69 = vector.broadcast %68 : vector<1x1x4xf32> to vector<16x16x4xf32>
    %70 = arith.mulf %14, %69 : vector<16x16x4xf32>
    %71 = arith.addf %66, %70 : vector<16x16x4xf32>
    %cst_12 = arith.constant 0.000000e+00 : f32
    %72 = vector.broadcast %cst_12 : f32 to vector<1x16x4xf32>
    %73 = vector.extract_strided_slice %71 {offsets = [0, 0, 0], sizes = [15, 16, 4], strides = [1, 1, 1]} : vector<16x16x4xf32> to vector<15x16x4xf32>
    %74 = tpu.concatenate %72, %73 in 0 : vector<1x16x4xf32>, vector<15x16x4xf32> -> vector<16x16x4xf32>
    %75 = arith.addf %45, %74 : vector<16x16x4xf32>
    %cst_13 = arith.constant 0.000000e+00 : f32
    %76 = vector.broadcast %cst_13 : f32 to vector<16x16x4xf32>
    %77 = vector.extract_strided_slice %2 {offsets = [10, 0], sizes = [1, 4], strides = [1, 1]} : vector<25x4xf32> to vector<1x4xf32>
    %78 = vector.shape_cast %77 : vector<1x4xf32> to vector<1x1x4xf32>
    %79 = vector.broadcast %78 : vector<1x1x4xf32> to vector<16x16x4xf32>
    %80 = arith.mulf %5, %79 : vector<16x16x4xf32>
    %81 = arith.addf %76, %80 : vector<16x16x4xf32>
    %82 = vector.extract_strided_slice %2 {offsets = [11, 0], sizes = [1, 4], strides = [1, 1]} : vector<25x4xf32> to vector<1x4xf32>
    %83 = vector.shape_cast %82 : vector<1x4xf32> to vector<1x1x4xf32>
    %84 = vector.broadcast %83 : vector<1x1x4xf32> to vector<16x16x4xf32>
    %85 = arith.mulf %8, %84 : vector<16x16x4xf32>
    %86 = arith.addf %81, %85 : vector<16x16x4xf32>
    %87 = vector.extract_strided_slice %2 {offsets = [12, 0], sizes = [1, 4], strides = [1, 1]} : vector<25x4xf32> to vector<1x4xf32>
    %88 = vector.shape_cast %87 : vector<1x4xf32> to vector<1x1x4xf32>
    %89 = vector.broadcast %88 : vector<1x1x4xf32> to vector<16x16x4xf32>
    %90 = arith.mulf %1, %89 : vector<16x16x4xf32>
    %91 = arith.addf %86, %90 : vector<16x16x4xf32>
    %92 = vector.extract_strided_slice %2 {offsets = [13, 0], sizes = [1, 4], strides = [1, 1]} : vector<25x4xf32> to vector<1x4xf32>
    %93 = vector.shape_cast %92 : vector<1x4xf32> to vector<1x1x4xf32>
    %94 = vector.broadcast %93 : vector<1x1x4xf32> to vector<16x16x4xf32>
    %95 = arith.mulf %11, %94 : vector<16x16x4xf32>
    %96 = arith.addf %91, %95 : vector<16x16x4xf32>
    %97 = vector.extract_strided_slice %2 {offsets = [14, 0], sizes = [1, 4], strides = [1, 1]} : vector<25x4xf32> to vector<1x4xf32>
    %98 = vector.shape_cast %97 : vector<1x4xf32> to vector<1x1x4xf32>
    %99 = vector.broadcast %98 : vector<1x1x4xf32> to vector<16x16x4xf32>
    %100 = arith.mulf %14, %99 : vector<16x16x4xf32>
    %101 = arith.addf %96, %100 : vector<16x16x4xf32>
    %102 = arith.addf %75, %101 : vector<16x16x4xf32>
    %cst_14 = arith.constant 0.000000e+00 : f32
    %103 = vector.broadcast %cst_14 : f32 to vector<16x16x4xf32>
    %104 = vector.extract_strided_slice %2 {offsets = [15, 0], sizes = [1, 4], strides = [1, 1]} : vector<25x4xf32> to vector<1x4xf32>
    %105 = vector.shape_cast %104 : vector<1x4xf32> to vector<1x1x4xf32>
    %106 = vector.broadcast %105 : vector<1x1x4xf32> to vector<16x16x4xf32>
    %107 = arith.mulf %5, %106 : vector<16x16x4xf32>
    %108 = arith.addf %103, %107 : vector<16x16x4xf32>
    %109 = vector.extract_strided_slice %2 {offsets = [16, 0], sizes = [1, 4], strides = [1, 1]} : vector<25x4xf32> to vector<1x4xf32>
    %110 = vector.shape_cast %109 : vector<1x4xf32> to vector<1x1x4xf32>
    %111 = vector.broadcast %110 : vector<1x1x4xf32> to vector<16x16x4xf32>
    %112 = arith.mulf %8, %111 : vector<16x16x4xf32>
    %113 = arith.addf %108, %112 : vector<16x16x4xf32>
    %114 = vector.extract_strided_slice %2 {offsets = [17, 0], sizes = [1, 4], strides = [1, 1]} : vector<25x4xf32> to vector<1x4xf32>
    %115 = vector.shape_cast %114 : vector<1x4xf32> to vector<1x1x4xf32>
    %116 = vector.broadcast %115 : vector<1x1x4xf32> to vector<16x16x4xf32>
    %117 = arith.mulf %1, %116 : vector<16x16x4xf32>
    %118 = arith.addf %113, %117 : vector<16x16x4xf32>
    %119 = vector.extract_strided_slice %2 {offsets = [18, 0], sizes = [1, 4], strides = [1, 1]} : vector<25x4xf32> to vector<1x4xf32>
    %120 = vector.shape_cast %119 : vector<1x4xf32> to vector<1x1x4xf32>
    %121 = vector.broadcast %120 : vector<1x1x4xf32> to vector<16x16x4xf32>
    %122 = arith.mulf %11, %121 : vector<16x16x4xf32>
    %123 = arith.addf %118, %122 : vector<16x16x4xf32>
    %124 = vector.extract_strided_slice %2 {offsets = [19, 0], sizes = [1, 4], strides = [1, 1]} : vector<25x4xf32> to vector<1x4xf32>
    %125 = vector.shape_cast %124 : vector<1x4xf32> to vector<1x1x4xf32>
    %126 = vector.broadcast %125 : vector<1x1x4xf32> to vector<16x16x4xf32>
    %127 = arith.mulf %14, %126 : vector<16x16x4xf32>
    %128 = arith.addf %123, %127 : vector<16x16x4xf32>
    %cst_15 = arith.constant 0.000000e+00 : f32
    %129 = vector.broadcast %cst_15 : f32 to vector<1x16x4xf32>
    %130 = vector.extract_strided_slice %128 {offsets = [1, 0, 0], sizes = [15, 16, 4], strides = [1, 1, 1]} : vector<16x16x4xf32> to vector<15x16x4xf32>
    %131 = tpu.concatenate %130, %129 in 0 : vector<15x16x4xf32>, vector<1x16x4xf32> -> vector<16x16x4xf32>
    %132 = arith.addf %102, %131 : vector<16x16x4xf32>
    %cst_16 = arith.constant 0.000000e+00 : f32
    %133 = vector.broadcast %cst_16 : f32 to vector<16x16x4xf32>
    %134 = vector.extract_strided_slice %2 {offsets = [20, 0], sizes = [1, 4], strides = [1, 1]} : vector<25x4xf32> to vector<1x4xf32>
    %135 = vector.shape_cast %134 : vector<1x4xf32> to vector<1x1x4xf32>
    %136 = vector.broadcast %135 : vector<1x1x4xf32> to vector<16x16x4xf32>
    %137 = arith.mulf %5, %136 : vector<16x16x4xf32>
    %138 = arith.addf %133, %137 : vector<16x16x4xf32>
    %139 = vector.extract_strided_slice %2 {offsets = [21, 0], sizes = [1, 4], strides = [1, 1]} : vector<25x4xf32> to vector<1x4xf32>
    %140 = vector.shape_cast %139 : vector<1x4xf32> to vector<1x1x4xf32>
    %141 = vector.broadcast %140 : vector<1x1x4xf32> to vector<16x16x4xf32>
    %142 = arith.mulf %8, %141 : vector<16x16x4xf32>
    %143 = arith.addf %138, %142 : vector<16x16x4xf32>
    %144 = vector.extract_strided_slice %2 {offsets = [22, 0], sizes = [1, 4], strides = [1, 1]} : vector<25x4xf32> to vector<1x4xf32>
    %145 = vector.shape_cast %144 : vector<1x4xf32> to vector<1x1x4xf32>
    %146 = vector.broadcast %145 : vector<1x1x4xf32> to vector<16x16x4xf32>
    %147 = arith.mulf %1, %146 : vector<16x16x4xf32>
    %148 = arith.addf %143, %147 : vector<16x16x4xf32>
    %149 = vector.extract_strided_slice %2 {offsets = [23, 0], sizes = [1, 4], strides = [1, 1]} : vector<25x4xf32> to vector<1x4xf32>
    %150 = vector.shape_cast %149 : vector<1x4xf32> to vector<1x1x4xf32>
    %151 = vector.broadcast %150 : vector<1x1x4xf32> to vector<16x16x4xf32>
    %152 = arith.mulf %11, %151 : vector<16x16x4xf32>
    %153 = arith.addf %148, %152 : vector<16x16x4xf32>
    %154 = vector.extract_strided_slice %2 {offsets = [24, 0], sizes = [1, 4], strides = [1, 1]} : vector<25x4xf32> to vector<1x4xf32>
    %155 = vector.shape_cast %154 : vector<1x4xf32> to vector<1x1x4xf32>
    %156 = vector.broadcast %155 : vector<1x1x4xf32> to vector<16x16x4xf32>
    %157 = arith.mulf %14, %156 : vector<16x16x4xf32>
    %158 = arith.addf %153, %157 : vector<16x16x4xf32>
    %cst_17 = arith.constant 0.000000e+00 : f32
    %159 = vector.broadcast %cst_17 : f32 to vector<2x16x4xf32>
    %160 = vector.extract_strided_slice %158 {offsets = [2, 0, 0], sizes = [14, 16, 4], strides = [1, 1, 1]} : vector<16x16x4xf32> to vector<14x16x4xf32>
    %161 = tpu.concatenate %160, %159 in 0 : vector<14x16x4xf32>, vector<2x16x4xf32> -> vector<16x16x4xf32>
    %162 = arith.addf %132, %161 : vector<16x16x4xf32>
    %c0_18 = arith.constant 0 : index
    %c0_19 = arith.constant 0 : index
    %163 = vector.load %arg4[%c0_18, %c0_19] : memref<1x4xf32, #tpu.memory_space<vmem>>, vector<1x4xf32>
    %164 = vector.shape_cast %163 : vector<1x4xf32> to vector<1x1x4xf32>
    %165 = vector.broadcast %164 : vector<1x1x4xf32> to vector<16x16x4xf32>
    %166 = arith.addf %162, %165 : vector<16x16x4xf32>
    %167 = arith.negf %166 : vector<16x16x4xf32>
    %168 = math.exp %167 : vector<16x16x4xf32>
    %cst_20 = arith.constant 1.000000e+00 : f32
    %169 = vector.broadcast %cst_20 : f32 to vector<16x16x4xf32>
    %170 = arith.addf %169, %168 : vector<16x16x4xf32>
    %171 = arith.divf %169, %170 : vector<16x16x4xf32>
    %172 = arith.mulf %166, %171 : vector<16x16x4xf32>
    %c0_21 = arith.constant 0 : index
    %c0_22 = arith.constant 0 : index
    %c0_23 = arith.constant 0 : index
    %c0_24 = arith.constant 0 : index
    %c0_25 = arith.constant 0 : index
    %173 = vector.load %arg5[%c0_21, %c0_22, %c0_23, %c0_24, %c0_25] : memref<1x2x16x16x4xf32, #tpu.memory_space<vmem>>, vector<1x1x16x16x4xf32>
    %174 = vector.shape_cast %173 : vector<1x1x16x16x4xf32> to vector<16x16x4xf32>
    %175 = vector.shape_cast %1 : vector<16x16x4xf32> to vector<1x1x16x16x4xf32>
    tpu.vector_store %arg5[%c0_21, %c0_22, %c0_23, %c0_24, %c0_25], %175 {strides = array<i32>} : memref<1x2x16x16x4xf32, #tpu.memory_space<vmem>>, vector<1x1x16x16x4xf32>,
    %c0_26 = arith.constant 0 : index
    %c1 = arith.constant 1 : index
    %c0_27 = arith.constant 0 : index
    %c0_28 = arith.constant 0 : index
    %c0_29 = arith.constant 0 : index
    %176 = vector.load %arg5[%c0_26, %c1, %c0_27, %c0_28, %c0_29] : memref<1x2x16x16x4xf32, #tpu.memory_space<vmem>>, vector<1x1x16x16x4xf32>
    %177 = vector.shape_cast %176 : vector<1x1x16x16x4xf32> to vector<16x16x4xf32>
    %178 = vector.shape_cast %172 : vector<16x16x4xf32> to vector<1x1x16x16x4xf32>
    tpu.vector_store %arg5[%c0_26, %c1, %c0_27, %c0_28, %c0_29], %178 {strides = array<i32>} : memref<1x2x16x16x4xf32, #tpu.memory_space<vmem>>, vector<1x1x16x16x4xf32>,
    return
  }
  func.func @transform_0(%arg0: i32, %arg1: i32) -> (i32, i32, i32, i32) {
    %c0_i32 = arith.constant 0 : i32
    %c0_i32_0 = arith.constant 0 : i32
    %c0_i32_1 = arith.constant 0 : i32
    return %arg0, %c0_i32, %c0_i32_0, %arg1 : i32, i32, i32, i32
  }
  func.func @transform_1(%arg0: i32, %arg1: i32) -> (i32, i32) {
    %c0_i32 = arith.constant 0 : i32
    %c0_i32_0 = arith.constant 0 : i32
    return %c0_i32, %arg1 : i32, i32
  }
  func.func @transform_2(%arg0: i32, %arg1: i32) -> (i32, i32) {
    %c0_i32 = arith.constant 0 : i32
    %c0_i32_0 = arith.constant 0 : i32
    return %c0_i32, %arg1 : i32, i32
  }
  func.func @transform_3(%arg0: i32, %arg1: i32) -> (i32, i32, i32, i32, i32) {
    %c0_i32 = arith.constant 0 : i32
    %c0_i32_0 = arith.constant 0 : i32
    %c0_i32_1 = arith.constant 0 : i32
    %c0_i32_2 = arith.constant 0 : i32
    return %arg0, %c0_i32, %c0_i32_0, %c0_i32_1, %arg1 : i32, i32, i32, i32, i32
  }
}

</mosaic_0001>

<llo_original>
// kernel: gsconv_forward.2
$region0: #{gsconv_forward.2}
  #allocation0 [shape = 'u32[]', space=smem, size = 0x4, offset = 0x4, fixed_abs, tag = 'smem constant byte address 0x4 - core index']
  #allocation1 [shape = 'u32[72,128]{1,0:T(1,128)}', space=vmem, size = 0x9000, scoped, tag = 'internal scratch']
  %s0 = inlined_call_operand.vmem [shape: f32[512,4], index: 0, kind: input, shape index: {}]
  %s1 = inlined_call_operand.vmem [shape: f32[4,4], index: 1, kind: input, shape index: {}]
  %s2 = inlined_call_operand.vmem [shape: f32[1,4], index: 2, kind: input, shape index: {}]
  %s3 = inlined_call_operand.vmem [shape: f32[512,4], index: 3, kind: output, shape index: {}]
  %s4 = sld [smem:[#allocation0]]
  $region45: #{gsconv_forward.2} parent=0
    _
  %s6 = ssub.s32 1, %s4
  %s7 = scalar_select 0, %s6, %s4
  loop: start=0, step=1, limit=6
  $region2: #{gsconv_forward.2} parent=0 // loop_pre_header
    _
  $region3: #{gsconv_forward.2} parent=0 // loop_header
    %s9 = sphi 0, %s13
    %p10 = scmp.ge.s32.totalorder %s9, 6
    %s19 = sphi 0, %s21
    %s22 = sphi 0, %s19
    %s23 = sphi 0, %s22
    %s39 = sphi 0, %s23
    %s43 = sphi 0, %s43
    %s45 = sphi 0, %s43
    %s46 = sphi 0, %s45
    %s60 = sphi 0, %s46
    %s64 = sphi 0, %s64
    %s66 = sphi 0, %s64
    %s67 = sphi 0, %s66
    %s81 = sphi 0, %s67
    %s87 = sphi 0, %s89
    %s90 = sphi 0, %s87
    %s91 = sphi 0, %s90
    %s107 = sphi 0, %s91
  $region4: #{gsconv_forward.2} parent=0 // loop_header_branch
    %12 = sbr.rel (%p10) target = $region8
  $region5: #{gsconv_forward.2} parent=0 // loop_body
    %s14 = ssub.s32 %s9, 1
    %s15 = ssub.s32 %s9, 2
    %s16 = sadd.s32 %s9, 1
    %s17 = ssub.s32 %s9, %s16
    %p18 = scmp.eq.s32.totalorder %s17, 0
    %s20 = sadd.s32 %s19, 1
    %s21 = scalar_select %p18, %s19, %s20
    %p24 = pneg %p18
    %p25 = scmp.eq.s32.totalorder %s9, 3
    %p26 = por %p24, %p25
    %p27 = scmp.ne.s32.totalorder %s19, %s22
    %p28 = scmp.eq.s32.totalorder %s9, 0
    %p29 = por %p27, %p28
    %p30 = scmp.ne.s32.totalorder %s19, %s22
    %p31 = scmp.eq.s32.totalorder %s14, 3
    %p32 = por %p30, %p31
    %p33 = scmp.ne.s32.totalorder %s22, %s23
    %p34 = scmp.eq.s32.totalorder %s14, 0
    %p35 = por %p33, %p34
    %p36 = scmp.ne.s32.totalorder %s22, %s23
    %p37 = scmp.eq.s32.totalorder %s15, 3
    %p38 = por %p36, %p37
    %p40 = scmp.ne.s32.totalorder %s23, %s39
    %p41 = scmp.eq.s32.totalorder %s15, 0
    %p42 = por %p40, %p41
    %s44 = sadd.s32 %s43, 1
    %p47 = scmp.eq.s32.totalorder %s9, 3
    %p48 = scmp.ne.s32.totalorder %s43, %s45
    %p49 = scmp.eq.s32.totalorder %s9, 0
    %p50 = por %p48, %p49
    %p51 = scmp.ne.s32.totalorder %s43, %s45
    %p52 = scmp.eq.s32.totalorder %s14, 3
    %p53 = por %p51, %p52
    %p54 = scmp.ne.s32.totalorder %s45, %s46
    %p55 = scmp.eq.s32.totalorder %s14, 0
    %p56 = por %p54, %p55
    %p57 = scmp.ne.s32.totalorder %s45, %s46
    %p58 = scmp.eq.s32.totalorder %s15, 3
    %p59 = por %p57, %p58
    %p61 = scmp.ne.s32.totalorder %s46, %s60
    %p62 = scmp.eq.s32.totalorder %s15, 0
    %p63 = por %p61, %p62
    %s65 = sadd.s32 %s64, 1
    %p68 = scmp.eq.s32.totalorder %s9, 3
    %p69 = scmp.ne.s32.totalorder %s64, %s66
    %p70 = scmp.eq.s32.totalorder %s9, 0
    %p71 = por %p69, %p70
    %p72 = scmp.ne.s32.totalorder %s64, %s66
    %p73 = scmp.eq.s32.totalorder %s14, 3
    %p74 = por %p72, %p73
    %p75 = scmp.ne.s32.totalorder %s66, %s67
    %p76 = scmp.eq.s32.totalorder %s14, 0
    %p77 = por %p75, %p76
    %p78 = scmp.ne.s32.totalorder %s66, %s67
    %p79 = scmp.eq.s32.totalorder %s15, 3
    %p80 = por %p78, %p79
    %p82 = scmp.ne.s32.totalorder %s67, %s81
    %p83 = scmp.eq.s32.totalorder %s15, 0
    %p84 = por %p82, %p83
    %s85 = ssub.s32 %s9, %s16
    %p86 = scmp.eq.s32.totalorder %s85, 0
    %s88 = sadd.s32 %s87, 1
    %s89 = scalar_select %p86, %s87, %s88
    %p92 = pneg %p86
    %p93 = scmp.eq.s32.totalorder %s9, 3
    %p94 = por %p92, %p93
    %p95 = scmp.ne.s32.totalorder %s87, %s90
    %p96 = scmp.eq.s32.totalorder %s9, 0
    %p97 = por %p95, %p96
    %p98 = scmp.ne.s32.totalorder %s87, %s90
    %p99 = scmp.eq.s32.totalorder %s14, 3
    %p100 = por %p98, %p99
    %p101 = scmp.ne.s32.totalorder %s90, %s91
    %p102 = scmp.eq.s32.totalorder %s14, 0
    %p103 = por %p101, %p102
    %p104 = scmp.ne.s32.totalorder %s90, %s91
    %p105 = scmp.eq.s32.totalorder %s15, 3
    %p106 = por %p104, %p105
    %p108 = scmp.ne.s32.totalorder %s91, %s107
    %p109 = scmp.eq.s32.totalorder %s15, 0
    %p110 = por %p108, %p109
    %p111 = scmp.le.s32.totalorder 1, %s9
    %p112 = scmp.lt.s32.totalorder %s9, 5
    %p113 = pnand %p111, %p112
    %p114 = pneg %p113
    // Predicated region
    $region9: #{gsconv_forward.2} parent=5 // pred_check
      _
    $region10: #{gsconv_forward.2} parent=5 // pred_check_branch
      %116 = sbr.rel (%p113) target = $region12
    $region11: #{gsconv_forward.2} parent=5 // pred_region
      %s117 = ssub.s32 %s9, 1
      // Predicated region
      $region13: #{gsconv_forward.2} parent=11 // pred_check
        %p118 = pneg %p56
      $region14: #{gsconv_forward.2} parent=11 // pred_check_branch
        %120 = sbr.rel (%p118) target = $region16
      $region15: #{gsconv_forward.2} parent=11 // pred_region
        _
      $region16: #{gsconv_forward.2} parent=11 // pred_fallthru
        _
      // Predicated region
      $region17: #{gsconv_forward.2} parent=11 // pred_check
        %p121 = pneg %p77
      $region18: #{gsconv_forward.2} parent=11 // pred_check_branch
        %123 = sbr.rel (%p121) target = $region20
      $region19: #{gsconv_forward.2} parent=11 // pred_region
        _
      $region20: #{gsconv_forward.2} parent=11 // pred_fallthru
        _
    $region12: #{gsconv_forward.2} parent=5 // pred_fallthru
      _
    %p124 = scmp.lt.s32.totalorder %s9, 4
    // Predicated region
    $region21: #{gsconv_forward.2} parent=5 // pred_check
      %p125 = pneg %p124
    $region22: #{gsconv_forward.2} parent=5 // pred_check_branch
      %127 = sbr.rel (%p125) target = $region24
    $region23: #{gsconv_forward.2} parent=5 // pred_region
      // Predicated region
      $region25: #{gsconv_forward.2} parent=23 // pred_check
        %p128 = pneg %p29
      $region26: #{gsconv_forward.2} parent=23 // pred_check_branch
        %130 = sbr.rel (%p128) target = $region28
      $region27: #{gsconv_forward.2} parent=23 // pred_region
        %s131 = smul.u32 16, %s9
        %p132 = scmp.lt.s32.totalorder %s131, 63
        %s133 = scalar_select %p132, %s131, 63
        %s134 = smul.addr %s133, 8
        %s135 = scalar_lea.vmem %s0, %s134
        %s136 = smul.u32 16, %s9
      $region28: #{gsconv_forward.2} parent=23 // pred_fallthru
        _
    $region24: #{gsconv_forward.2} parent=5 // pred_fallthru
      _
    %p137 = scmp.le.s32.totalorder 1, %s9
    %p138 = scmp.lt.s32.totalorder %s9, 5
    %p139 = pnand %p137, %p138
    %p140 = pneg %p139
    // Predicated region
    $region29: #{gsconv_forward.2} parent=5 // pred_check
      _
    $region30: #{gsconv_forward.2} parent=5 // pred_check_branch
      %142 = sbr.rel (%p139) target = $region32
    $region31: #{gsconv_forward.2} parent=5 // pred_region
      %s143 = ssub.s32 %s9, 1
      %s144 = smul.u32 16, %s14
      %p145 = scmp.lt.s32.totalorder %s144, 63
      %s146 = scalar_select %p145, %s144, 63
      %s147 = smul.addr %s146, 8
      %s148 = scalar_lea.vmem %s0, %s147
      %p149 = pneg %p35
      %p150 = pneg %p32
      %p151 = pneg %p56
      %p152 = pneg %p53
      %p153 = pneg %p77
      %p154 = pneg %p74
      %p155 = pneg %p103
      %p156 = pneg %p100
      %s157 = smul.u32 16, %s14
      %p158 = scmp.lt.s32.totalorder %s157, 63
      %s159 = scalar_select %p158, %s157, 63
      %s160 = smul.addr %s159, 8
      %s161 = scalar_lea.vmem %s3, %s160
      %s162 = smul.u32 16, %s14
      %p163 = scmp.lt.s32.totalorder %s162, 63
      %s164 = scalar_select %p163, %s162, 63
      %s165 = smul.addr %s164, 8
      %s166 = scalar_lea.vmem %s0, %s165
      %s167 = smul.u32 16, %s14
      %s168 = smul.u32 16, %s14
      %p169 = scmp.lt.s32.totalorder %s168, 63
      %s170 = scalar_select %p169, %s168, 63
      %s171 = smul.addr %s170, 8
      %s172 = scalar_lea.vmem %s3, %s171
      %s173 = smul.u32 16, %s14
      %v175 = vld [vmem:[%s166] sm:$0xff]
      %v176 = vld [vmem:[%s166 + $0x8] sm:$0xff]
      %v177 = vld [vmem:[%s166 + $0x10] sm:$0xff]
      %v178 = vld [vmem:[%s166 + $0x18] sm:$0xff]
      %v179 = vld [vmem:[%s166 + $0x20] sm:$0xff]
      %v180 = vld [vmem:[%s166 + $0x28] sm:$0xff]
      %v181 = vld [vmem:[%s166 + $0x30] sm:$0xff]
      %v182 = vld [vmem:[%s166 + $0x38] sm:$0xff]
      %v183 = vld [vmem:[%s166 + $0x40] sm:$0xff]
      %v184 = vld [vmem:[%s166 + $0x48] sm:$0xff]
      %v185 = vld [vmem:[%s166 + $0x50] sm:$0xff]
      %v186 = vld [vmem:[%s166 + $0x58] sm:$0xff]
      %v187 = vld [vmem:[%s166 + $0x60] sm:$0xff]
      %v188 = vld [vmem:[%s166 + $0x68] sm:$0xff]
      %v189 = vld [vmem:[%s166 + $0x70] sm:$0xff]
      %v190 = vld [vmem:[%s166 + $0x78] sm:$0xff]
      %v191 = vpack.c.bf16 %v176, %v175
      %v192 = vpack.c.bf16 %v178, %v177
      %v193 = vpack.c.bf16 %v180, %v179
      %v194 = vpack.c.bf16 %v182, %v181
      %v195 = vpack.c.bf16 %v184, %v183
      %v196 = vpack.c.bf16 %v186, %v185
      %v197 = vpack.c.bf16 %v188, %v187
      %v198 = vpack.c.bf16 %v190, %v189
      %v199 = vld [vmem:[%s1] sm:$0xf]
      %v200 = vpack.c.bf16 %v199, %v199
      %v201 = vld [vmem:[%s2] sm:$0x1]
      %v203 = vperm.slane %v201, 0
      %vm205 = vcmask 31744
      %v207 = vsel %vm205, %v191, 0
      %v210 = vsel %vm205, %v192, 0
      %v213 = vsel %vm205, %v193, 0
      %v216 = vsel %vm205, %v194, 0
      %v219 = vsel %vm205, %v195, 0
      %v222 = vsel %vm205, %v196, 0
      %v225 = vsel %vm205, %v197, 0
      %v228 = vsel %vm205, %v198, 0
      %vm230 = vcmask 1041408
      %v232 = vsel %vm230, %v200, 0
      %234 = vmatpush.bf16.msra.mxu0 0
      %235 = vmatpush.bf16.msra.mxu0 0
      %236 = vmatpush.bf16.msra.mxu0 0
      %237 = vmatpush.bf16.msra.mxu0 0
      %238 = vmatpush.bf16.msra.mxu0 0
      %239 = vmatpush.bf16.msra.mxu0 0
      %240 = vmatpush.bf16.msra.mxu0 0
      %241 = vmatpush.bf16.msra.mxu0 %v232
      %242 = vmatmul.bf16.gmra.mxu0 %v207
      %v243 = vpop.f32.mrf.mxu0
      %v244 = vadd.f32 %v203, %v243
      %v245 = vpop.f32.mrf.mxu0
      %v246 = vadd.f32 %v203, %v245
      %247 = vmatmul.bf16.gmra.mxu0 %v210
      %v248 = vpop.f32.mrf.mxu0
      %v249 = vadd.f32 %v203, %v248
      %v250 = vpop.f32.mrf.mxu0
      %v251 = vadd.f32 %v203, %v250
      %252 = vmatmul.bf16.gmra.mxu0 %v213
      %v253 = vpop.f32.mrf.mxu0
      %v254 = vadd.f32 %v203, %v253
      %v255 = vpop.f32.mrf.mxu0
      %v256 = vadd.f32 %v203, %v255
      %257 = vmatmul.bf16.gmra.mxu0 %v216
      %v258 = vpop.f32.mrf.mxu0
      %v259 = vadd.f32 %v203, %v258
      %v260 = vpop.f32.mrf.mxu0
      %v261 = vadd.f32 %v203, %v260
      %262 = vmatmul.bf16.gmra.mxu0 %v219
      %v263 = vpop.f32.mrf.mxu0
      %v264 = vadd.f32 %v203, %v263
      %v265 = vpop.f32.mrf.mxu0
      %v266 = vadd.f32 %v203, %v265
      %267 = vmatmul.bf16.gmra.mxu0 %v222
      %v268 = vpop.f32.mrf.mxu0
      %v269 = vadd.f32 %v203, %v268
      %v270 = vpop.f32.mrf.mxu0
      %v271 = vadd.f32 %v203, %v270
      %272 = vmatmul.bf16.gmra.mxu0 %v225
      %v273 = vpop.f32.mrf.mxu0
      %v274 = vadd.f32 %v203, %v273
      %v275 = vpop.f32.mrf.mxu0
      %v276 = vadd.f32 %v203, %v275
      %277 = vmatmul.bf16.gmra.mxu0 %v228
      %v278 = vpop.f32.mrf.mxu0
      %v279 = vadd.f32 %v203, %v278
      %v280 = vpop.f32.mrf.mxu0
      %v281 = vadd.f32 %v203, %v280
      %282 = vdwg.mxu0
      %v283 = vxor.u32 %v244, 2147483648
      %v284 = vxor.u32 %v246, 2147483648
      %v285 = vxor.u32 %v249, 2147483648
      %v286 = vxor.u32 %v251, 2147483648
      %v287 = vxor.u32 %v254, 2147483648
      %v288 = vxor.u32 %v256, 2147483648
      %v289 = vxor.u32 %v259, 2147483648
      %v290 = vxor.u32 %v261, 2147483648
      %v291 = vxor.u32 %v264, 2147483648
      %v292 = vxor.u32 %v266, 2147483648
      %v293 = vxor.u32 %v269, 2147483648
      %v294 = vxor.u32 %v271, 2147483648
      %v295 = vxor.u32 %v274, 2147483648
      %v296 = vxor.u32 %v276, 2147483648
      %v297 = vxor.u32 %v279, 2147483648
      %v298 = vxor.u32 %v281, 2147483648
      %v299 = vmul.f32 %v283, 1.442695
      %v300 = vpow.pop %v299
      %v301 = vmul.f32 %v284, 1.442695
      %v302 = vpow.pop %v301
      %v303 = vmul.f32 %v285, 1.442695
      %v304 = vpow.pop %v303
      %v305 = vmul.f32 %v286, 1.442695
      %v306 = vpow.pop %v305
      %v307 = vmul.f32 %v287, 1.442695
      %v308 = vpow.pop %v307
      %v309 = vmul.f32 %v288, 1.442695
      %v310 = vpow.pop %v309
      %v311 = vmul.f32 %v289, 1.442695
      %v312 = vpow.pop %v311
      %v313 = vmul.f32 %v290, 1.442695
      %v314 = vpow.pop %v313
      %v315 = vmul.f32 %v291, 1.442695
      %v316 = vpow.pop %v315
      %v317 = vmul.f32 %v292, 1.442695
      %v318 = vpow.pop %v317
      %v319 = vmul.f32 %v293, 1.442695
      %v320 = vpow.pop %v319
      %v321 = vmul.f32 %v294, 1.442695
      %v322 = vpow.pop %v321
      %v323 = vmul.f32 %v295, 1.442695
      %v324 = vpow.pop %v323
      %v325 = vmul.f32 %v296, 1.442695
      %v326 = vpow.pop %v325
      %v327 = vmul.f32 %v297, 1.442695
      %v328 = vpow.pop %v327
      %v329 = vmul.f32 %v298, 1.442695
      %v330 = vpow.pop %v329
      %v331 = vadd.f32 %v300, 1.0
      %v332 = vadd.f32 %v302, 1.0
      %v333 = vadd.f32 %v304, 1.0
      %v334 = vadd.f32 %v306, 1.0
      %v335 = vadd.f32 %v308, 1.0
      %v336 = vadd.f32 %v310, 1.0
      %v337 = vadd.f32 %v312, 1.0
      %v338 = vadd.f32 %v314, 1.0
      %v339 = vadd.f32 %v316, 1.0
      %v340 = vadd.f32 %v318, 1.0
      %v341 = vadd.f32 %v320, 1.0
      %v342 = vadd.f32 %v322, 1.0
      %v343 = vadd.f32 %v324, 1.0
      %v344 = vadd.f32 %v326, 1.0
      %v345 = vadd.f32 %v328, 1.0
      %v346 = vadd.f32 %v330, 1.0
      %v347 = vrcp.pop %v331
      %v348 = vmul.f32 %v331, %v347
      %v349 = vsub.f32 1.0, %v348
      %v350 = vmul.f32 %v347, %v349
      %v351 = vadd.f32 %v347, %v350
      %vm352 = vweird.f32 %v331
      %vm353 = vweird.f32 %v347
      %vm354 = vmor %vm352, %vm353
      %v355 = vsel %vm354, %v347, %v351
      %v356 = vand.u32 2147483647, %v331
      %vm357 = vcmp.eq.f32.partialorder %v356, 8.507059e+37
      %v358 = vand.u32 %v331, 2147483648
      %v359 = vor.u32 1.1754944e-38, %v358
      %v360 = vsel %vm357, %v359, %v355
      %v361 = vmul.f32 1.0, %v360
      %v362 = vrcp.pop %v332
      %v363 = vmul.f32 %v332, %v362
      %v364 = vsub.f32 1.0, %v363
      %v365 = vmul.f32 %v362, %v364
      %v366 = vadd.f32 %v362, %v365
      %vm367 = vweird.f32 %v332
      %vm368 = vweird.f32 %v362
      %vm369 = vmor %vm367, %vm368
      %v370 = vsel %vm369, %v362, %v366
      %v371 = vand.u32 2147483647, %v332
      %vm372 = vcmp.eq.f32.partialorder %v371, 8.507059e+37
      %v373 = vand.u32 %v332, 2147483648
      %v374 = vor.u32 1.1754944e-38, %v373
      %v375 = vsel %vm372, %v374, %v370
      %v376 = vmul.f32 1.0, %v375
      %v377 = vrcp.pop %v333
      %v378 = vmul.f32 %v333, %v377
      %v379 = vsub.f32 1.0, %v378
      %v380 = vmul.f32 %v377, %v379
      %v381 = vadd.f32 %v377, %v380
      %vm382 = vweird.f32 %v333
      %vm383 = vweird.f32 %v377
      %vm384 = vmor %vm382, %vm383
      %v385 = vsel %vm384, %v377, %v381
      %v386 = vand.u32 2147483647, %v333
      %vm387 = vcmp.eq.f32.partialorder %v386, 8.507059e+37
      %v388 = vand.u32 %v333, 2147483648
      %v389 = vor.u32 1.1754944e-38, %v388
      %v390 = vsel %vm387, %v389, %v385
      %v391 = vmul.f32 1.0, %v390
      %v392 = vrcp.pop %v334
      %v393 = vmul.f32 %v334, %v392
      %v394 = vsub.f32 1.0, %v393
      %v395 = vmul.f32 %v392, %v394
      %v396 = vadd.f32 %v392, %v395
      %vm397 = vweird.f32 %v334
      %vm398 = vweird.f32 %v392
      %vm399 = vmor %vm397, %vm398
      %v400 = vsel %vm399, %v392, %v396
      %v401 = vand.u32 2147483647, %v334
      %vm402 = vcmp.eq.f32.partialorder %v401, 8.507059e+37
      %v403 = vand.u32 %v334, 2147483648
      %v404 = vor.u32 1.1754944e-38, %v403
      %v405 = vsel %vm402, %v404, %v400
      %v406 = vmul.f32 1.0, %v405
      %v407 = vrcp.pop %v335
      %v408 = vmul.f32 %v335, %v407
      %v409 = vsub.f32 1.0, %v408
      %v410 = vmul.f32 %v407, %v409
      %v411 = vadd.f32 %v407, %v410
      %vm412 = vweird.f32 %v335
      %vm413 = vweird.f32 %v407
      %vm414 = vmor %vm412, %vm413
      %v415 = vsel %vm414, %v407, %v411
      %v416 = vand.u32 2147483647, %v335
      %vm417 = vcmp.eq.f32.partialorder %v416, 8.507059e+37
      %v418 = vand.u32 %v335, 2147483648
      %v419 = vor.u32 1.1754944e-38, %v418
      %v420 = vsel %vm417, %v419, %v415
      %v421 = vmul.f32 1.0, %v420
      %v422 = vrcp.pop %v336
      %v423 = vmul.f32 %v336, %v422
      %v424 = vsub.f32 1.0, %v423
      %v425 = vmul.f32 %v422, %v424
      %v426 = vadd.f32 %v422, %v425
      %vm427 = vweird.f32 %v336
      %vm428 = vweird.f32 %v422
      %vm429 = vmor %vm427, %vm428
      %v430 = vsel %vm429, %v422, %v426
      %v431 = vand.u32 2147483647, %v336
      %vm432 = vcmp.eq.f32.partialorder %v431, 8.507059e+37
      %v433 = vand.u32 %v336, 2147483648
      %v434 = vor.u32 1.1754944e-38, %v433
      %v435 = vsel %vm432, %v434, %v430
      %v436 = vmul.f32 1.0, %v435
      %v437 = vrcp.pop %v337
      %v438 = vmul.f32 %v337, %v437
      %v439 = vsub.f32 1.0, %v438
      %v440 = vmul.f32 %v437, %v439
      %v441 = vadd.f32 %v437, %v440
      %vm442 = vweird.f32 %v337
      %vm443 = vweird.f32 %v437
      %vm444 = vmor %vm442, %vm443
      %v445 = vsel %vm444, %v437, %v441
      %v446 = vand.u32 2147483647, %v337
      %vm447 = vcmp.eq.f32.partialorder %v446, 8.507059e+37
      %v448 = vand.u32 %v337, 2147483648
      %v449 = vor.u32 1.1754944e-38, %v448
      %v450 = vsel %vm447, %v449, %v445
      %v451 = vmul.f32 1.0, %v450
      %v452 = vrcp.pop %v338
      %v453 = vmul.f32 %v338, %v452
      %v454 = vsub.f32 1.0, %v453
      %v455 = vmul.f32 %v452, %v454
      %v456 = vadd.f32 %v452, %v455
      %vm457 = vweird.f32 %v338
      %vm458 = vweird.f32 %v452
      %vm459 = vmor %vm457, %vm458
      %v460 = vsel %vm459, %v452, %v456
      %v461 = vand.u32 2147483647, %v338
      %vm462 = vcmp.eq.f32.partialorder %v461, 8.507059e+37
      %v463 = vand.u32 %v338, 2147483648
      %v464 = vor.u32 1.1754944e-38, %v463
      %v465 = vsel %vm462, %v464, %v460
      %v466 = vmul.f32 1.0, %v465
      %v467 = vrcp.pop %v339
      %v468 = vmul.f32 %v339, %v467
      %v469 = vsub.f32 1.0, %v468
      %v470 = vmul.f32 %v467, %v469
      %v471 = vadd.f32 %v467, %v470
      %vm472 = vweird.f32 %v339
      %vm473 = vweird.f32 %v467
      %vm474 = vmor %vm472, %vm473
      %v475 = vsel %vm474, %v467, %v471
      %v476 = vand.u32 2147483647, %v339
      %vm477 = vcmp.eq.f32.partialorder %v476, 8.507059e+37
      %v478 = vand.u32 %v339, 2147483648
      %v479 = vor.u32 1.1754944e-38, %v478
      %v480 = vsel %vm477, %v479, %v475
      %v481 = vmul.f32 1.0, %v480
      %v482 = vrcp.pop %v340
      %v483 = vmul.f32 %v340, %v482
      %v484 = vsub.f32 1.0, %v483
      %v485 = vmul.f32 %v482, %v484
      %v486 = vadd.f32 %v482, %v485
      %vm487 = vweird.f32 %v340
      %vm488 = vweird.f32 %v482
      %vm489 = vmor %vm487, %vm488
      %v490 = vsel %vm489, %v482, %v486
      %v491 = vand.u32 2147483647, %v340
      %vm492 = vcmp.eq.f32.partialorder %v491, 8.507059e+37
      %v493 = vand.u32 %v340, 2147483648
      %v494 = vor.u32 1.1754944e-38, %v493
      %v495 = vsel %vm492, %v494, %v490
      %v496 = vmul.f32 1.0, %v495
      %v497 = vrcp.pop %v341
      %v498 = vmul.f32 %v341, %v497
      %v499 = vsub.f32 1.0, %v498
      %v500 = vmul.f32 %v497, %v499
      %v501 = vadd.f32 %v497, %v500
      %vm502 = vweird.f32 %v341
      %vm503 = vweird.f32 %v497
      %vm504 = vmor %vm502, %vm503
      %v505 = vsel %vm504, %v497, %v501
      %v506 = vand.u32 2147483647, %v341
      %vm507 = vcmp.eq.f32.partialorder %v506, 8.507059e+37
      %v508 = vand.u32 %v341, 2147483648
      %v509 = vor.u32 1.1754944e-38, %v508
      %v510 = vsel %vm507, %v509, %v505
      %v511 = vmul.f32 1.0, %v510
      %v512 = vrcp.pop %v342
      %v513 = vmul.f32 %v342, %v512
      %v514 = vsub.f32 1.0, %v513
      %v515 = vmul.f32 %v512, %v514
      %v516 = vadd.f32 %v512, %v515
      %vm517 = vweird.f32 %v342
      %vm518 = vweird.f32 %v512
      %vm519 = vmor %vm517, %vm518
      %v520 = vsel %vm519, %v512, %v516
      %v521 = vand.u32 2147483647, %v342
      %vm522 = vcmp.eq.f32.partialorder %v521, 8.507059e+37
      %v523 = vand.u32 %v342, 2147483648
      %v524 = vor.u32 1.1754944e-38, %v523
      %v525 = vsel %vm522, %v524, %v520
      %v526 = vmul.f32 1.0, %v525
      %v527 = vrcp.pop %v343
      %v528 = vmul.f32 %v343, %v527
      %v529 = vsub.f32 1.0, %v528
      %v530 = vmul.f32 %v527, %v529
      %v531 = vadd.f32 %v527, %v530
      %vm532 = vweird.f32 %v343
      %vm533 = vweird.f32 %v527
      %vm534 = vmor %vm532, %vm533
      %v535 = vsel %vm534, %v527, %v531
      %v536 = vand.u32 2147483647, %v343
      %vm537 = vcmp.eq.f32.partialorder %v536, 8.507059e+37
      %v538 = vand.u32 %v343, 2147483648
      %v539 = vor.u32 1.1754944e-38, %v538
      %v540 = vsel %vm537, %v539, %v535
      %v541 = vmul.f32 1.0, %v540
      %v542 = vrcp.pop %v344
      %v543 = vmul.f32 %v344, %v542
      %v544 = vsub.f32 1.0, %v543
      %v545 = vmul.f32 %v542, %v544
      %v546 = vadd.f32 %v542, %v545
      %vm547 = vweird.f32 %v344
      %vm548 = vweird.f32 %v542
      %vm549 = vmor %vm547, %vm548
      %v550 = vsel %vm549, %v542, %v546
      %v551 = vand.u32 2147483647, %v344
      %vm552 = vcmp.eq.f32.partialorder %v551, 8.507059e+37
      %v553 = vand.u32 %v344, 2147483648
      %v554 = vor.u32 1.1754944e-38, %v553
      %v555 = vsel %vm552, %v554, %v550
      %v556 = vmul.f32 1.0, %v555
      %v557 = vrcp.pop %v345
      %v558 = vmul.f32 %v345, %v557
      %v559 = vsub.f32 1.0, %v558
      %v560 = vmul.f32 %v557, %v559
      %v561 = vadd.f32 %v557, %v560
      %vm562 = vweird.f32 %v345
      %vm563 = vweird.f32 %v557
      %vm564 = vmor %vm562, %vm563
      %v565 = vsel %vm564, %v557, %v561
      %v566 = vand.u32 2147483647, %v345
      %vm567 = vcmp.eq.f32.partialorder %v566, 8.507059e+37
      %v568 = vand.u32 %v345, 2147483648
      %v569 = vor.u32 1.1754944e-38, %v568
      %v570 = vsel %vm567, %v569, %v565
      %v571 = vmul.f32 1.0, %v570
      %v572 = vrcp.pop %v346
      %v573 = vmul.f32 %v346, %v572
      %v574 = vsub.f32 1.0, %v573
      %v575 = vmul.f32 %v572, %v574
      %v576 = vadd.f32 %v572, %v575
      %vm577 = vweird.f32 %v346
      %vm578 = vweird.f32 %v572
      %vm579 = vmor %vm577, %vm578
      %v580 = vsel %vm579, %v572, %v576
      %v581 = vand.u32 2147483647, %v346
      %vm582 = vcmp.eq.f32.partialorder %v581, 8.507059e+37
      %v583 = vand.u32 %v346, 2147483648
      %v584 = vor.u32 1.1754944e-38, %v583
      %v585 = vsel %vm582, %v584, %v580
      %v586 = vmul.f32 1.0, %v585
      %v587 = vmul.f32 %v244, %v361
      %v588 = vmul.f32 %v246, %v376
      %v589 = vmul.f32 %v249, %v391
      %v590 = vmul.f32 %v251, %v406
      %v591 = vmul.f32 %v254, %v421
      %v592 = vmul.f32 %v256, %v436
      %v593 = vmul.f32 %v259, %v451
      %v594 = vmul.f32 %v261, %v466
      %v595 = vmul.f32 %v264, %v481
      %v596 = vmul.f32 %v266, %v496
      %v597 = vmul.f32 %v269, %v511
      %v598 = vmul.f32 %v271, %v526
      %v599 = vmul.f32 %v274, %v541
      %v600 = vmul.f32 %v276, %v556
      %v601 = vmul.f32 %v279, %v571
      %v602 = vmul.f32 %v281, %v586
      %603 = vst.msk [vmem:[%s172] sm:$0xff] %vm205, %v587
      %604 = vst.msk [vmem:[%s172 + $0x8] sm:$0xff] %vm205, %v588
      %605 = vst.msk [vmem:[%s172 + $0x10] sm:$0xff] %vm205, %v589
      %606 = vst.msk [vmem:[%s172 + $0x18] sm:$0xff] %vm205, %v590
      %607 = vst.msk [vmem:[%s172 + $0x20] sm:$0xff] %vm205, %v591
      %608 = vst.msk [vmem:[%s172 + $0x28] sm:$0xff] %vm205, %v592
      %609 = vst.msk [vmem:[%s172 + $0x30] sm:$0xff] %vm205, %v593
      %610 = vst.msk [vmem:[%s172 + $0x38] sm:$0xff] %vm205, %v594
      %611 = vst.msk [vmem:[%s172 + $0x40] sm:$0xff] %vm205, %v595
      %612 = vst.msk [vmem:[%s172 + $0x48] sm:$0xff] %vm205, %v596
      %613 = vst.msk [vmem:[%s172 + $0x50] sm:$0xff] %vm205, %v597
      %614 = vst.msk [vmem:[%s172 + $0x58] sm:$0xff] %vm205, %v598
      %615 = vst.msk [vmem:[%s172 + $0x60] sm:$0xff] %vm205, %v599
      %616 = vst.msk [vmem:[%s172 + $0x68] sm:$0xff] %vm205, %v600
      %617 = vst.msk [vmem:[%s172 + $0x70] sm:$0xff] %vm205, %v601
      %618 = vst.msk [vmem:[%s172 + $0x78] sm:$0xff] %vm205, %v602
      %s619 = smul.u32 16, %s14
      %p620 = scmp.lt.s32.totalorder %s619, 63
      %s621 = scalar_select %p620, %s619, 63
      %s622 = smul.addr %s621, 8
      %s623 = scalar_lea.vmem %s3, %s622
      // Predicated region
      $region33: #{gsconv_forward.2} parent=31 // pred_check
        %p624 = pneg %p100
      $region34: #{gsconv_forward.2} parent=31 // pred_check_branch
        %626 = sbr.rel (%p624) target = $region36
      $region35: #{gsconv_forward.2} parent=31 // pred_region
        %s627 = smul.u32 16, %s14
      $region36: #{gsconv_forward.2} parent=31 // pred_fallthru
        _
    $region32: #{gsconv_forward.2} parent=5 // pred_fallthru
      _
    %p628 = scmp.le.s32.totalorder 2, %s9
    // Predicated region
    $region37: #{gsconv_forward.2} parent=5 // pred_check
      %p629 = pneg %p628
    $region38: #{gsconv_forward.2} parent=5 // pred_check_branch
      %631 = sbr.rel (%p629) target = $region40
    $region39: #{gsconv_forward.2} parent=5 // pred_region
      %s632 = ssub.s32 %s9, 2
      // Predicated region
      $region41: #{gsconv_forward.2} parent=39 // pred_check
        %p633 = pneg %p106
      $region42: #{gsconv_forward.2} parent=39 // pred_check_branch
        %635 = sbr.rel (%p633) target = $region44
      $region43: #{gsconv_forward.2} parent=39 // pred_region
        %s636 = smul.u32 16, %s15
        %p637 = scmp.lt.s32.totalorder %s636, 63
        %s638 = scalar_select %p637, %s636, 63
        %s639 = smul.addr %s638, 8
        %s640 = scalar_lea.vmem %s3, %s639
      $region44: #{gsconv_forward.2} parent=39 // pred_fallthru
        _
    $region40: #{gsconv_forward.2} parent=5 // pred_fallthru
      _
  $region6: #{gsconv_forward.2} parent=0 // loop_footer
    %s13 = sadd.s32 1, %s9
  $region7: #{gsconv_forward.2} parent=0 // loop_footer_branch
    %8 = sbr.rel target = $region3
  $region8: #{gsconv_forward.2} parent=0 // loop_exit
    _

// kernel: gsconv_forward.3
$region0: #{gsconv_forward.3}
  #allocation0 [shape = 'u32[]', space=smem, size = 0x4, offset = 0x4, fixed_abs, tag = 'smem constant byte address 0x4 - core index']
  #allocation1 [shape = 'u32[72,128]{1,0:T(1,128)}', space=vmem, size = 0x9000, scoped, tag = 'internal scratch']
  %s0 = inlined_call_operand.vmem [shape: f32[2,16,16,4], index: 0, kind: input, shape index: {}]
  %s1 = inlined_call_operand.vmem [shape: f32[25,4], index: 1, kind: input, shape index: {}]
  %s2 = inlined_call_operand.vmem [shape: f32[1,4], index: 2, kind: input, shape index: {}]
  %s3 = inlined_call_operand.vmem [shape: f32[2,2,16,16,4], index: 3, kind: output, shape index: {}]
  %s4 = sld [smem:[#allocation0]]
  $region45: #{gsconv_forward.3} parent=0
    _
  %s6 = ssub.s32 1, %s4
  %s7 = scalar_select 0, %s6, %s4
  loop: start=0, step=1, limit=4
  $region2: #{gsconv_forward.3} parent=0 // loop_pre_header
    _
  $region3: #{gsconv_forward.3} parent=0 // loop_header
    %s9 = sphi 0, %s13
    %p10 = scmp.ge.s32.totalorder %s9, 4
    %s16 = sphi 0, %s28
    %s17 = sphi 0, %s24
    %s18 = sphi 0, %s16
    %s19 = sphi 0, %s17
    %s20 = sphi 0, %s18
    %s21 = sphi 0, %s19
    %s33 = sphi 0, %s35
    %s36 = sphi 0, %s33
    %s37 = sphi 0, %s36
    %s53 = sphi 0, %s37
    %s59 = sphi 0, %s61
    %s62 = sphi 0, %s59
    %s63 = sphi 0, %s62
    %s79 = sphi 0, %s63
    %s85 = sphi 0, %s87
    %s88 = sphi 0, %s85
    %s89 = sphi 0, %s88
    %s105 = sphi 0, %s89
    %s113 = sphi 0, %s115
    %s116 = sphi 0, %s113
    %s117 = sphi 0, %s116
    %s133 = sphi 0, %s117
  $region4: #{gsconv_forward.3} parent=0 // loop_header_branch
    %12 = sbr.rel (%p10) target = $region8
  $region5: #{gsconv_forward.3} parent=0 // loop_body
    %s14 = ssub.s32 %s9, 1
    %s15 = ssub.s32 %s9, 2
    %s22 = sadd.s32 1, %s17
    %p23 = scmp.ge.s32.totalorder %s22, 1
    %s24 = scalar_select %p23, 0, %s22
    %s25 = sadd.s32 1, %s16
    %s26 = scalar_select %p23, %s25, %s16
    %p27 = scmp.ge.s32.totalorder %s26, 2
    %s28 = scalar_select %p27, 0, %s26
    %s29 = ssub.s32 %s16, %s28
    %s30 = ssub.s32 %s17, %s24
    %s31 = sor.u32 %s29, %s30
    %p32 = scmp.eq.s32.totalorder %s31, 0
    %s34 = sadd.s32 %s33, 1
    %s35 = scalar_select %p32, %s33, %s34
    %p38 = pneg %p32
    %p39 = scmp.eq.s32.totalorder %s9, 1
    %p40 = por %p38, %p39
    %p41 = scmp.ne.s32.totalorder %s33, %s36
    %p42 = scmp.eq.s32.totalorder %s9, 0
    %p43 = por %p41, %p42
    %p44 = scmp.ne.s32.totalorder %s33, %s36
    %p45 = scmp.eq.s32.totalorder %s14, 1
    %p46 = por %p44, %p45
    %p47 = scmp.ne.s32.totalorder %s36, %s37
    %p48 = scmp.eq.s32.totalorder %s14, 0
    %p49 = por %p47, %p48
    %p50 = scmp.ne.s32.totalorder %s36, %s37
    %p51 = scmp.eq.s32.totalorder %s15, 1
    %p52 = por %p50, %p51
    %p54 = scmp.ne.s32.totalorder %s37, %s53
    %p55 = scmp.eq.s32.totalorder %s15, 0
    %p56 = por %p54, %p55
    %s57 = ssub.s32 %s17, %s24
    %p58 = scmp.eq.s32.totalorder %s57, 0
    %s60 = sadd.s32 %s59, 1
    %s61 = scalar_select %p58, %s59, %s60
    %p64 = pneg %p58
    %p65 = scmp.eq.s32.totalorder %s9, 1
    %p66 = por %p64, %p65
    %p67 = scmp.ne.s32.totalorder %s59, %s62
    %p68 = scmp.eq.s32.totalorder %s9, 0
    %p69 = por %p67, %p68
    %p70 = scmp.ne.s32.totalorder %s59, %s62
    %p71 = scmp.eq.s32.totalorder %s14, 1
    %p72 = por %p70, %p71
    %p73 = scmp.ne.s32.totalorder %s62, %s63
    %p74 = scmp.eq.s32.totalorder %s14, 0
    %p75 = por %p73, %p74
    %p76 = scmp.ne.s32.totalorder %s62, %s63
    %p77 = scmp.eq.s32.totalorder %s15, 1
    %p78 = por %p76, %p77
    %p80 = scmp.ne.s32.totalorder %s63, %s79
    %p81 = scmp.eq.s32.totalorder %s15, 0
    %p82 = por %p80, %p81
    %s83 = ssub.s32 %s17, %s24
    %p84 = scmp.eq.s32.totalorder %s83, 0
    %s86 = sadd.s32 %s85, 1
    %s87 = scalar_select %p84, %s85, %s86
    %p90 = pneg %p84
    %p91 = scmp.eq.s32.totalorder %s9, 1
    %p92 = por %p90, %p91
    %p93 = scmp.ne.s32.totalorder %s85, %s88
    %p94 = scmp.eq.s32.totalorder %s9, 0
    %p95 = por %p93, %p94
    %p96 = scmp.ne.s32.totalorder %s85, %s88
    %p97 = scmp.eq.s32.totalorder %s14, 1
    %p98 = por %p96, %p97
    %p99 = scmp.ne.s32.totalorder %s88, %s89
    %p100 = scmp.eq.s32.totalorder %s14, 0
    %p101 = por %p99, %p100
    %p102 = scmp.ne.s32.totalorder %s88, %s89
    %p103 = scmp.eq.s32.totalorder %s15, 1
    %p104 = por %p102, %p103
    %p106 = scmp.ne.s32.totalorder %s89, %s105
    %p107 = scmp.eq.s32.totalorder %s15, 0
    %p108 = por %p106, %p107
    %s109 = ssub.s32 %s16, %s28
    %s110 = ssub.s32 %s17, %s24
    %s111 = sor.u32 %s109, %s110
    %p112 = scmp.eq.s32.totalorder %s111, 0
    %s114 = sadd.s32 %s113, 1
    %s115 = scalar_select %p112, %s113, %s114
    %p118 = pneg %p112
    %p119 = scmp.eq.s32.totalorder %s9, 1
    %p120 = por %p118, %p119
    %p121 = scmp.ne.s32.totalorder %s113, %s116
    %p122 = scmp.eq.s32.totalorder %s9, 0
    %p123 = por %p121, %p122
    %p124 = scmp.ne.s32.totalorder %s113, %s116
    %p125 = scmp.eq.s32.totalorder %s14, 1
    %p126 = por %p124, %p125
    %p127 = scmp.ne.s32.totalorder %s116, %s117
    %p128 = scmp.eq.s32.totalorder %s14, 0
    %p129 = por %p127, %p128
    %p130 = scmp.ne.s32.totalorder %s116, %s117
    %p131 = scmp.eq.s32.totalorder %s15, 1
    %p132 = por %p130, %p131
    %p134 = scmp.ne.s32.totalorder %s117, %s133
    %p135 = scmp.eq.s32.totalorder %s15, 0
    %p136 = por %p134, %p135
    %p137 = scmp.le.s32.totalorder 1, %s9
    %p138 = scmp.lt.s32.totalorder %s9, 3
    %p139 = pnand %p137, %p138
    %p140 = pneg %p139
    // Predicated region
    $region9: #{gsconv_forward.3} parent=5 // pred_check
      _
    $region10: #{gsconv_forward.3} parent=5 // pred_check_branch
      %142 = sbr.rel (%p139) target = $region12
    $region11: #{gsconv_forward.3} parent=5 // pred_region
      %s143 = ssub.s32 %s9, 1
      // Predicated region
      $region13: #{gsconv_forward.3} parent=11 // pred_check
        %p144 = pneg %p75
      $region14: #{gsconv_forward.3} parent=11 // pred_check_branch
        %146 = sbr.rel (%p144) target = $region16
      $region15: #{gsconv_forward.3} parent=11 // pred_region
        %p147 = scmp.lt.s32.totalorder %s19, 0
        %s148 = scalar_select %p147, %s19, 0
        %s149 = smul.addr %s148, 8
        %s150 = scalar_lea.vmem %s1, %s149
      $region16: #{gsconv_forward.3} parent=11 // pred_fallthru
        _
      // Predicated region
      $region17: #{gsconv_forward.3} parent=11 // pred_check
        %p151 = pneg %p101
      $region18: #{gsconv_forward.3} parent=11 // pred_check_branch
        %153 = sbr.rel (%p151) target = $region20
      $region19: #{gsconv_forward.3} parent=11 // pred_region
        %p154 = scmp.lt.s32.totalorder %s19, 0
        %s155 = scalar_select %p154, %s19, 0
        %s156 = scalar_lea.vmem %s2, %s155
      $region20: #{gsconv_forward.3} parent=11 // pred_fallthru
        _
    $region12: #{gsconv_forward.3} parent=5 // pred_fallthru
      _
    %p157 = scmp.lt.s32.totalorder %s9, 2
    // Predicated region
    $region21: #{gsconv_forward.3} parent=5 // pred_check
      %p158 = pneg %p157
    $region22: #{gsconv_forward.3} parent=5 // pred_check_branch
      %160 = sbr.rel (%p158) target = $region24
    $region23: #{gsconv_forward.3} parent=5 // pred_region
      // Predicated region
      $region25: #{gsconv_forward.3} parent=23 // pred_check
        %p161 = pneg %p43
      $region26: #{gsconv_forward.3} parent=23 // pred_check_branch
        %163 = sbr.rel (%p161) target = $region28
      $region27: #{gsconv_forward.3} parent=23 // pred_region
        %p164 = scmp.lt.s32.totalorder %s16, 1
        %s165 = scalar_select %p164, %s16, 1
        %p166 = scmp.lt.s32.totalorder %s17, 0
        %s167 = scalar_select %p166, %s17, 0
        %s168 = smul.addr %s165, 32
        %s169 = sadd.s32 %s167, %s168
        %s170 = smul.addr %s169, 8
        %s171 = scalar_lea.vmem %s0, %s170
      $region28: #{gsconv_forward.3} parent=23 // pred_fallthru
        _
    $region24: #{gsconv_forward.3} parent=5 // pred_fallthru
      _
    %p172 = scmp.le.s32.totalorder 1, %s9
    %p173 = scmp.lt.s32.totalorder %s9, 3
    %p174 = pnand %p172, %p173
    %p175 = pneg %p174
    // Predicated region
    $region29: #{gsconv_forward.3} parent=5 // pred_check
      _
    $region30: #{gsconv_forward.3} parent=5 // pred_check_branch
      %177 = sbr.rel (%p174) target = $region32
    $region31: #{gsconv_forward.3} parent=5 // pred_region
      %s178 = ssub.s32 %s9, 1
      %p179 = scmp.lt.s32.totalorder %s18, 1
      %s180 = scalar_select %p179, %s18, 1
      %p181 = scmp.lt.s32.totalorder %s19, 0
      %s182 = scalar_select %p181, %s19, 0
      %s183 = smul.addr %s180, 32
      %s184 = sadd.s32 %s182, %s183
      %s185 = smul.addr %s184, 8
      %s186 = scalar_lea.vmem %s0, %s185
      %p187 = pneg %p49
      %p188 = pneg %p46
      %p189 = scmp.lt.s32.totalorder %s19, 0
      %s190 = scalar_select %p189, %s19, 0
      %s191 = smul.addr %s190, 8
      %s192 = scalar_lea.vmem %s1, %s191
      %p193 = pneg %p75
      %p194 = pneg %p72
      %p195 = scmp.lt.s32.totalorder %s19, 0
      %s196 = scalar_select %p195, %s19, 0
      %s197 = scalar_lea.vmem %s2, %s196
      %p198 = pneg %p101
      %p199 = pneg %p98
      %p200 = pneg %p129
      %p201 = pneg %p126
      %p202 = scmp.lt.s32.totalorder %s18, 1
      %s203 = scalar_select %p202, %s18, 1
      %p204 = scmp.lt.s32.totalorder %s19, 0
      %s205 = scalar_select %p204, %s19, 0
      %s206 = smul.addr %s203, 64
      %s207 = sadd.s32 %s205, %s206
      %s208 = smul.addr %s207, 8
      %s209 = scalar_lea.vmem %s3, %s208
      %p210 = scmp.lt.s32.totalorder %s18, 1
      %s211 = scalar_select %p210, %s18, 1
      %p212 = scmp.lt.s32.totalorder %s19, 0
      %s213 = scalar_select %p212, %s19, 0
      %s214 = smul.addr %s211, 32
      %s215 = sadd.s32 %s213, %s214
      %s216 = smul.addr %s215, 8
      %s217 = scalar_lea.vmem %s0, %s216
      %p218 = scmp.lt.s32.totalorder %s19, 0
      %s219 = scalar_select %p218, %s19, 0
      %s220 = smul.addr %s219, 8
      %s221 = scalar_lea.vmem %s1, %s220
      %p222 = scmp.lt.s32.totalorder %s19, 0
      %s223 = scalar_select %p222, %s19, 0
      %s224 = scalar_lea.vmem %s2, %s223
      %p225 = scmp.lt.s32.totalorder %s18, 1
      %s226 = scalar_select %p225, %s18, 1
      %p227 = scmp.lt.s32.totalorder %s19, 0
      %s228 = scalar_select %p227, %s19, 0
      %s229 = smul.addr %s226, 64
      %s230 = sadd.s32 %s228, %s229
      %s231 = smul.addr %s230, 8
      %s232 = scalar_lea.vmem %s3, %s231
      %v233 = vld [vmem:[%s217] sm:$0xff]
      %v234 = vld [vmem:[%s217 + $0x8] sm:$0xff]
      %v235 = vld [vmem:[%s217 + $0x10] sm:$0xff]
      %v236 = vld [vmem:[%s217 + $0x18] sm:$0xff]
      %v237 = vld [vmem:[%s217 + $0x20] sm:$0xff]
      %v238 = vld [vmem:[%s217 + $0x28] sm:$0xff]
      %v239 = vld [vmem:[%s217 + $0x30] sm:$0xff]
      %v240 = vld [vmem:[%s217 + $0x38] sm:$0xff]
      %v241 = vld [vmem:[%s217 + $0x40] sm:$0xff]
      %v242 = vld [vmem:[%s217 + $0x48] sm:$0xff]
      %v243 = vld [vmem:[%s217 + $0x50] sm:$0xff]
      %v244 = vld [vmem:[%s217 + $0x58] sm:$0xff]
      %v245 = vld [vmem:[%s217 + $0x60] sm:$0xff]
      %v246 = vld [vmem:[%s217 + $0x68] sm:$0xff]
      %v247 = vld [vmem:[%s217 + $0x70] sm:$0xff]
      %v248 = vld [vmem:[%s217 + $0x78] sm:$0xff]
      %v249 = vld [vmem:[%s217 + $0x80] sm:$0xff]
      %v250 = vld [vmem:[%s217 + $0x88] sm:$0xff]
      %v251 = vld [vmem:[%s217 + $0x90] sm:$0xff]
      %v252 = vld [vmem:[%s217 + $0x98] sm:$0xff]
      %v253 = vld [vmem:[%s217 + $0xa0] sm:$0xff]
      %v254 = vld [vmem:[%s217 + $0xa8] sm:$0xff]
      %v255 = vld [vmem:[%s217 + $0xb0] sm:$0xff]
      %v256 = vld [vmem:[%s217 + $0xb8] sm:$0xff]
      %v257 = vld [vmem:[%s217 + $0xc0] sm:$0xff]
      %v258 = vld [vmem:[%s217 + $0xc8] sm:$0xff]
      %v259 = vld [vmem:[%s217 + $0xd0] sm:$0xff]
      %v260 = vld [vmem:[%s217 + $0xd8] sm:$0xff]
      %v261 = vld [vmem:[%s217 + $0xe0] sm:$0xff]
      %v262 = vld [vmem:[%s217 + $0xe8] sm:$0xff]
      %v263 = vld [vmem:[%s217 + $0xf0] sm:$0xff]
      %v264 = vld [vmem:[%s217 + $0xf8] sm:$0xff]
      %v265 = vld [vmem:[%s221] sm:$0xff]
      %v266 = vld [vmem:[%s221 + $0x8] sm:$0xff]
      %v267 = vld [vmem:[%s221 + $0x10] sm:$0xff]
      %v268 = vld [vmem:[%s221 + $0x18] sm:$0x1]
      %vm301 = vcmask 1041408
      %v302 = vrot.slane %v233, 6
      %v303 = vrot.slane %v234, 6
      %v304 = vsel %vm301, %v302, %v303
      %v305 = vrot.slane %v235, 6
      %v306 = vrot.slane %v236, 6
      %v307 = vsel %vm301, %v305, %v306
      %v308 = vrot.slane %v237, 6
      %v309 = vrot.slane %v238, 6
      %v310 = vsel %vm301, %v308, %v309
      %v311 = vrot.slane %v239, 6
      %v312 = vrot.slane %v240, 6
      %v313 = vsel %vm301, %v311, %v312
      %v314 = vrot.slane %v241, 6
      %v315 = vrot.slane %v242, 6
      %v316 = vsel %vm301, %v314, %v315
      %v317 = vrot.slane %v243, 6
      %v318 = vrot.slane %v244, 6
      %v319 = vsel %vm301, %v317, %v318
      %v320 = vrot.slane %v245, 6
      %v321 = vrot.slane %v246, 6
      %v322 = vsel %vm301, %v320, %v321
      %v323 = vrot.slane %v247, 6
      %v324 = vrot.slane %v248, 6
      %v325 = vsel %vm301, %v323, %v324
      %v326 = vrot.slane %v249, 6
      %v327 = vrot.slane %v250, 6
      %v328 = vsel %vm301, %v326, %v327
      %v329 = vrot.slane %v251, 6
      %v330 = vrot.slane %v252, 6
      %v331 = vsel %vm301, %v329, %v330
      %v332 = vrot.slane %v253, 6
      %v333 = vrot.slane %v254, 6
      %v334 = vsel %vm301, %v332, %v333
      %v335 = vrot.slane %v255, 6
      %v336 = vrot.slane %v256, 6
      %v337 = vsel %vm301, %v335, %v336
      %v338 = vrot.slane %v257, 6
      %v339 = vrot.slane %v258, 6
      %v340 = vsel %vm301, %v338, %v339
      %v341 = vrot.slane %v259, 6
      %v342 = vrot.slane %v260, 6
      %v343 = vsel %vm301, %v341, %v342
      %v344 = vrot.slane %v261, 6
      %v345 = vrot.slane %v262, 6
      %v346 = vsel %vm301, %v344, %v345
      %v347 = vrot.slane %v263, 6
      %v348 = vrot.slane %v264, 6
      %v349 = vsel %vm301, %v347, %v348
      %v382 = vsel %vm301, 0.0, %v302
      %v383 = vsel %vm301, 0.0, %v305
      %v384 = vsel %vm301, 0.0, %v308
      %v385 = vsel %vm301, 0.0, %v311
      %v386 = vsel %vm301, 0.0, %v314
      %v387 = vsel %vm301, 0.0, %v317
      %v388 = vsel %vm301, 0.0, %v320
      %v389 = vsel %vm301, 0.0, %v323
      %v390 = vsel %vm301, 0.0, %v326
      %v391 = vsel %vm301, 0.0, %v329
      %v392 = vsel %vm301, 0.0, %v332
      %v393 = vsel %vm301, 0.0, %v335
      %v394 = vsel %vm301, 0.0, %v338
      %v395 = vsel %vm301, 0.0, %v341
      %v396 = vsel %vm301, 0.0, %v344
      %v397 = vsel %vm301, 0.0, %v347
      %vm398 = vcmask 1040384
      %v399 = vrot.slane %v233, 7
      %v400 = vrot.slane %v234, 7
      %v401 = vsel %vm398, %v399, %v400
      %v402 = vrot.slane %v235, 7
      %v403 = vrot.slane %v236, 7
      %v404 = vsel %vm398, %v402, %v403
      %v405 = vrot.slane %v237, 7
      %v406 = vrot.slane %v238, 7
      %v407 = vsel %vm398, %v405, %v406
      %v408 = vrot.slane %v239, 7
      %v409 = vrot.slane %v240, 7
      %v410 = vsel %vm398, %v408, %v409
      %v411 = vrot.slane %v241, 7
      %v412 = vrot.slane %v242, 7
      %v413 = vsel %vm398, %v411, %v412
      %v414 = vrot.slane %v243, 7
      %v415 = vrot.slane %v244, 7
      %v416 = vsel %vm398, %v414, %v415
      %v417 = vrot.slane %v245, 7
      %v418 = vrot.slane %v246, 7
      %v419 = vsel %vm398, %v417, %v418
      %v420 = vrot.slane %v247, 7
      %v421 = vrot.slane %v248, 7
      %v422 = vsel %vm398, %v420, %v421
      %v423 = vrot.slane %v249, 7
      %v424 = vrot.slane %v250, 7
      %v425 = vsel %vm398, %v423, %v424
      %v426 = vrot.slane %v251, 7
      %v427 = vrot.slane %v252, 7
      %v428 = vsel %vm398, %v426, %v427
      %v429 = vrot.slane %v253, 7
      %v430 = vrot.slane %v254, 7
      %v431 = vsel %vm398, %v429, %v430
      %v432 = vrot.slane %v255, 7
      %v433 = vrot.slane %v256, 7
      %v434 = vsel %vm398, %v432, %v433
      %v435 = vrot.slane %v257, 7
      %v436 = vrot.slane %v258, 7
      %v437 = vsel %vm398, %v435, %v436
      %v438 = vrot.slane %v259, 7
      %v439 = vrot.slane %v260, 7
      %v440 = vsel %vm398, %v438, %v439
      %v441 = vrot.slane %v261, 7
      %v442 = vrot.slane %v262, 7
      %v443 = vsel %vm398, %v441, %v442
      %v444 = vrot.slane %v263, 7
      %v445 = vrot.slane %v264, 7
      %v446 = vsel %vm398, %v444, %v445
      %v479 = vsel %vm398, 0.0, %v399
      %v480 = vsel %vm398, 0.0, %v402
      %v481 = vsel %vm398, 0.0, %v405
      %v482 = vsel %vm398, 0.0, %v408
      %v483 = vsel %vm398, 0.0, %v411
      %v484 = vsel %vm398, 0.0, %v414
      %v485 = vsel %vm398, 0.0, %v417
      %v486 = vsel %vm398, 0.0, %v420
      %v487 = vsel %vm398, 0.0, %v423
      %v488 = vsel %vm398, 0.0, %v426
      %v489 = vsel %vm398, 0.0, %v429
      %v490 = vsel %vm398, 0.0, %v432
      %v491 = vsel %vm398, 0.0, %v435
      %v492 = vsel %vm398, 0.0, %v438
      %v493 = vsel %vm398, 0.0, %v441
      %v494 = vsel %vm398, 0.0, %v444
      %vm495 = vcmask 1046528
      %v496 = vrot.slane %v233, 1
      %v497 = vrot.slane %v234, 1
      %v498 = vsel %vm495, %v496, %v497
      %v499 = vrot.slane %v235, 1
      %v500 = vrot.slane %v236, 1
      %v501 = vsel %vm495, %v499, %v500
      %v502 = vrot.slane %v237, 1
      %v503 = vrot.slane %v238, 1
      %v504 = vsel %vm495, %v502, %v503
      %v505 = vrot.slane %v239, 1
      %v506 = vrot.slane %v240, 1
      %v507 = vsel %vm495, %v505, %v506
      %v508 = vrot.slane %v241, 1
      %v509 = vrot.slane %v242, 1
      %v510 = vsel %vm495, %v508, %v509
      %v511 = vrot.slane %v243, 1
      %v512 = vrot.slane %v244, 1
      %v513 = vsel %vm495, %v511, %v512
      %v514 = vrot.slane %v245, 1
      %v515 = vrot.slane %v246, 1
      %v516 = vsel %vm495, %v514, %v515
      %v517 = vrot.slane %v247, 1
      %v518 = vrot.slane %v248, 1
      %v519 = vsel %vm495, %v517, %v518
      %v520 = vrot.slane %v249, 1
      %v521 = vrot.slane %v250, 1
      %v522 = vsel %vm495, %v520, %v521
      %v523 = vrot.slane %v251, 1
      %v524 = vrot.slane %v252, 1
      %v525 = vsel %vm495, %v523, %v524
      %v526 = vrot.slane %v253, 1
      %v527 = vrot.slane %v254, 1
      %v528 = vsel %vm495, %v526, %v527
      %v529 = vrot.slane %v255, 1
      %v530 = vrot.slane %v256, 1
      %v531 = vsel %vm495, %v529, %v530
      %v532 = vrot.slane %v257, 1
      %v533 = vrot.slane %v258, 1
      %v534 = vsel %vm495, %v532, %v533
      %v535 = vrot.slane %v259, 1
      %v536 = vrot.slane %v260, 1
      %v537 = vsel %vm495, %v535, %v536
      %v538 = vrot.slane %v261, 1
      %v539 = vrot.slane %v262, 1
      %v540 = vsel %vm495, %v538, %v539
      %v541 = vrot.slane %v263, 1
      %v542 = vrot.slane %v264, 1
      %v543 = vsel %vm495, %v541, %v542
      %v576 = vsel %vm495, %v497, 0.0
      %v577 = vsel %vm495, %v500, 0.0
      %v578 = vsel %vm495, %v503, 0.0
      %v579 = vsel %vm495, %v506, 0.0
      %v580 = vsel %vm495, %v509, 0.0
      %v581 = vsel %vm495, %v512, 0.0
      %v582 = vsel %vm495, %v515, 0.0
      %v583 = vsel %vm495, %v518, 0.0
      %v584 = vsel %vm495, %v521, 0.0
      %v585 = vsel %vm495, %v524, 0.0
      %v586 = vsel %vm495, %v527, 0.0
      %v587 = vsel %vm495, %v530, 0.0
      %v588 = vsel %vm495, %v533, 0.0
      %v589 = vsel %vm495, %v536, 0.0
      %v590 = vsel %vm495, %v539, 0.0
      %v591 = vsel %vm495, %v542, 0.0
      %vm592 = vcmask 1045504
      %v593 = vrot.slane %v233, 2
      %v594 = vrot.slane %v234, 2
      %v595 = vsel %vm592, %v593, %v594
      %v596 = vrot.slane %v235, 2
      %v597 = vrot.slane %v236, 2
      %v598 = vsel %vm592, %v596, %v597
      %v599 = vrot.slane %v237, 2
      %v600 = vrot.slane %v238, 2
      %v601 = vsel %vm592, %v599, %v600
      %v602 = vrot.slane %v239, 2
      %v603 = vrot.slane %v240, 2
      %v604 = vsel %vm592, %v602, %v603
      %v605 = vrot.slane %v241, 2
      %v606 = vrot.slane %v242, 2
      %v607 = vsel %vm592, %v605, %v606
      %v608 = vrot.slane %v243, 2
      %v609 = vrot.slane %v244, 2
      %v610 = vsel %vm592, %v608, %v609
      %v611 = vrot.slane %v245, 2
      %v612 = vrot.slane %v246, 2
      %v613 = vsel %vm592, %v611, %v612
      %v614 = vrot.slane %v247, 2
      %v615 = vrot.slane %v248, 2
      %v616 = vsel %vm592, %v614, %v615
      %v617 = vrot.slane %v249, 2
      %v618 = vrot.slane %v250, 2
      %v619 = vsel %vm592, %v617, %v618
      %v620 = vrot.slane %v251, 2
      %v621 = vrot.slane %v252, 2
      %v622 = vsel %vm592, %v620, %v621
      %v623 = vrot.slane %v253, 2
      %v624 = vrot.slane %v254, 2
      %v625 = vsel %vm592, %v623, %v624
      %v626 = vrot.slane %v255, 2
      %v627 = vrot.slane %v256, 2
      %v628 = vsel %vm592, %v626, %v627
      %v629 = vrot.slane %v257, 2
      %v630 = vrot.slane %v258, 2
      %v631 = vsel %vm592, %v629, %v630
      %v632 = vrot.slane %v259, 2
      %v633 = vrot.slane %v260, 2
      %v634 = vsel %vm592, %v632, %v633
      %v635 = vrot.slane %v261, 2
      %v636 = vrot.slane %v262, 2
      %v637 = vsel %vm592, %v635, %v636
      %v638 = vrot.slane %v263, 2
      %v639 = vrot.slane %v264, 2
      %v640 = vsel %vm592, %v638, %v639
      %v673 = vsel %vm592, %v594, 0.0
      %v674 = vsel %vm592, %v597, 0.0
      %v675 = vsel %vm592, %v600, 0.0
      %v676 = vsel %vm592, %v603, 0.0
      %v677 = vsel %vm592, %v606, 0.0
      %v678 = vsel %vm592, %v609, 0.0
      %v679 = vsel %vm592, %v612, 0.0
      %v680 = vsel %vm592, %v615, 0.0
      %v681 = vsel %vm592, %v618, 0.0
      %v682 = vsel %vm592, %v621, 0.0
      %v683 = vsel %vm592, %v624, 0.0
      %v684 = vsel %vm592, %v627, 0.0
      %v685 = vsel %vm592, %v630, 0.0
      %v686 = vsel %vm592, %v633, 0.0
      %v687 = vsel %vm592, %v636, 0.0
      %v688 = vsel %vm592, %v639, 0.0
      %v689 = vperm.slane %v265, 0
      %v690 = vmul.f32 %v382, %v689
      %v691 = vmul.f32 %v304, %v689
      %v692 = vmul.f32 %v383, %v689
      %v693 = vmul.f32 %v307, %v689
      %v694 = vmul.f32 %v384, %v689
      %v695 = vmul.f32 %v310, %v689
      %v696 = vmul.f32 %v385, %v689
      %v697 = vmul.f32 %v313, %v689
      %v698 = vmul.f32 %v386, %v689
      %v699 = vmul.f32 %v316, %v689
      %v700 = vmul.f32 %v387, %v689
      %v701 = vmul.f32 %v319, %v689
      %v702 = vmul.f32 %v388, %v689
      %v703 = vmul.f32 %v322, %v689
      %v704 = vmul.f32 %v389, %v689
      %v705 = vmul.f32 %v325, %v689
      %v706 = vmul.f32 %v390, %v689
      %v707 = vmul.f32 %v328, %v689
      %v708 = vmul.f32 %v391, %v689
      %v709 = vmul.f32 %v331, %v689
      %v710 = vmul.f32 %v392, %v689
      %v711 = vmul.f32 %v334, %v689
      %v712 = vmul.f32 %v393, %v689
      %v713 = vmul.f32 %v337, %v689
      %v714 = vmul.f32 %v394, %v689
      %v715 = vmul.f32 %v340, %v689
      %v716 = vmul.f32 %v395, %v689
      %v717 = vmul.f32 %v343, %v689
      %v718 = vadd.f32 %v690, 0.0
      %v719 = vadd.f32 %v691, 0.0
      %v720 = vadd.f32 %v692, 0.0
      %v721 = vadd.f32 %v693, 0.0
      %v722 = vadd.f32 %v694, 0.0
      %v723 = vadd.f32 %v695, 0.0
      %v724 = vadd.f32 %v696, 0.0
      %v725 = vadd.f32 %v697, 0.0
      %v726 = vadd.f32 %v698, 0.0
      %v727 = vadd.f32 %v699, 0.0
      %v728 = vadd.f32 %v700, 0.0
      %v729 = vadd.f32 %v701, 0.0
      %v730 = vadd.f32 %v702, 0.0
      %v731 = vadd.f32 %v703, 0.0
      %v732 = vadd.f32 %v704, 0.0
      %v733 = vadd.f32 %v705, 0.0
      %v734 = vadd.f32 %v706, 0.0
      %v735 = vadd.f32 %v707, 0.0
      %v736 = vadd.f32 %v708, 0.0
      %v737 = vadd.f32 %v709, 0.0
      %v738 = vadd.f32 %v710, 0.0
      %v739 = vadd.f32 %v711, 0.0
      %v740 = vadd.f32 %v712, 0.0
      %v741 = vadd.f32 %v713, 0.0
      %v742 = vadd.f32 %v714, 0.0
      %v743 = vadd.f32 %v715, 0.0
      %v744 = vadd.f32 %v716, 0.0
      %v745 = vadd.f32 %v717, 0.0
      %v746 = vperm.slane %v265, 1
      %v747 = vmul.f32 %v479, %v746
      %v748 = vmul.f32 %v401, %v746
      %v749 = vmul.f32 %v480, %v746
      %v750 = vmul.f32 %v404, %v746
      %v751 = vmul.f32 %v481, %v746
      %v752 = vmul.f32 %v407, %v746
      %v753 = vmul.f32 %v482, %v746
      %v754 = vmul.f32 %v410, %v746
      %v755 = vmul.f32 %v483, %v746
      %v756 = vmul.f32 %v413, %v746
      %v757 = vmul.f32 %v484, %v746
      %v758 = vmul.f32 %v416, %v746
      %v759 = vmul.f32 %v485, %v746
      %v760 = vmul.f32 %v419, %v746
      %v761 = vmul.f32 %v486, %v746
      %v762 = vmul.f32 %v422, %v746
      %v763 = vmul.f32 %v487, %v746
      %v764 = vmul.f32 %v425, %v746
      %v765 = vmul.f32 %v488, %v746
      %v766 = vmul.f32 %v428, %v746
      %v767 = vmul.f32 %v489, %v746
      %v768 = vmul.f32 %v431, %v746
      %v769 = vmul.f32 %v490, %v746
      %v770 = vmul.f32 %v434, %v746
      %v771 = vmul.f32 %v491, %v746
      %v772 = vmul.f32 %v437, %v746
      %v773 = vmul.f32 %v492, %v746
      %v774 = vmul.f32 %v440, %v746
      %v775 = vadd.f32 %v718, %v747
      %v776 = vadd.f32 %v719, %v748
      %v777 = vadd.f32 %v720, %v749
      %v778 = vadd.f32 %v721, %v750
      %v779 = vadd.f32 %v722, %v751
      %v780 = vadd.f32 %v723, %v752
      %v781 = vadd.f32 %v724, %v753
      %v782 = vadd.f32 %v725, %v754
      %v783 = vadd.f32 %v726, %v755
      %v784 = vadd.f32 %v727, %v756
      %v785 = vadd.f32 %v728, %v757
      %v786 = vadd.f32 %v729, %v758
      %v787 = vadd.f32 %v730, %v759
      %v788 = vadd.f32 %v731, %v760
      %v789 = vadd.f32 %v732, %v761
      %v790 = vadd.f32 %v733, %v762
      %v791 = vadd.f32 %v734, %v763
      %v792 = vadd.f32 %v735, %v764
      %v793 = vadd.f32 %v736, %v765
      %v794 = vadd.f32 %v737, %v766
      %v795 = vadd.f32 %v738, %v767
      %v796 = vadd.f32 %v739, %v768
      %v797 = vadd.f32 %v740, %v769
      %v798 = vadd.f32 %v741, %v770
      %v799 = vadd.f32 %v742, %v771
      %v800 = vadd.f32 %v743, %v772
      %v801 = vadd.f32 %v744, %v773
      %v802 = vadd.f32 %v745, %v774
      %v803 = vperm.slane %v265, 2
      %v804 = vmul.f32 %v233, %v803
      %v805 = vmul.f32 %v234, %v803
      %v806 = vmul.f32 %v235, %v803
      %v807 = vmul.f32 %v236, %v803
      %v808 = vmul.f32 %v237, %v803
      %v809 = vmul.f32 %v238, %v803
      %v810 = vmul.f32 %v239, %v803
      %v811 = vmul.f32 %v240, %v803
      %v812 = vmul.f32 %v241, %v803
      %v813 = vmul.f32 %v242, %v803
      %v814 = vmul.f32 %v243, %v803
      %v815 = vmul.f32 %v244, %v803
      %v816 = vmul.f32 %v245, %v803
      %v817 = vmul.f32 %v246, %v803
      %v818 = vmul.f32 %v247, %v803
      %v819 = vmul.f32 %v248, %v803
      %v820 = vmul.f32 %v249, %v803
      %v821 = vmul.f32 %v250, %v803
      %v822 = vmul.f32 %v251, %v803
      %v823 = vmul.f32 %v252, %v803
      %v824 = vmul.f32 %v253, %v803
      %v825 = vmul.f32 %v254, %v803
      %v826 = vmul.f32 %v255, %v803
      %v827 = vmul.f32 %v256, %v803
      %v828 = vmul.f32 %v257, %v803
      %v829 = vmul.f32 %v258, %v803
      %v830 = vmul.f32 %v259, %v803
      %v831 = vmul.f32 %v260, %v803
      %v832 = vadd.f32 %v775, %v804
      %v833 = vadd.f32 %v776, %v805
      %v834 = vadd.f32 %v777, %v806
      %v835 = vadd.f32 %v778, %v807
      %v836 = vadd.f32 %v779, %v808
      %v837 = vadd.f32 %v780, %v809
      %v838 = vadd.f32 %v781, %v810
      %v839 = vadd.f32 %v782, %v811
      %v840 = vadd.f32 %v783, %v812
      %v841 = vadd.f32 %v784, %v813
      %v842 = vadd.f32 %v785, %v814
      %v843 = vadd.f32 %v786, %v815
      %v844 = vadd.f32 %v787, %v816
      %v845 = vadd.f32 %v788, %v817
      %v846 = vadd.f32 %v789, %v818
      %v847 = vadd.f32 %v790, %v819
      %v848 = vadd.f32 %v791, %v820
      %v849 = vadd.f32 %v792, %v821
      %v850 = vadd.f32 %v793, %v822
      %v851 = vadd.f32 %v794, %v823
      %v852 = vadd.f32 %v795, %v824
      %v853 = vadd.f32 %v796, %v825
      %v854 = vadd.f32 %v797, %v826
      %v855 = vadd.f32 %v798, %v827
      %v856 = vadd.f32 %v799, %v828
      %v857 = vadd.f32 %v800, %v829
      %v858 = vadd.f32 %v801, %v830
      %v859 = vadd.f32 %v802, %v831
      %v860 = vperm.slane %v265, 3
      %v861 = vmul.f32 %v498, %v860
      %v862 = vmul.f32 %v576, %v860
      %v863 = vmul.f32 %v501, %v860
      %v864 = vmul.f32 %v577, %v860
      %v865 = vmul.f32 %v504, %v860
      %v866 = vmul.f32 %v578, %v860
      %v867 = vmul.f32 %v507, %v860
      %v868 = vmul.f32 %v579, %v860
      %v869 = vmul.f32 %v510, %v860
      %v870 = vmul.f32 %v580, %v860
      %v871 = vmul.f32 %v513, %v860
      %v872 = vmul.f32 %v581, %v860
      %v873 = vmul.f32 %v516, %v860
      %v874 = vmul.f32 %v582, %v860
      %v875 = vmul.f32 %v519, %v860
      %v876 = vmul.f32 %v583, %v860
      %v877 = vmul.f32 %v522, %v860
      %v878 = vmul.f32 %v584, %v860
      %v879 = vmul.f32 %v525, %v860
      %v880 = vmul.f32 %v585, %v860
      %v881 = vmul.f32 %v528, %v860
      %v882 = vmul.f32 %v586, %v860
      %v883 = vmul.f32 %v531, %v860
      %v884 = vmul.f32 %v587, %v860
      %v885 = vmul.f32 %v534, %v860
      %v886 = vmul.f32 %v588, %v860
      %v887 = vmul.f32 %v537, %v860
      %v888 = vmul.f32 %v589, %v860
      %v889 = vadd.f32 %v832, %v861
      %v890 = vadd.f32 %v833, %v862
      %v891 = vadd.f32 %v834, %v863
      %v892 = vadd.f32 %v835, %v864
      %v893 = vadd.f32 %v836, %v865
      %v894 = vadd.f32 %v837, %v866
      %v895 = vadd.f32 %v838, %v867
      %v896 = vadd.f32 %v839, %v868
      %v897 = vadd.f32 %v840, %v869
      %v898 = vadd.f32 %v841, %v870
      %v899 = vadd.f32 %v842, %v871
      %v900 = vadd.f32 %v843, %v872
      %v901 = vadd.f32 %v844, %v873
      %v902 = vadd.f32 %v845, %v874
      %v903 = vadd.f32 %v846, %v875
      %v904 = vadd.f32 %v847, %v876
      %v905 = vadd.f32 %v848, %v877
      %v906 = vadd.f32 %v849, %v878
      %v907 = vadd.f32 %v850, %v879
      %v908 = vadd.f32 %v851, %v880
      %v909 = vadd.f32 %v852, %v881
      %v910 = vadd.f32 %v853, %v882
      %v911 = vadd.f32 %v854, %v883
      %v912 = vadd.f32 %v855, %v884
      %v913 = vadd.f32 %v856, %v885
      %v914 = vadd.f32 %v857, %v886
      %v915 = vadd.f32 %v858, %v887
      %v916 = vadd.f32 %v859, %v888
      %v917 = vperm.slane %v265, 4
      %v918 = vmul.f32 %v595, %v917
      %v919 = vmul.f32 %v673, %v917
      %v920 = vmul.f32 %v598, %v917
      %v921 = vmul.f32 %v674, %v917
      %v922 = vmul.f32 %v601, %v917
      %v923 = vmul.f32 %v675, %v917
      %v924 = vmul.f32 %v604, %v917
      %v925 = vmul.f32 %v676, %v917
      %v926 = vmul.f32 %v607, %v917
      %v927 = vmul.f32 %v677, %v917
      %v928 = vmul.f32 %v610, %v917
      %v929 = vmul.f32 %v678, %v917
      %v930 = vmul.f32 %v613, %v917
      %v931 = vmul.f32 %v679, %v917
      %v932 = vmul.f32 %v616, %v917
      %v933 = vmul.f32 %v680, %v917
      %v934 = vmul.f32 %v619, %v917
      %v935 = vmul.f32 %v681, %v917
      %v936 = vmul.f32 %v622, %v917
      %v937 = vmul.f32 %v682, %v917
      %v938 = vmul.f32 %v625, %v917
      %v939 = vmul.f32 %v683, %v917
      %v940 = vmul.f32 %v628, %v917
      %v941 = vmul.f32 %v684, %v917
      %v942 = vmul.f32 %v631, %v917
      %v943 = vmul.f32 %v685, %v917
      %v944 = vmul.f32 %v634, %v917
      %v945 = vmul.f32 %v686, %v917
      %v946 = vadd.f32 %v889, %v918
      %v947 = vadd.f32 %v890, %v919
      %v948 = vadd.f32 %v891, %v920
      %v949 = vadd.f32 %v892, %v921
      %v950 = vadd.f32 %v893, %v922
      %v951 = vadd.f32 %v894, %v923
      %v952 = vadd.f32 %v895, %v924
      %v953 = vadd.f32 %v896, %v925
      %v954 = vadd.f32 %v897, %v926
      %v955 = vadd.f32 %v898, %v927
      %v956 = vadd.f32 %v899, %v928
      %v957 = vadd.f32 %v900, %v929
      %v958 = vadd.f32 %v901, %v930
      %v959 = vadd.f32 %v902, %v931
      %v960 = vadd.f32 %v903, %v932
      %v961 = vadd.f32 %v904, %v933
      %v962 = vadd.f32 %v905, %v934
      %v963 = vadd.f32 %v906, %v935
      %v964 = vadd.f32 %v907, %v936
      %v965 = vadd.f32 %v908, %v937
      %v966 = vadd.f32 %v909, %v938
      %v967 = vadd.f32 %v910, %v939
      %v968 = vadd.f32 %v911, %v940
      %v969 = vadd.f32 %v912, %v941
      %v970 = vadd.f32 %v913, %v942
      %v971 = vadd.f32 %v914, %v943
      %v972 = vadd.f32 %v915, %v944
      %v973 = vadd.f32 %v916, %v945
      %v974 = vadd.f32 %v946, 0.0
      %v975 = vadd.f32 %v947, 0.0
      %v976 = vadd.f32 %v948, 0.0
      %v977 = vadd.f32 %v949, 0.0
      %v978 = vadd.f32 %v950, 0.0
      %v979 = vadd.f32 %v951, 0.0
      %v980 = vadd.f32 %v952, 0.0
      %v981 = vadd.f32 %v953, 0.0
      %v982 = vadd.f32 %v954, 0.0
      %v983 = vadd.f32 %v955, 0.0
      %v984 = vadd.f32 %v956, 0.0
      %v985 = vadd.f32 %v957, 0.0
      %v986 = vadd.f32 %v958, 0.0
      %v987 = vadd.f32 %v959, 0.0
      %v988 = vadd.f32 %v960, 0.0
      %v989 = vadd.f32 %v961, 0.0
      %v990 = vadd.f32 %v962, 0.0
      %v991 = vadd.f32 %v963, 0.0
      %v992 = vadd.f32 %v964, 0.0
      %v993 = vadd.f32 %v965, 0.0
      %v994 = vadd.f32 %v966, 0.0
      %v995 = vadd.f32 %v967, 0.0
      %v996 = vadd.f32 %v968, 0.0
      %v997 = vadd.f32 %v969, 0.0
      %v998 = vadd.f32 %v970, 0.0
      %v999 = vadd.f32 %v971, 0.0
      %v1000 = vadd.f32 %v972, 0.0
      %v1001 = vadd.f32 %v973, 0.0
      %v1002 = vperm.slane %v265, 5
      %v1003 = vmul.f32 %v382, %v1002
      %v1004 = vmul.f32 %v304, %v1002
      %v1005 = vmul.f32 %v383, %v1002
      %v1006 = vmul.f32 %v307, %v1002
      %v1007 = vmul.f32 %v384, %v1002
      %v1008 = vmul.f32 %v310, %v1002
      %v1009 = vmul.f32 %v385, %v1002
      %v1010 = vmul.f32 %v313, %v1002
      %v1011 = vmul.f32 %v386, %v1002
      %v1012 = vmul.f32 %v316, %v1002
      %v1013 = vmul.f32 %v387, %v1002
      %v1014 = vmul.f32 %v319, %v1002
      %v1015 = vmul.f32 %v388, %v1002
      %v1016 = vmul.f32 %v322, %v1002
      %v1017 = vmul.f32 %v389, %v1002
      %v1018 = vmul.f32 %v325, %v1002
      %v1019 = vmul.f32 %v390, %v1002
      %v1020 = vmul.f32 %v328, %v1002
      %v1021 = vmul.f32 %v391, %v1002
      %v1022 = vmul.f32 %v331, %v1002
      %v1023 = vmul.f32 %v392, %v1002
      %v1024 = vmul.f32 %v334, %v1002
      %v1025 = vmul.f32 %v393, %v1002
      %v1026 = vmul.f32 %v337, %v1002
      %v1027 = vmul.f32 %v394, %v1002
      %v1028 = vmul.f32 %v340, %v1002
      %v1029 = vmul.f32 %v395, %v1002
      %v1030 = vmul.f32 %v343, %v1002
      %v1031 = vmul.f32 %v396, %v1002
      %v1032 = vmul.f32 %v346, %v1002
      %v1033 = vadd.f32 %v1003, 0.0
      %v1034 = vadd.f32 %v1004, 0.0
      %v1035 = vadd.f32 %v1005, 0.0
      %v1036 = vadd.f32 %v1006, 0.0
      %v1037 = vadd.f32 %v1007, 0.0
      %v1038 = vadd.f32 %v1008, 0.0
      %v1039 = vadd.f32 %v1009, 0.0
      %v1040 = vadd.f32 %v1010, 0.0
      %v1041 = vadd.f32 %v1011, 0.0
      %v1042 = vadd.f32 %v1012, 0.0
      %v1043 = vadd.f32 %v1013, 0.0
      %v1044 = vadd.f32 %v1014, 0.0
      %v1045 = vadd.f32 %v1015, 0.0
      %v1046 = vadd.f32 %v1016, 0.0
      %v1047 = vadd.f32 %v1017, 0.0
      %v1048 = vadd.f32 %v1018, 0.0
      %v1049 = vadd.f32 %v1019, 0.0
      %v1050 = vadd.f32 %v1020, 0.0
      %v1051 = vadd.f32 %v1021, 0.0
      %v1052 = vadd.f32 %v1022, 0.0
      %v1053 = vadd.f32 %v1023, 0.0
      %v1054 = vadd.f32 %v1024, 0.0
      %v1055 = vadd.f32 %v1025, 0.0
      %v1056 = vadd.f32 %v1026, 0.0
      %v1057 = vadd.f32 %v1027, 0.0
      %v1058 = vadd.f32 %v1028, 0.0
      %v1059 = vadd.f32 %v1029, 0.0
      %v1060 = vadd.f32 %v1030, 0.0
      %v1061 = vadd.f32 %v1031, 0.0
      %v1062 = vadd.f32 %v1032, 0.0
      %v1063 = vperm.slane %v265, 6
      %v1064 = vmul.f32 %v479, %v1063
      %v1065 = vmul.f32 %v401, %v1063
      %v1066 = vmul.f32 %v480, %v1063
      %v1067 = vmul.f32 %v404, %v1063
      %v1068 = vmul.f32 %v481, %v1063
      %v1069 = vmul.f32 %v407, %v1063
      %v1070 = vmul.f32 %v482, %v1063
      %v1071 = vmul.f32 %v410, %v1063
      %v1072 = vmul.f32 %v483, %v1063
      %v1073 = vmul.f32 %v413, %v1063
      %v1074 = vmul.f32 %v484, %v1063
      %v1075 = vmul.f32 %v416, %v1063
      %v1076 = vmul.f32 %v485, %v1063
      %v1077 = vmul.f32 %v419, %v1063
      %v1078 = vmul.f32 %v486, %v1063
      %v1079 = vmul.f32 %v422, %v1063
      %v1080 = vmul.f32 %v487, %v1063
      %v1081 = vmul.f32 %v425, %v1063
      %v1082 = vmul.f32 %v488, %v1063
      %v1083 = vmul.f32 %v428, %v1063
      %v1084 = vmul.f32 %v489, %v1063
      %v1085 = vmul.f32 %v431, %v1063
      %v1086 = vmul.f32 %v490, %v1063
      %v1087 = vmul.f32 %v434, %v1063
      %v1088 = vmul.f32 %v491, %v1063
      %v1089 = vmul.f32 %v437, %v1063
      %v1090 = vmul.f32 %v492, %v1063
      %v1091 = vmul.f32 %v440, %v1063
      %v1092 = vmul.f32 %v493, %v1063
      %v1093 = vmul.f32 %v443, %v1063
      %v1094 = vadd.f32 %v1033, %v1064
      %v1095 = vadd.f32 %v1034, %v1065
      %v1096 = vadd.f32 %v1035, %v1066
      %v1097 = vadd.f32 %v1036, %v1067
      %v1098 = vadd.f32 %v1037, %v1068
      %v1099 = vadd.f32 %v1038, %v1069
      %v1100 = vadd.f32 %v1039, %v1070
      %v1101 = vadd.f32 %v1040, %v1071
      %v1102 = vadd.f32 %v1041, %v1072
      %v1103 = vadd.f32 %v1042, %v1073
      %v1104 = vadd.f32 %v1043, %v1074
      %v1105 = vadd.f32 %v1044, %v1075
      %v1106 = vadd.f32 %v1045, %v1076
      %v1107 = vadd.f32 %v1046, %v1077
      %v1108 = vadd.f32 %v1047, %v1078
      %v1109 = vadd.f32 %v1048, %v1079
      %v1110 = vadd.f32 %v1049, %v1080
      %v1111 = vadd.f32 %v1050, %v1081
      %v1112 = vadd.f32 %v1051, %v1082
      %v1113 = vadd.f32 %v1052, %v1083
      %v1114 = vadd.f32 %v1053, %v1084
      %v1115 = vadd.f32 %v1054, %v1085
      %v1116 = vadd.f32 %v1055, %v1086
      %v1117 = vadd.f32 %v1056, %v1087
      %v1118 = vadd.f32 %v1057, %v1088
      %v1119 = vadd.f32 %v1058, %v1089
      %v1120 = vadd.f32 %v1059, %v1090
      %v1121 = vadd.f32 %v1060, %v1091
      %v1122 = vadd.f32 %v1061, %v1092
      %v1123 = vadd.f32 %v1062, %v1093
      %v1124 = vperm.slane %v265, 7
      %v1125 = vmul.f32 %v233, %v1124
      %v1126 = vmul.f32 %v234, %v1124
      %v1127 = vmul.f32 %v235, %v1124
      %v1128 = vmul.f32 %v236, %v1124
      %v1129 = vmul.f32 %v237, %v1124
      %v1130 = vmul.f32 %v238, %v1124
      %v1131 = vmul.f32 %v239, %v1124
      %v1132 = vmul.f32 %v240, %v1124
      %v1133 = vmul.f32 %v241, %v1124
      %v1134 = vmul.f32 %v242, %v1124
      %v1135 = vmul.f32 %v243, %v1124
      %v1136 = vmul.f32 %v244, %v1124
      %v1137 = vmul.f32 %v245, %v1124
      %v1138 = vmul.f32 %v246, %v1124
      %v1139 = vmul.f32 %v247, %v1124
      %v1140 = vmul.f32 %v248, %v1124
      %v1141 = vmul.f32 %v249, %v1124
      %v1142 = vmul.f32 %v250, %v1124
      %v1143 = vmul.f32 %v251, %v1124
      %v1144 = vmul.f32 %v252, %v1124
      %v1145 = vmul.f32 %v253, %v1124
      %v1146 = vmul.f32 %v254, %v1124
      %v1147 = vmul.f32 %v255, %v1124
      %v1148 = vmul.f32 %v256, %v1124
      %v1149 = vmul.f32 %v257, %v1124
      %v1150 = vmul.f32 %v258, %v1124
      %v1151 = vmul.f32 %v259, %v1124
      %v1152 = vmul.f32 %v260, %v1124
      %v1153 = vmul.f32 %v261, %v1124
      %v1154 = vmul.f32 %v262, %v1124
      %v1155 = vadd.f32 %v1094, %v1125
      %v1156 = vadd.f32 %v1095, %v1126
      %v1157 = vadd.f32 %v1096, %v1127
      %v1158 = vadd.f32 %v1097, %v1128
      %v1159 = vadd.f32 %v1098, %v1129
      %v1160 = vadd.f32 %v1099, %v1130
      %v1161 = vadd.f32 %v1100, %v1131
      %v1162 = vadd.f32 %v1101, %v1132
      %v1163 = vadd.f32 %v1102, %v1133
      %v1164 = vadd.f32 %v1103, %v1134
      %v1165 = vadd.f32 %v1104, %v1135
      %v1166 = vadd.f32 %v1105, %v1136
      %v1167 = vadd.f32 %v1106, %v1137
      %v1168 = vadd.f32 %v1107, %v1138
      %v1169 = vadd.f32 %v1108, %v1139
      %v1170 = vadd.f32 %v1109, %v1140
      %v1171 = vadd.f32 %v1110, %v1141
      %v1172 = vadd.f32 %v1111, %v1142
      %v1173 = vadd.f32 %v1112, %v1143
      %v1174 = vadd.f32 %v1113, %v1144
      %v1175 = vadd.f32 %v1114, %v1145
      %v1176 = vadd.f32 %v1115, %v1146
      %v1177 = vadd.f32 %v1116, %v1147
      %v1178 = vadd.f32 %v1117, %v1148
      %v1179 = vadd.f32 %v1118, %v1149
      %v1180 = vadd.f32 %v1119, %v1150
      %v1181 = vadd.f32 %v1120, %v1151
      %v1182 = vadd.f32 %v1121, %v1152
      %v1183 = vadd.f32 %v1122, %v1153
      %v1184 = vadd.f32 %v1123, %v1154
      %v1185 = vperm.slane %v266, 0
      %v1186 = vmul.f32 %v498, %v1185
      %v1187 = vmul.f32 %v576, %v1185
      %v1188 = vmul.f32 %v501, %v1185
      %v1189 = vmul.f32 %v577, %v1185
      %v1190 = vmul.f32 %v504, %v1185
      %v1191 = vmul.f32 %v578, %v1185
      %v1192 = vmul.f32 %v507, %v1185
      %v1193 = vmul.f32 %v579, %v1185
      %v1194 = vmul.f32 %v510, %v1185
      %v1195 = vmul.f32 %v580, %v1185
      %v1196 = vmul.f32 %v513, %v1185
      %v1197 = vmul.f32 %v581, %v1185
      %v1198 = vmul.f32 %v516, %v1185
      %v1199 = vmul.f32 %v582, %v1185
      %v1200 = vmul.f32 %v519, %v1185
      %v1201 = vmul.f32 %v583, %v1185
      %v1202 = vmul.f32 %v522, %v1185
      %v1203 = vmul.f32 %v584, %v1185
      %v1204 = vmul.f32 %v525, %v1185
      %v1205 = vmul.f32 %v585, %v1185
      %v1206 = vmul.f32 %v528, %v1185
      %v1207 = vmul.f32 %v586, %v1185
      %v1208 = vmul.f32 %v531, %v1185
      %v1209 = vmul.f32 %v587, %v1185
      %v1210 = vmul.f32 %v534, %v1185
      %v1211 = vmul.f32 %v588, %v1185
      %v1212 = vmul.f32 %v537, %v1185
      %v1213 = vmul.f32 %v589, %v1185
      %v1214 = vmul.f32 %v540, %v1185
      %v1215 = vmul.f32 %v590, %v1185
      %v1216 = vadd.f32 %v1155, %v1186
      %v1217 = vadd.f32 %v1156, %v1187
      %v1218 = vadd.f32 %v1157, %v1188
      %v1219 = vadd.f32 %v1158, %v1189
      %v1220 = vadd.f32 %v1159, %v1190
      %v1221 = vadd.f32 %v1160, %v1191
      %v1222 = vadd.f32 %v1161, %v1192
      %v1223 = vadd.f32 %v1162, %v1193
      %v1224 = vadd.f32 %v1163, %v1194
      %v1225 = vadd.f32 %v1164, %v1195
      %v1226 = vadd.f32 %v1165, %v1196
      %v1227 = vadd.f32 %v1166, %v1197
      %v1228 = vadd.f32 %v1167, %v1198
      %v1229 = vadd.f32 %v1168, %v1199
      %v1230 = vadd.f32 %v1169, %v1200
      %v1231 = vadd.f32 %v1170, %v1201
      %v1232 = vadd.f32 %v1171, %v1202
      %v1233 = vadd.f32 %v1172, %v1203
      %v1234 = vadd.f32 %v1173, %v1204
      %v1235 = vadd.f32 %v1174, %v1205
      %v1236 = vadd.f32 %v1175, %v1206
      %v1237 = vadd.f32 %v1176, %v1207
      %v1238 = vadd.f32 %v1177, %v1208
      %v1239 = vadd.f32 %v1178, %v1209
      %v1240 = vadd.f32 %v1179, %v1210
      %v1241 = vadd.f32 %v1180, %v1211
      %v1242 = vadd.f32 %v1181, %v1212
      %v1243 = vadd.f32 %v1182, %v1213
      %v1244 = vadd.f32 %v1183, %v1214
      %v1245 = vadd.f32 %v1184, %v1215
      %v1246 = vperm.slane %v266, 1
      %v1247 = vmul.f32 %v595, %v1246
      %v1248 = vmul.f32 %v673, %v1246
      %v1249 = vmul.f32 %v598, %v1246
      %v1250 = vmul.f32 %v674, %v1246
      %v1251 = vmul.f32 %v601, %v1246
      %v1252 = vmul.f32 %v675, %v1246
      %v1253 = vmul.f32 %v604, %v1246
      %v1254 = vmul.f32 %v676, %v1246
      %v1255 = vmul.f32 %v607, %v1246
      %v1256 = vmul.f32 %v677, %v1246
      %v1257 = vmul.f32 %v610, %v1246
      %v1258 = vmul.f32 %v678, %v1246
      %v1259 = vmul.f32 %v613, %v1246
      %v1260 = vmul.f32 %v679, %v1246
      %v1261 = vmul.f32 %v616, %v1246
      %v1262 = vmul.f32 %v680, %v1246
      %v1263 = vmul.f32 %v619, %v1246
      %v1264 = vmul.f32 %v681, %v1246
      %v1265 = vmul.f32 %v622, %v1246
      %v1266 = vmul.f32 %v682, %v1246
      %v1267 = vmul.f32 %v625, %v1246
      %v1268 = vmul.f32 %v683, %v1246
      %v1269 = vmul.f32 %v628, %v1246
      %v1270 = vmul.f32 %v684, %v1246
      %v1271 = vmul.f32 %v631, %v1246
      %v1272 = vmul.f32 %v685, %v1246
      %v1273 = vmul.f32 %v634, %v1246
      %v1274 = vmul.f32 %v686, %v1246
      %v1275 = vmul.f32 %v637, %v1246
      %v1276 = vmul.f32 %v687, %v1246
      %v1277 = vadd.f32 %v1216, %v1247
      %v1278 = vadd.f32 %v1217, %v1248
      %v1279 = vadd.f32 %v1218, %v1249
      %v1280 = vadd.f32 %v1219, %v1250
      %v1281 = vadd.f32 %v1220, %v1251
      %v1282 = vadd.f32 %v1221, %v1252
      %v1283 = vadd.f32 %v1222, %v1253
      %v1284 = vadd.f32 %v1223, %v1254
      %v1285 = vadd.f32 %v1224, %v1255
      %v1286 = vadd.f32 %v1225, %v1256
      %v1287 = vadd.f32 %v1226, %v1257
      %v1288 = vadd.f32 %v1227, %v1258
      %v1289 = vadd.f32 %v1228, %v1259
      %v1290 = vadd.f32 %v1229, %v1260
      %v1291 = vadd.f32 %v1230, %v1261
      %v1292 = vadd.f32 %v1231, %v1262
      %v1293 = vadd.f32 %v1232, %v1263
      %v1294 = vadd.f32 %v1233, %v1264
      %v1295 = vadd.f32 %v1234, %v1265
      %v1296 = vadd.f32 %v1235, %v1266
      %v1297 = vadd.f32 %v1236, %v1267
      %v1298 = vadd.f32 %v1237, %v1268
      %v1299 = vadd.f32 %v1238, %v1269
      %v1300 = vadd.f32 %v1239, %v1270
      %v1301 = vadd.f32 %v1240, %v1271
      %v1302 = vadd.f32 %v1241, %v1272
      %v1303 = vadd.f32 %v1242, %v1273
      %v1304 = vadd.f32 %v1243, %v1274
      %v1305 = vadd.f32 %v1244, %v1275
      %v1306 = vadd.f32 %v1245, %v1276
      %v1307 = vadd.f32 %v1277, 0.0
      %v1308 = vadd.f32 %v1278, 0.0
      %v1309 = vadd.f32 %v974, %v1279
      %v1310 = vadd.f32 %v975, %v1280
      %v1311 = vadd.f32 %v976, %v1281
      %v1312 = vadd.f32 %v977, %v1282
      %v1313 = vadd.f32 %v978, %v1283
      %v1314 = vadd.f32 %v979, %v1284
      %v1315 = vadd.f32 %v980, %v1285
      %v1316 = vadd.f32 %v981, %v1286
      %v1317 = vadd.f32 %v982, %v1287
      %v1318 = vadd.f32 %v983, %v1288
      %v1319 = vadd.f32 %v984, %v1289
      %v1320 = vadd.f32 %v985, %v1290
      %v1321 = vadd.f32 %v986, %v1291
      %v1322 = vadd.f32 %v987, %v1292
      %v1323 = vadd.f32 %v988, %v1293
      %v1324 = vadd.f32 %v989, %v1294
      %v1325 = vadd.f32 %v990, %v1295
      %v1326 = vadd.f32 %v991, %v1296
      %v1327 = vadd.f32 %v992, %v1297
      %v1328 = vadd.f32 %v993, %v1298
      %v1329 = vadd.f32 %v994, %v1299
      %v1330 = vadd.f32 %v995, %v1300
      %v1331 = vadd.f32 %v996, %v1301
      %v1332 = vadd.f32 %v997, %v1302
      %v1333 = vadd.f32 %v998, %v1303
      %v1334 = vadd.f32 %v999, %v1304
      %v1335 = vadd.f32 %v1000, %v1305
      %v1336 = vadd.f32 %v1001, %v1306
      %v1337 = vperm.slane %v266, 2
      %v1338 = vmul.f32 %v382, %v1337
      %v1339 = vmul.f32 %v304, %v1337
      %v1340 = vmul.f32 %v383, %v1337
      %v1341 = vmul.f32 %v307, %v1337
      %v1342 = vmul.f32 %v384, %v1337
      %v1343 = vmul.f32 %v310, %v1337
      %v1344 = vmul.f32 %v385, %v1337
      %v1345 = vmul.f32 %v313, %v1337
      %v1346 = vmul.f32 %v386, %v1337
      %v1347 = vmul.f32 %v316, %v1337
      %v1348 = vmul.f32 %v387, %v1337
      %v1349 = vmul.f32 %v319, %v1337
      %v1350 = vmul.f32 %v388, %v1337
      %v1351 = vmul.f32 %v322, %v1337
      %v1352 = vmul.f32 %v389, %v1337
      %v1353 = vmul.f32 %v325, %v1337
      %v1354 = vmul.f32 %v390, %v1337
      %v1355 = vmul.f32 %v328, %v1337
      %v1356 = vmul.f32 %v391, %v1337
      %v1357 = vmul.f32 %v331, %v1337
      %v1358 = vmul.f32 %v392, %v1337
      %v1359 = vmul.f32 %v334, %v1337
      %v1360 = vmul.f32 %v393, %v1337
      %v1361 = vmul.f32 %v337, %v1337
      %v1362 = vmul.f32 %v394, %v1337
      %v1363 = vmul.f32 %v340, %v1337
      %v1364 = vmul.f32 %v395, %v1337
      %v1365 = vmul.f32 %v343, %v1337
      %v1366 = vmul.f32 %v396, %v1337
      %v1367 = vmul.f32 %v346, %v1337
      %v1368 = vmul.f32 %v397, %v1337
      %v1369 = vmul.f32 %v349, %v1337
      %v1370 = vadd.f32 %v1338, 0.0
      %v1371 = vadd.f32 %v1339, 0.0
      %v1372 = vadd.f32 %v1340, 0.0
      %v1373 = vadd.f32 %v1341, 0.0
      %v1374 = vadd.f32 %v1342, 0.0
      %v1375 = vadd.f32 %v1343, 0.0
      %v1376 = vadd.f32 %v1344, 0.0
      %v1377 = vadd.f32 %v1345, 0.0
      %v1378 = vadd.f32 %v1346, 0.0
      %v1379 = vadd.f32 %v1347, 0.0
      %v1380 = vadd.f32 %v1348, 0.0
      %v1381 = vadd.f32 %v1349, 0.0
      %v1382 = vadd.f32 %v1350, 0.0
      %v1383 = vadd.f32 %v1351, 0.0
      %v1384 = vadd.f32 %v1352, 0.0
      %v1385 = vadd.f32 %v1353, 0.0
      %v1386 = vadd.f32 %v1354, 0.0
      %v1387 = vadd.f32 %v1355, 0.0
      %v1388 = vadd.f32 %v1356, 0.0
      %v1389 = vadd.f32 %v1357, 0.0
      %v1390 = vadd.f32 %v1358, 0.0
      %v1391 = vadd.f32 %v1359, 0.0
      %v1392 = vadd.f32 %v1360, 0.0
      %v1393 = vadd.f32 %v1361, 0.0
      %v1394 = vadd.f32 %v1362, 0.0
      %v1395 = vadd.f32 %v1363, 0.0
      %v1396 = vadd.f32 %v1364, 0.0
      %v1397 = vadd.f32 %v1365, 0.0
      %v1398 = vadd.f32 %v1366, 0.0
      %v1399 = vadd.f32 %v1367, 0.0
      %v1400 = vadd.f32 %v1368, 0.0
      %v1401 = vadd.f32 %v1369, 0.0
      %v1402 = vperm.slane %v266, 3
      %v1403 = vmul.f32 %v479, %v1402
      %v1404 = vmul.f32 %v401, %v1402
      %v1405 = vmul.f32 %v480, %v1402
      %v1406 = vmul.f32 %v404, %v1402
      %v1407 = vmul.f32 %v481, %v1402
      %v1408 = vmul.f32 %v407, %v1402
      %v1409 = vmul.f32 %v482, %v1402
      %v1410 = vmul.f32 %v410, %v1402
      %v1411 = vmul.f32 %v483, %v1402
      %v1412 = vmul.f32 %v413, %v1402
      %v1413 = vmul.f32 %v484, %v1402
      %v1414 = vmul.f32 %v416, %v1402
      %v1415 = vmul.f32 %v485, %v1402
      %v1416 = vmul.f32 %v419, %v1402
      %v1417 = vmul.f32 %v486, %v1402
      %v1418 = vmul.f32 %v422, %v1402
      %v1419 = vmul.f32 %v487, %v1402
      %v1420 = vmul.f32 %v425, %v1402
      %v1421 = vmul.f32 %v488, %v1402
      %v1422 = vmul.f32 %v428, %v1402
      %v1423 = vmul.f32 %v489, %v1402
      %v1424 = vmul.f32 %v431, %v1402
      %v1425 = vmul.f32 %v490, %v1402
      %v1426 = vmul.f32 %v434, %v1402
      %v1427 = vmul.f32 %v491, %v1402
      %v1428 = vmul.f32 %v437, %v1402
      %v1429 = vmul.f32 %v492, %v1402
      %v1430 = vmul.f32 %v440, %v1402
      %v1431 = vmul.f32 %v493, %v1402
      %v1432 = vmul.f32 %v443, %v1402
      %v1433 = vmul.f32 %v494, %v1402
      %v1434 = vmul.f32 %v446, %v1402
      %v1435 = vadd.f32 %v1370, %v1403
      %v1436 = vadd.f32 %v1371, %v1404
      %v1437 = vadd.f32 %v1372, %v1405
      %v1438 = vadd.f32 %v1373, %v1406
      %v1439 = vadd.f32 %v1374, %v1407
      %v1440 = vadd.f32 %v1375, %v1408
      %v1441 = vadd.f32 %v1376, %v1409
      %v1442 = vadd.f32 %v1377, %v1410
      %v1443 = vadd.f32 %v1378, %v1411
      %v1444 = vadd.f32 %v1379, %v1412
      %v1445 = vadd.f32 %v1380, %v1413
      %v1446 = vadd.f32 %v1381, %v1414
      %v1447 = vadd.f32 %v1382, %v1415
      %v1448 = vadd.f32 %v1383, %v1416
      %v1449 = vadd.f32 %v1384, %v1417
      %v1450 = vadd.f32 %v1385, %v1418
      %v1451 = vadd.f32 %v1386, %v1419
      %v1452 = vadd.f32 %v1387, %v1420
      %v1453 = vadd.f32 %v1388, %v1421
      %v1454 = vadd.f32 %v1389, %v1422
      %v1455 = vadd.f32 %v1390, %v1423
      %v1456 = vadd.f32 %v1391, %v1424
      %v1457 = vadd.f32 %v1392, %v1425
      %v1458 = vadd.f32 %v1393, %v1426
      %v1459 = vadd.f32 %v1394, %v1427
      %v1460 = vadd.f32 %v1395, %v1428
      %v1461 = vadd.f32 %v1396, %v1429
      %v1462 = vadd.f32 %v1397, %v1430
      %v1463 = vadd.f32 %v1398, %v1431
      %v1464 = vadd.f32 %v1399, %v1432
      %v1465 = vadd.f32 %v1400, %v1433
      %v1466 = vadd.f32 %v1401, %v1434
      %v1467 = vperm.slane %v266, 4
      %v1468 = vmul.f32 %v233, %v1467
      %v1469 = vmul.f32 %v234, %v1467
      %v1470 = vmul.f32 %v235, %v1467
      %v1471 = vmul.f32 %v236, %v1467
      %v1472 = vmul.f32 %v237, %v1467
      %v1473 = vmul.f32 %v238, %v1467
      %v1474 = vmul.f32 %v239, %v1467
      %v1475 = vmul.f32 %v240, %v1467
      %v1476 = vmul.f32 %v241, %v1467
      %v1477 = vmul.f32 %v242, %v1467
      %v1478 = vmul.f32 %v243, %v1467
      %v1479 = vmul.f32 %v244, %v1467
      %v1480 = vmul.f32 %v245, %v1467
      %v1481 = vmul.f32 %v246, %v1467
      %v1482 = vmul.f32 %v247, %v1467
      %v1483 = vmul.f32 %v248, %v1467
      %v1484 = vmul.f32 %v249, %v1467
      %v1485 = vmul.f32 %v250, %v1467
      %v1486 = vmul.f32 %v251, %v1467
      %v1487 = vmul.f32 %v252, %v1467
      %v1488 = vmul.f32 %v253, %v1467
      %v1489 = vmul.f32 %v254, %v1467
      %v1490 = vmul.f32 %v255, %v1467
      %v1491 = vmul.f32 %v256, %v1467
      %v1492 = vmul.f32 %v257, %v1467
      %v1493 = vmul.f32 %v258, %v1467
      %v1494 = vmul.f32 %v259, %v1467
      %v1495 = vmul.f32 %v260, %v1467
      %v1496 = vmul.f32 %v261, %v1467
      %v1497 = vmul.f32 %v262, %v1467
      %v1498 = vmul.f32 %v263, %v1467
      %v1499 = vmul.f32 %v264, %v1467
      %v1500 = vadd.f32 %v1435, %v1468
      %v1501 = vadd.f32 %v1436, %v1469
      %v1502 = vadd.f32 %v1437, %v1470
      %v1503 = vadd.f32 %v1438, %v1471
      %v1504 = vadd.f32 %v1439, %v1472
      %v1505 = vadd.f32 %v1440, %v1473
      %v1506 = vadd.f32 %v1441, %v1474
      %v1507 = vadd.f32 %v1442, %v1475
      %v1508 = vadd.f32 %v1443, %v1476
      %v1509 = vadd.f32 %v1444, %v1477
      %v1510 = vadd.f32 %v1445, %v1478
      %v1511 = vadd.f32 %v1446, %v1479
      %v1512 = vadd.f32 %v1447, %v1480
      %v1513 = vadd.f32 %v1448, %v1481
      %v1514 = vadd.f32 %v1449, %v1482
      %v1515 = vadd.f32 %v1450, %v1483
      %v1516 = vadd.f32 %v1451, %v1484
      %v1517 = vadd.f32 %v1452, %v1485
      %v1518 = vadd.f32 %v1453, %v1486
      %v1519 = vadd.f32 %v1454, %v1487
      %v1520 = vadd.f32 %v1455, %v1488
      %v1521 = vadd.f32 %v1456, %v1489
      %v1522 = vadd.f32 %v1457, %v1490
      %v1523 = vadd.f32 %v1458, %v1491
      %v1524 = vadd.f32 %v1459, %v1492
      %v1525 = vadd.f32 %v1460, %v1493
      %v1526 = vadd.f32 %v1461, %v1494
      %v1527 = vadd.f32 %v1462, %v1495
      %v1528 = vadd.f32 %v1463, %v1496
      %v1529 = vadd.f32 %v1464, %v1497
      %v1530 = vadd.f32 %v1465, %v1498
      %v1531 = vadd.f32 %v1466, %v1499
      %v1532 = vperm.slane %v266, 5
      %v1533 = vmul.f32 %v498, %v1532
      %v1534 = vmul.f32 %v576, %v1532
      %v1535 = vmul.f32 %v501, %v1532
      %v1536 = vmul.f32 %v577, %v1532
      %v1537 = vmul.f32 %v504, %v1532
      %v1538 = vmul.f32 %v578, %v1532
      %v1539 = vmul.f32 %v507, %v1532
      %v1540 = vmul.f32 %v579, %v1532
      %v1541 = vmul.f32 %v510, %v1532
      %v1542 = vmul.f32 %v580, %v1532
      %v1543 = vmul.f32 %v513, %v1532
      %v1544 = vmul.f32 %v581, %v1532
      %v1545 = vmul.f32 %v516, %v1532
      %v1546 = vmul.f32 %v582, %v1532
      %v1547 = vmul.f32 %v519, %v1532
      %v1548 = vmul.f32 %v583, %v1532
      %v1549 = vmul.f32 %v522, %v1532
      %v1550 = vmul.f32 %v584, %v1532
      %v1551 = vmul.f32 %v525, %v1532
      %v1552 = vmul.f32 %v585, %v1532
      %v1553 = vmul.f32 %v528, %v1532
      %v1554 = vmul.f32 %v586, %v1532
      %v1555 = vmul.f32 %v531, %v1532
      %v1556 = vmul.f32 %v587, %v1532
      %v1557 = vmul.f32 %v534, %v1532
      %v1558 = vmul.f32 %v588, %v1532
      %v1559 = vmul.f32 %v537, %v1532
      %v1560 = vmul.f32 %v589, %v1532
      %v1561 = vmul.f32 %v540, %v1532
      %v1562 = vmul.f32 %v590, %v1532
      %v1563 = vmul.f32 %v543, %v1532
      %v1564 = vmul.f32 %v591, %v1532
      %v1565 = vadd.f32 %v1500, %v1533
      %v1566 = vadd.f32 %v1501, %v1534
      %v1567 = vadd.f32 %v1502, %v1535
      %v1568 = vadd.f32 %v1503, %v1536
      %v1569 = vadd.f32 %v1504, %v1537
      %v1570 = vadd.f32 %v1505, %v1538
      %v1571 = vadd.f32 %v1506, %v1539
      %v1572 = vadd.f32 %v1507, %v1540
      %v1573 = vadd.f32 %v1508, %v1541
      %v1574 = vadd.f32 %v1509, %v1542
      %v1575 = vadd.f32 %v1510, %v1543
      %v1576 = vadd.f32 %v1511, %v1544
      %v1577 = vadd.f32 %v1512, %v1545
      %v1578 = vadd.f32 %v1513, %v1546
      %v1579 = vadd.f32 %v1514, %v1547
      %v1580 = vadd.f32 %v1515, %v1548
      %v1581 = vadd.f32 %v1516, %v1549
      %v1582 = vadd.f32 %v1517, %v1550
      %v1583 = vadd.f32 %v1518, %v1551
      %v1584 = vadd.f32 %v1519, %v1552
      %v1585 = vadd.f32 %v1520, %v1553
      %v1586 = vadd.f32 %v1521, %v1554
      %v1587 = vadd.f32 %v1522, %v1555
      %v1588 = vadd.f32 %v1523, %v1556
      %v1589 = vadd.f32 %v1524, %v1557
      %v1590 = vadd.f32 %v1525, %v1558
      %v1591 = vadd.f32 %v1526, %v1559
      %v1592 = vadd.f32 %v1527, %v1560
      %v1593 = vadd.f32 %v1528, %v1561
      %v1594 = vadd.f32 %v1529, %v1562
      %v1595 = vadd.f32 %v1530, %v1563
      %v1596 = vadd.f32 %v1531, %v1564
      %v1597 = vperm.slane %v266, 6
      %v1598 = vmul.f32 %v595, %v1597
      %v1599 = vmul.f32 %v673, %v1597
      %v1600 = vmul.f32 %v598, %v1597
      %v1601 = vmul.f32 %v674, %v1597
      %v1602 = vmul.f32 %v601, %v1597
      %v1603 = vmul.f32 %v675, %v1597
      %v1604 = vmul.f32 %v604, %v1597
      %v1605 = vmul.f32 %v676, %v1597
      %v1606 = vmul.f32 %v607, %v1597
      %v1607 = vmul.f32 %v677, %v1597
      %v1608 = vmul.f32 %v610, %v1597
      %v1609 = vmul.f32 %v678, %v1597
      %v1610 = vmul.f32 %v613, %v1597
      %v1611 = vmul.f32 %v679, %v1597
      %v1612 = vmul.f32 %v616, %v1597
      %v1613 = vmul.f32 %v680, %v1597
      %v1614 = vmul.f32 %v619, %v1597
      %v1615 = vmul.f32 %v681, %v1597
      %v1616 = vmul.f32 %v622, %v1597
      %v1617 = vmul.f32 %v682, %v1597
      %v1618 = vmul.f32 %v625, %v1597
      %v1619 = vmul.f32 %v683, %v1597
      %v1620 = vmul.f32 %v628, %v1597
      %v1621 = vmul.f32 %v684, %v1597
      %v1622 = vmul.f32 %v631, %v1597
      %v1623 = vmul.f32 %v685, %v1597
      %v1624 = vmul.f32 %v634, %v1597
      %v1625 = vmul.f32 %v686, %v1597
      %v1626 = vmul.f32 %v637, %v1597
      %v1627 = vmul.f32 %v687, %v1597
      %v1628 = vmul.f32 %v640, %v1597
      %v1629 = vmul.f32 %v688, %v1597
      %v1630 = vadd.f32 %v1565, %v1598
      %v1631 = vadd.f32 %v1566, %v1599
      %v1632 = vadd.f32 %v1567, %v1600
      %v1633 = vadd.f32 %v1568, %v1601
      %v1634 = vadd.f32 %v1569, %v1602
      %v1635 = vadd.f32 %v1570, %v1603
      %v1636 = vadd.f32 %v1571, %v1604
      %v1637 = vadd.f32 %v1572, %v1605
      %v1638 = vadd.f32 %v1573, %v1606
      %v1639 = vadd.f32 %v1574, %v1607
      %v1640 = vadd.f32 %v1575, %v1608
      %v1641 = vadd.f32 %v1576, %v1609
      %v1642 = vadd.f32 %v1577, %v1610
      %v1643 = vadd.f32 %v1578, %v1611
      %v1644 = vadd.f32 %v1579, %v1612
      %v1645 = vadd.f32 %v1580, %v1613
      %v1646 = vadd.f32 %v1581, %v1614
      %v1647 = vadd.f32 %v1582, %v1615
      %v1648 = vadd.f32 %v1583, %v1616
      %v1649 = vadd.f32 %v1584, %v1617
      %v1650 = vadd.f32 %v1585, %v1618
      %v1651 = vadd.f32 %v1586, %v1619
      %v1652 = vadd.f32 %v1587, %v1620
      %v1653 = vadd.f32 %v1588, %v1621
      %v1654 = vadd.f32 %v1589, %v1622
      %v1655 = vadd.f32 %v1590, %v1623
      %v1656 = vadd.f32 %v1591, %v1624
      %v1657 = vadd.f32 %v1592, %v1625
      %v1658 = vadd.f32 %v1593, %v1626
      %v1659 = vadd.f32 %v1594, %v1627
      %v1660 = vadd.f32 %v1595, %v1628
      %v1661 = vadd.f32 %v1596, %v1629
      %v1662 = vadd.f32 %v1630, 0.0
      %v1663 = vadd.f32 %v1631, 0.0
      %v1664 = vadd.f32 %v1307, %v1632
      %v1665 = vadd.f32 %v1308, %v1633
      %v1666 = vadd.f32 %v1309, %v1634
      %v1667 = vadd.f32 %v1310, %v1635
      %v1668 = vadd.f32 %v1311, %v1636
      %v1669 = vadd.f32 %v1312, %v1637
      %v1670 = vadd.f32 %v1313, %v1638
      %v1671 = vadd.f32 %v1314, %v1639
      %v1672 = vadd.f32 %v1315, %v1640
      %v1673 = vadd.f32 %v1316, %v1641
      %v1674 = vadd.f32 %v1317, %v1642
      %v1675 = vadd.f32 %v1318, %v1643
      %v1676 = vadd.f32 %v1319, %v1644
      %v1677 = vadd.f32 %v1320, %v1645
      %v1678 = vadd.f32 %v1321, %v1646
      %v1679 = vadd.f32 %v1322, %v1647
      %v1680 = vadd.f32 %v1323, %v1648
      %v1681 = vadd.f32 %v1324, %v1649
      %v1682 = vadd.f32 %v1325, %v1650
      %v1683 = vadd.f32 %v1326, %v1651
      %v1684 = vadd.f32 %v1327, %v1652
      %v1685 = vadd.f32 %v1328, %v1653
      %v1686 = vadd.f32 %v1329, %v1654
      %v1687 = vadd.f32 %v1330, %v1655
      %v1688 = vadd.f32 %v1331, %v1656
      %v1689 = vadd.f32 %v1332, %v1657
      %v1690 = vadd.f32 %v1333, %v1658
      %v1691 = vadd.f32 %v1334, %v1659
      %v1692 = vadd.f32 %v1335, %v1660
      %v1693 = vadd.f32 %v1336, %v1661
      %v1694 = vperm.slane %v266, 7
      %v1695 = vmul.f32 %v383, %v1694
      %v1696 = vmul.f32 %v307, %v1694
      %v1697 = vmul.f32 %v384, %v1694
      %v1698 = vmul.f32 %v310, %v1694
      %v1699 = vmul.f32 %v385, %v1694
      %v1700 = vmul.f32 %v313, %v1694
      %v1701 = vmul.f32 %v386, %v1694
      %v1702 = vmul.f32 %v316, %v1694
      %v1703 = vmul.f32 %v387, %v1694
      %v1704 = vmul.f32 %v319, %v1694
      %v1705 = vmul.f32 %v388, %v1694
      %v1706 = vmul.f32 %v322, %v1694
      %v1707 = vmul.f32 %v389, %v1694
      %v1708 = vmul.f32 %v325, %v1694
      %v1709 = vmul.f32 %v390, %v1694
      %v1710 = vmul.f32 %v328, %v1694
      %v1711 = vmul.f32 %v391, %v1694
      %v1712 = vmul.f32 %v331, %v1694
      %v1713 = vmul.f32 %v392, %v1694
      %v1714 = vmul.f32 %v334, %v1694
      %v1715 = vmul.f32 %v393, %v1694
      %v1716 = vmul.f32 %v337, %v1694
      %v1717 = vmul.f32 %v394, %v1694
      %v1718 = vmul.f32 %v340, %v1694
      %v1719 = vmul.f32 %v395, %v1694
      %v1720 = vmul.f32 %v343, %v1694
      %v1721 = vmul.f32 %v396, %v1694
      %v1722 = vmul.f32 %v346, %v1694
      %v1723 = vmul.f32 %v397, %v1694
      %v1724 = vmul.f32 %v349, %v1694
      %v1725 = vadd.f32 %v1695, 0.0
      %v1726 = vadd.f32 %v1696, 0.0
      %v1727 = vadd.f32 %v1697, 0.0
      %v1728 = vadd.f32 %v1698, 0.0
      %v1729 = vadd.f32 %v1699, 0.0
      %v1730 = vadd.f32 %v1700, 0.0
      %v1731 = vadd.f32 %v1701, 0.0
      %v1732 = vadd.f32 %v1702, 0.0
      %v1733 = vadd.f32 %v1703, 0.0
      %v1734 = vadd.f32 %v1704, 0.0
      %v1735 = vadd.f32 %v1705, 0.0
      %v1736 = vadd.f32 %v1706, 0.0
      %v1737 = vadd.f32 %v1707, 0.0
      %v1738 = vadd.f32 %v1708, 0.0
      %v1739 = vadd.f32 %v1709, 0.0
      %v1740 = vadd.f32 %v1710, 0.0
      %v1741 = vadd.f32 %v1711, 0.0
      %v1742 = vadd.f32 %v1712, 0.0
      %v1743 = vadd.f32 %v1713, 0.0
      %v1744 = vadd.f32 %v1714, 0.0
      %v1745 = vadd.f32 %v1715, 0.0
      %v1746 = vadd.f32 %v1716, 0.0
      %v1747 = vadd.f32 %v1717, 0.0
      %v1748 = vadd.f32 %v1718, 0.0
      %v1749 = vadd.f32 %v1719, 0.0
      %v1750 = vadd.f32 %v1720, 0.0
      %v1751 = vadd.f32 %v1721, 0.0
      %v1752 = vadd.f32 %v1722, 0.0
      %v1753 = vadd.f32 %v1723, 0.0
      %v1754 = vadd.f32 %v1724, 0.0
      %v1755 = vperm.slane %v267, 0
      %v1756 = vmul.f32 %v480, %v1755
      %v1757 = vmul.f32 %v404, %v1755
      %v1758 = vmul.f32 %v481, %v1755
      %v1759 = vmul.f32 %v407, %v1755
      %v1760 = vmul.f32 %v482, %v1755
      %v1761 = vmul.f32 %v410, %v1755
      %v1762 = vmul.f32 %v483, %v1755
      %v1763 = vmul.f32 %v413, %v1755
      %v1764 = vmul.f32 %v484, %v1755
      %v1765 = vmul.f32 %v416, %v1755
      %v1766 = vmul.f32 %v485, %v1755
      %v1767 = vmul.f32 %v419, %v1755
      %v1768 = vmul.f32 %v486, %v1755
      %v1769 = vmul.f32 %v422, %v1755
      %v1770 = vmul.f32 %v487, %v1755
      %v1771 = vmul.f32 %v425, %v1755
      %v1772 = vmul.f32 %v488, %v1755
      %v1773 = vmul.f32 %v428, %v1755
      %v1774 = vmul.f32 %v489, %v1755
      %v1775 = vmul.f32 %v431, %v1755
      %v1776 = vmul.f32 %v490, %v1755
      %v1777 = vmul.f32 %v434, %v1755
      %v1778 = vmul.f32 %v491, %v1755
      %v1779 = vmul.f32 %v437, %v1755
      %v1780 = vmul.f32 %v492, %v1755
      %v1781 = vmul.f32 %v440, %v1755
      %v1782 = vmul.f32 %v493, %v1755
      %v1783 = vmul.f32 %v443, %v1755
      %v1784 = vmul.f32 %v494, %v1755
      %v1785 = vmul.f32 %v446, %v1755
      %v1786 = vadd.f32 %v1725, %v1756
      %v1787 = vadd.f32 %v1726, %v1757
      %v1788 = vadd.f32 %v1727, %v1758
      %v1789 = vadd.f32 %v1728, %v1759
      %v1790 = vadd.f32 %v1729, %v1760
      %v1791 = vadd.f32 %v1730, %v1761
      %v1792 = vadd.f32 %v1731, %v1762
      %v1793 = vadd.f32 %v1732, %v1763
      %v1794 = vadd.f32 %v1733, %v1764
      %v1795 = vadd.f32 %v1734, %v1765
      %v1796 = vadd.f32 %v1735, %v1766
      %v1797 = vadd.f32 %v1736, %v1767
      %v1798 = vadd.f32 %v1737, %v1768
      %v1799 = vadd.f32 %v1738, %v1769
      %v1800 = vadd.f32 %v1739, %v1770
      %v1801 = vadd.f32 %v1740, %v1771
      %v1802 = vadd.f32 %v1741, %v1772
      %v1803 = vadd.f32 %v1742, %v1773
      %v1804 = vadd.f32 %v1743, %v1774
      %v1805 = vadd.f32 %v1744, %v1775
      %v1806 = vadd.f32 %v1745, %v1776
      %v1807 = vadd.f32 %v1746, %v1777
      %v1808 = vadd.f32 %v1747, %v1778
      %v1809 = vadd.f32 %v1748, %v1779
      %v1810 = vadd.f32 %v1749, %v1780
      %v1811 = vadd.f32 %v1750, %v1781
      %v1812 = vadd.f32 %v1751, %v1782
      %v1813 = vadd.f32 %v1752, %v1783
      %v1814 = vadd.f32 %v1753, %v1784
      %v1815 = vadd.f32 %v1754, %v1785
      %v1816 = vperm.slane %v267, 1
      %v1817 = vmul.f32 %v235, %v1816
      %v1818 = vmul.f32 %v236, %v1816
      %v1819 = vmul.f32 %v237, %v1816
      %v1820 = vmul.f32 %v238, %v1816
      %v1821 = vmul.f32 %v239, %v1816
      %v1822 = vmul.f32 %v240, %v1816
      %v1823 = vmul.f32 %v241, %v1816
      %v1824 = vmul.f32 %v242, %v1816
      %v1825 = vmul.f32 %v243, %v1816
      %v1826 = vmul.f32 %v244, %v1816
      %v1827 = vmul.f32 %v245, %v1816
      %v1828 = vmul.f32 %v246, %v1816
      %v1829 = vmul.f32 %v247, %v1816
      %v1830 = vmul.f32 %v248, %v1816
      %v1831 = vmul.f32 %v249, %v1816
      %v1832 = vmul.f32 %v250, %v1816
      %v1833 = vmul.f32 %v251, %v1816
      %v1834 = vmul.f32 %v252, %v1816
      %v1835 = vmul.f32 %v253, %v1816
      %v1836 = vmul.f32 %v254, %v1816
      %v1837 = vmul.f32 %v255, %v1816
      %v1838 = vmul.f32 %v256, %v1816
      %v1839 = vmul.f32 %v257, %v1816
      %v1840 = vmul.f32 %v258, %v1816
      %v1841 = vmul.f32 %v259, %v1816
      %v1842 = vmul.f32 %v260, %v1816
      %v1843 = vmul.f32 %v261, %v1816
      %v1844 = vmul.f32 %v262, %v1816
      %v1845 = vmul.f32 %v263, %v1816
      %v1846 = vmul.f32 %v264, %v1816
      %v1847 = vadd.f32 %v1786, %v1817
      %v1848 = vadd.f32 %v1787, %v1818
      %v1849 = vadd.f32 %v1788, %v1819
      %v1850 = vadd.f32 %v1789, %v1820
      %v1851 = vadd.f32 %v1790, %v1821
      %v1852 = vadd.f32 %v1791, %v1822
      %v1853 = vadd.f32 %v1792, %v1823
      %v1854 = vadd.f32 %v1793, %v1824
      %v1855 = vadd.f32 %v1794, %v1825
      %v1856 = vadd.f32 %v1795, %v1826
      %v1857 = vadd.f32 %v1796, %v1827
      %v1858 = vadd.f32 %v1797, %v1828
      %v1859 = vadd.f32 %v1798, %v1829
      %v1860 = vadd.f32 %v1799, %v1830
      %v1861 = vadd.f32 %v1800, %v1831
      %v1862 = vadd.f32 %v1801, %v1832
      %v1863 = vadd.f32 %v1802, %v1833
      %v1864 = vadd.f32 %v1803, %v1834
      %v1865 = vadd.f32 %v1804, %v1835
      %v1866 = vadd.f32 %v1805, %v1836
      %v1867 = vadd.f32 %v1806, %v1837
      %v1868 = vadd.f32 %v1807, %v1838
      %v1869 = vadd.f32 %v1808, %v1839
      %v1870 = vadd.f32 %v1809, %v1840
      %v1871 = vadd.f32 %v1810, %v1841
      %v1872 = vadd.f32 %v1811, %v1842
      %v1873 = vadd.f32 %v1812, %v1843
      %v1874 = vadd.f32 %v1813, %v1844
      %v1875 = vadd.f32 %v1814, %v1845
      %v1876 = vadd.f32 %v1815, %v1846
      %v1877 = vperm.slane %v267, 2
      %v1878 = vmul.f32 %v501, %v1877
      %v1879 = vmul.f32 %v577, %v1877
      %v1880 = vmul.f32 %v504, %v1877
      %v1881 = vmul.f32 %v578, %v1877
      %v1882 = vmul.f32 %v507, %v1877
      %v1883 = vmul.f32 %v579, %v1877
      %v1884 = vmul.f32 %v510, %v1877
      %v1885 = vmul.f32 %v580, %v1877
      %v1886 = vmul.f32 %v513, %v1877
      %v1887 = vmul.f32 %v581, %v1877
      %v1888 = vmul.f32 %v516, %v1877
      %v1889 = vmul.f32 %v582, %v1877
      %v1890 = vmul.f32 %v519, %v1877
      %v1891 = vmul.f32 %v583, %v1877
      %v1892 = vmul.f32 %v522, %v1877
      %v1893 = vmul.f32 %v584, %v1877
      %v1894 = vmul.f32 %v525, %v1877
      %v1895 = vmul.f32 %v585, %v1877
      %v1896 = vmul.f32 %v528, %v1877
      %v1897 = vmul.f32 %v586, %v1877
      %v1898 = vmul.f32 %v531, %v1877
      %v1899 = vmul.f32 %v587, %v1877
      %v1900 = vmul.f32 %v534, %v1877
      %v1901 = vmul.f32 %v588, %v1877
      %v1902 = vmul.f32 %v537, %v1877
      %v1903 = vmul.f32 %v589, %v1877
      %v1904 = vmul.f32 %v540, %v1877
      %v1905 = vmul.f32 %v590, %v1877
      %v1906 = vmul.f32 %v543, %v1877
      %v1907 = vmul.f32 %v591, %v1877
      %v1908 = vadd.f32 %v1847, %v1878
      %v1909 = vadd.f32 %v1848, %v1879
      %v1910 = vadd.f32 %v1849, %v1880
      %v1911 = vadd.f32 %v1850, %v1881
      %v1912 = vadd.f32 %v1851, %v1882
      %v1913 = vadd.f32 %v1852, %v1883
      %v1914 = vadd.f32 %v1853, %v1884
      %v1915 = vadd.f32 %v1854, %v1885
      %v1916 = vadd.f32 %v1855, %v1886
      %v1917 = vadd.f32 %v1856, %v1887
      %v1918 = vadd.f32 %v1857, %v1888
      %v1919 = vadd.f32 %v1858, %v1889
      %v1920 = vadd.f32 %v1859, %v1890
      %v1921 = vadd.f32 %v1860, %v1891
      %v1922 = vadd.f32 %v1861, %v1892
      %v1923 = vadd.f32 %v1862, %v1893
      %v1924 = vadd.f32 %v1863, %v1894
      %v1925 = vadd.f32 %v1864, %v1895
      %v1926 = vadd.f32 %v1865, %v1896
      %v1927 = vadd.f32 %v1866, %v1897
      %v1928 = vadd.f32 %v1867, %v1898
      %v1929 = vadd.f32 %v1868, %v1899
      %v1930 = vadd.f32 %v1869, %v1900
      %v1931 = vadd.f32 %v1870, %v1901
      %v1932 = vadd.f32 %v1871, %v1902
      %v1933 = vadd.f32 %v1872, %v1903
      %v1934 = vadd.f32 %v1873, %v1904
      %v1935 = vadd.f32 %v1874, %v1905
      %v1936 = vadd.f32 %v1875, %v1906
      %v1937 = vadd.f32 %v1876, %v1907
      %v1938 = vperm.slane %v267, 3
      %v1939 = vmul.f32 %v598, %v1938
      %v1940 = vmul.f32 %v674, %v1938
      %v1941 = vmul.f32 %v601, %v1938
      %v1942 = vmul.f32 %v675, %v1938
      %v1943 = vmul.f32 %v604, %v1938
      %v1944 = vmul.f32 %v676, %v1938
      %v1945 = vmul.f32 %v607, %v1938
      %v1946 = vmul.f32 %v677, %v1938
      %v1947 = vmul.f32 %v610, %v1938
      %v1948 = vmul.f32 %v678, %v1938
      %v1949 = vmul.f32 %v613, %v1938
      %v1950 = vmul.f32 %v679, %v1938
      %v1951 = vmul.f32 %v616, %v1938
      %v1952 = vmul.f32 %v680, %v1938
      %v1953 = vmul.f32 %v619, %v1938
      %v1954 = vmul.f32 %v681, %v1938
      %v1955 = vmul.f32 %v622, %v1938
      %v1956 = vmul.f32 %v682, %v1938
      %v1957 = vmul.f32 %v625, %v1938
      %v1958 = vmul.f32 %v683, %v1938
      %v1959 = vmul.f32 %v628, %v1938
      %v1960 = vmul.f32 %v684, %v1938
      %v1961 = vmul.f32 %v631, %v1938
      %v1962 = vmul.f32 %v685, %v1938
      %v1963 = vmul.f32 %v634, %v1938
      %v1964 = vmul.f32 %v686, %v1938
      %v1965 = vmul.f32 %v637, %v1938
      %v1966 = vmul.f32 %v687, %v1938
      %v1967 = vmul.f32 %v640, %v1938
      %v1968 = vmul.f32 %v688, %v1938
      %v1969 = vadd.f32 %v1908, %v1939
      %v1970 = vadd.f32 %v1909, %v1940
      %v1971 = vadd.f32 %v1910, %v1941
      %v1972 = vadd.f32 %v1911, %v1942
      %v1973 = vadd.f32 %v1912, %v1943
      %v1974 = vadd.f32 %v1913, %v1944
      %v1975 = vadd.f32 %v1914, %v1945
      %v1976 = vadd.f32 %v1915, %v1946
      %v1977 = vadd.f32 %v1916, %v1947
      %v1978 = vadd.f32 %v1917, %v1948
      %v1979 = vadd.f32 %v1918, %v1949
      %v1980 = vadd.f32 %v1919, %v1950
      %v1981 = vadd.f32 %v1920, %v1951
      %v1982 = vadd.f32 %v1921, %v1952
      %v1983 = vadd.f32 %v1922, %v1953
      %v1984 = vadd.f32 %v1923, %v1954
      %v1985 = vadd.f32 %v1924, %v1955
      %v1986 = vadd.f32 %v1925, %v1956
      %v1987 = vadd.f32 %v1926, %v1957
      %v1988 = vadd.f32 %v1927, %v1958
      %v1989 = vadd.f32 %v1928, %v1959
      %v1990 = vadd.f32 %v1929, %v1960
      %v1991 = vadd.f32 %v1930, %v1961
      %v1992 = vadd.f32 %v1931, %v1962
      %v1993 = vadd.f32 %v1932, %v1963
      %v1994 = vadd.f32 %v1933, %v1964
      %v1995 = vadd.f32 %v1934, %v1965
      %v1996 = vadd.f32 %v1935, %v1966
      %v1997 = vadd.f32 %v1936, %v1967
      %v1998 = vadd.f32 %v1937, %v1968
      %v1999 = vadd.f32 %v1662, %v1969
      %v2000 = vadd.f32 %v1663, %v1970
      %v2001 = vadd.f32 %v1664, %v1971
      %v2002 = vadd.f32 %v1665, %v1972
      %v2003 = vadd.f32 %v1666, %v1973
      %v2004 = vadd.f32 %v1667, %v1974
      %v2005 = vadd.f32 %v1668, %v1975
      %v2006 = vadd.f32 %v1669, %v1976
      %v2007 = vadd.f32 %v1670, %v1977
      %v2008 = vadd.f32 %v1671, %v1978
      %v2009 = vadd.f32 %v1672, %v1979
      %v2010 = vadd.f32 %v1673, %v1980
      %v2011 = vadd.f32 %v1674, %v1981
      %v2012 = vadd.f32 %v1675, %v1982
      %v2013 = vadd.f32 %v1676, %v1983
      %v2014 = vadd.f32 %v1677, %v1984
      %v2015 = vadd.f32 %v1678, %v1985
      %v2016 = vadd.f32 %v1679, %v1986
      %v2017 = vadd.f32 %v1680, %v1987
      %v2018 = vadd.f32 %v1681, %v1988
      %v2019 = vadd.f32 %v1682, %v1989
      %v2020 = vadd.f32 %v1683, %v1990
      %v2021 = vadd.f32 %v1684, %v1991
      %v2022 = vadd.f32 %v1685, %v1992
      %v2023 = vadd.f32 %v1686, %v1993
      %v2024 = vadd.f32 %v1687, %v1994
      %v2025 = vadd.f32 %v1688, %v1995
      %v2026 = vadd.f32 %v1689, %v1996
      %v2027 = vadd.f32 %v1690, %v1997
      %v2028 = vadd.f32 %v1691, %v1998
      %v2029 = vadd.f32 %v1692, 0.0
      %v2030 = vadd.f32 %v1693, 0.0
      %v2031 = vperm.slane %v267, 4
      %v2032 = vmul.f32 %v384, %v2031
      %v2033 = vmul.f32 %v310, %v2031
      %v2034 = vmul.f32 %v385, %v2031
      %v2035 = vmul.f32 %v313, %v2031
      %v2036 = vmul.f32 %v386, %v2031
      %v2037 = vmul.f32 %v316, %v2031
      %v2038 = vmul.f32 %v387, %v2031
      %v2039 = vmul.f32 %v319, %v2031
      %v2040 = vmul.f32 %v388, %v2031
      %v2041 = vmul.f32 %v322, %v2031
      %v2042 = vmul.f32 %v389, %v2031
      %v2043 = vmul.f32 %v325, %v2031
      %v2044 = vmul.f32 %v390, %v2031
      %v2045 = vmul.f32 %v328, %v2031
      %v2046 = vmul.f32 %v391, %v2031
      %v2047 = vmul.f32 %v331, %v2031
      %v2048 = vmul.f32 %v392, %v2031
      %v2049 = vmul.f32 %v334, %v2031
      %v2050 = vmul.f32 %v393, %v2031
      %v2051 = vmul.f32 %v337, %v2031
      %v2052 = vmul.f32 %v394, %v2031
      %v2053 = vmul.f32 %v340, %v2031
      %v2054 = vmul.f32 %v395, %v2031
      %v2055 = vmul.f32 %v343, %v2031
      %v2056 = vmul.f32 %v396, %v2031
      %v2057 = vmul.f32 %v346, %v2031
      %v2058 = vmul.f32 %v397, %v2031
      %v2059 = vmul.f32 %v349, %v2031
      %v2060 = vadd.f32 %v2032, 0.0
      %v2061 = vadd.f32 %v2033, 0.0
      %v2062 = vadd.f32 %v2034, 0.0
      %v2063 = vadd.f32 %v2035, 0.0
      %v2064 = vadd.f32 %v2036, 0.0
      %v2065 = vadd.f32 %v2037, 0.0
      %v2066 = vadd.f32 %v2038, 0.0
      %v2067 = vadd.f32 %v2039, 0.0
      %v2068 = vadd.f32 %v2040, 0.0
      %v2069 = vadd.f32 %v2041, 0.0
      %v2070 = vadd.f32 %v2042, 0.0
      %v2071 = vadd.f32 %v2043, 0.0
      %v2072 = vadd.f32 %v2044, 0.0
      %v2073 = vadd.f32 %v2045, 0.0
      %v2074 = vadd.f32 %v2046, 0.0
      %v2075 = vadd.f32 %v2047, 0.0
      %v2076 = vadd.f32 %v2048, 0.0
      %v2077 = vadd.f32 %v2049, 0.0
      %v2078 = vadd.f32 %v2050, 0.0
      %v2079 = vadd.f32 %v2051, 0.0
      %v2080 = vadd.f32 %v2052, 0.0
      %v2081 = vadd.f32 %v2053, 0.0
      %v2082 = vadd.f32 %v2054, 0.0
      %v2083 = vadd.f32 %v2055, 0.0
      %v2084 = vadd.f32 %v2056, 0.0
      %v2085 = vadd.f32 %v2057, 0.0
      %v2086 = vadd.f32 %v2058, 0.0
      %v2087 = vadd.f32 %v2059, 0.0
      %v2088 = vperm.slane %v267, 5
      %v2089 = vmul.f32 %v481, %v2088
      %v2090 = vmul.f32 %v407, %v2088
      %v2091 = vmul.f32 %v482, %v2088
      %v2092 = vmul.f32 %v410, %v2088
      %v2093 = vmul.f32 %v483, %v2088
      %v2094 = vmul.f32 %v413, %v2088
      %v2095 = vmul.f32 %v484, %v2088
      %v2096 = vmul.f32 %v416, %v2088
      %v2097 = vmul.f32 %v485, %v2088
      %v2098 = vmul.f32 %v419, %v2088
      %v2099 = vmul.f32 %v486, %v2088
      %v2100 = vmul.f32 %v422, %v2088
      %v2101 = vmul.f32 %v487, %v2088
      %v2102 = vmul.f32 %v425, %v2088
      %v2103 = vmul.f32 %v488, %v2088
      %v2104 = vmul.f32 %v428, %v2088
      %v2105 = vmul.f32 %v489, %v2088
      %v2106 = vmul.f32 %v431, %v2088
      %v2107 = vmul.f32 %v490, %v2088
      %v2108 = vmul.f32 %v434, %v2088
      %v2109 = vmul.f32 %v491, %v2088
      %v2110 = vmul.f32 %v437, %v2088
      %v2111 = vmul.f32 %v492, %v2088
      %v2112 = vmul.f32 %v440, %v2088
      %v2113 = vmul.f32 %v493, %v2088
      %v2114 = vmul.f32 %v443, %v2088
      %v2115 = vmul.f32 %v494, %v2088
      %v2116 = vmul.f32 %v446, %v2088
      %v2117 = vadd.f32 %v2060, %v2089
      %v2118 = vadd.f32 %v2061, %v2090
      %v2119 = vadd.f32 %v2062, %v2091
      %v2120 = vadd.f32 %v2063, %v2092
      %v2121 = vadd.f32 %v2064, %v2093
      %v2122 = vadd.f32 %v2065, %v2094
      %v2123 = vadd.f32 %v2066, %v2095
      %v2124 = vadd.f32 %v2067, %v2096
      %v2125 = vadd.f32 %v2068, %v2097
      %v2126 = vadd.f32 %v2069, %v2098
      %v2127 = vadd.f32 %v2070, %v2099
      %v2128 = vadd.f32 %v2071, %v2100
      %v2129 = vadd.f32 %v2072, %v2101
      %v2130 = vadd.f32 %v2073, %v2102
      %v2131 = vadd.f32 %v2074, %v2103
      %v2132 = vadd.f32 %v2075, %v2104
      %v2133 = vadd.f32 %v2076, %v2105
      %v2134 = vadd.f32 %v2077, %v2106
      %v2135 = vadd.f32 %v2078, %v2107
      %v2136 = vadd.f32 %v2079, %v2108
      %v2137 = vadd.f32 %v2080, %v2109
      %v2138 = vadd.f32 %v2081, %v2110
      %v2139 = vadd.f32 %v2082, %v2111
      %v2140 = vadd.f32 %v2083, %v2112
      %v2141 = vadd.f32 %v2084, %v2113
      %v2142 = vadd.f32 %v2085, %v2114
      %v2143 = vadd.f32 %v2086, %v2115
      %v2144 = vadd.f32 %v2087, %v2116
      %v2145 = vperm.slane %v267, 6
      %v2146 = vmul.f32 %v237, %v2145
      %v2147 = vmul.f32 %v238, %v2145
      %v2148 = vmul.f32 %v239, %v2145
      %v2149 = vmul.f32 %v240, %v2145
      %v2150 = vmul.f32 %v241, %v2145
      %v2151 = vmul.f32 %v242, %v2145
      %v2152 = vmul.f32 %v243, %v2145
      %v2153 = vmul.f32 %v244, %v2145
      %v2154 = vmul.f32 %v245, %v2145
      %v2155 = vmul.f32 %v246, %v2145
      %v2156 = vmul.f32 %v247, %v2145
      %v2157 = vmul.f32 %v248, %v2145
      %v2158 = vmul.f32 %v249, %v2145
      %v2159 = vmul.f32 %v250, %v2145
      %v2160 = vmul.f32 %v251, %v2145
      %v2161 = vmul.f32 %v252, %v2145
      %v2162 = vmul.f32 %v253, %v2145
      %v2163 = vmul.f32 %v254, %v2145
      %v2164 = vmul.f32 %v255, %v2145
      %v2165 = vmul.f32 %v256, %v2145
      %v2166 = vmul.f32 %v257, %v2145
      %v2167 = vmul.f32 %v258, %v2145
      %v2168 = vmul.f32 %v259, %v2145
      %v2169 = vmul.f32 %v260, %v2145
      %v2170 = vmul.f32 %v261, %v2145
      %v2171 = vmul.f32 %v262, %v2145
      %v2172 = vmul.f32 %v263, %v2145
      %v2173 = vmul.f32 %v264, %v2145
      %v2174 = vadd.f32 %v2117, %v2146
      %v2175 = vadd.f32 %v2118, %v2147
      %v2176 = vadd.f32 %v2119, %v2148
      %v2177 = vadd.f32 %v2120, %v2149
      %v2178 = vadd.f32 %v2121, %v2150
      %v2179 = vadd.f32 %v2122, %v2151
      %v2180 = vadd.f32 %v2123, %v2152
      %v2181 = vadd.f32 %v2124, %v2153
      %v2182 = vadd.f32 %v2125, %v2154
      %v2183 = vadd.f32 %v2126, %v2155
      %v2184 = vadd.f32 %v2127, %v2156
      %v2185 = vadd.f32 %v2128, %v2157
      %v2186 = vadd.f32 %v2129, %v2158
      %v2187 = vadd.f32 %v2130, %v2159
      %v2188 = vadd.f32 %v2131, %v2160
      %v2189 = vadd.f32 %v2132, %v2161
      %v2190 = vadd.f32 %v2133, %v2162
      %v2191 = vadd.f32 %v2134, %v2163
      %v2192 = vadd.f32 %v2135, %v2164
      %v2193 = vadd.f32 %v2136, %v2165
      %v2194 = vadd.f32 %v2137, %v2166
      %v2195 = vadd.f32 %v2138, %v2167
      %v2196 = vadd.f32 %v2139, %v2168
      %v2197 = vadd.f32 %v2140, %v2169
      %v2198 = vadd.f32 %v2141, %v2170
      %v2199 = vadd.f32 %v2142, %v2171
      %v2200 = vadd.f32 %v2143, %v2172
      %v2201 = vadd.f32 %v2144, %v2173
      %v2202 = vperm.slane %v267, 7
      %v2203 = vmul.f32 %v504, %v2202
      %v2204 = vmul.f32 %v578, %v2202
      %v2205 = vmul.f32 %v507, %v2202
      %v2206 = vmul.f32 %v579, %v2202
      %v2207 = vmul.f32 %v510, %v2202
      %v2208 = vmul.f32 %v580, %v2202
      %v2209 = vmul.f32 %v513, %v2202
      %v2210 = vmul.f32 %v581, %v2202
      %v2211 = vmul.f32 %v516, %v2202
      %v2212 = vmul.f32 %v582, %v2202
      %v2213 = vmul.f32 %v519, %v2202
      %v2214 = vmul.f32 %v583, %v2202
      %v2215 = vmul.f32 %v522, %v2202
      %v2216 = vmul.f32 %v584, %v2202
      %v2217 = vmul.f32 %v525, %v2202
      %v2218 = vmul.f32 %v585, %v2202
      %v2219 = vmul.f32 %v528, %v2202
      %v2220 = vmul.f32 %v586, %v2202
      %v2221 = vmul.f32 %v531, %v2202
      %v2222 = vmul.f32 %v587, %v2202
      %v2223 = vmul.f32 %v534, %v2202
      %v2224 = vmul.f32 %v588, %v2202
      %v2225 = vmul.f32 %v537, %v2202
      %v2226 = vmul.f32 %v589, %v2202
      %v2227 = vmul.f32 %v540, %v2202
      %v2228 = vmul.f32 %v590, %v2202
      %v2229 = vmul.f32 %v543, %v2202
      %v2230 = vmul.f32 %v591, %v2202
      %v2231 = vadd.f32 %v2174, %v2203
      %v2232 = vadd.f32 %v2175, %v2204
      %v2233 = vadd.f32 %v2176, %v2205
      %v2234 = vadd.f32 %v2177, %v2206
      %v2235 = vadd.f32 %v2178, %v2207
      %v2236 = vadd.f32 %v2179, %v2208
      %v2237 = vadd.f32 %v2180, %v2209
      %v2238 = vadd.f32 %v2181, %v2210
      %v2239 = vadd.f32 %v2182, %v2211
      %v2240 = vadd.f32 %v2183, %v2212
      %v2241 = vadd.f32 %v2184, %v2213
      %v2242 = vadd.f32 %v2185, %v2214
      %v2243 = vadd.f32 %v2186, %v2215
      %v2244 = vadd.f32 %v2187, %v2216
      %v2245 = vadd.f32 %v2188, %v2217
      %v2246 = vadd.f32 %v2189, %v2218
      %v2247 = vadd.f32 %v2190, %v2219
      %v2248 = vadd.f32 %v2191, %v2220
      %v2249 = vadd.f32 %v2192, %v2221
      %v2250 = vadd.f32 %v2193, %v2222
      %v2251 = vadd.f32 %v2194, %v2223
      %v2252 = vadd.f32 %v2195, %v2224
      %v2253 = vadd.f32 %v2196, %v2225
      %v2254 = vadd.f32 %v2197, %v2226
      %v2255 = vadd.f32 %v2198, %v2227
      %v2256 = vadd.f32 %v2199, %v2228
      %v2257 = vadd.f32 %v2200, %v2229
      %v2258 = vadd.f32 %v2201, %v2230
      %v2259 = vperm.slane %v268, 0
      %v2260 = vmul.f32 %v601, %v2259
      %v2261 = vmul.f32 %v675, %v2259
      %v2262 = vmul.f32 %v604, %v2259
      %v2263 = vmul.f32 %v676, %v2259
      %v2264 = vmul.f32 %v607, %v2259
      %v2265 = vmul.f32 %v677, %v2259
      %v2266 = vmul.f32 %v610, %v2259
      %v2267 = vmul.f32 %v678, %v2259
      %v2268 = vmul.f32 %v613, %v2259
      %v2269 = vmul.f32 %v679, %v2259
      %v2270 = vmul.f32 %v616, %v2259
      %v2271 = vmul.f32 %v680, %v2259
      %v2272 = vmul.f32 %v619, %v2259
      %v2273 = vmul.f32 %v681, %v2259
      %v2274 = vmul.f32 %v622, %v2259
      %v2275 = vmul.f32 %v682, %v2259
      %v2276 = vmul.f32 %v625, %v2259
      %v2277 = vmul.f32 %v683, %v2259
      %v2278 = vmul.f32 %v628, %v2259
      %v2279 = vmul.f32 %v684, %v2259
      %v2280 = vmul.f32 %v631, %v2259
      %v2281 = vmul.f32 %v685, %v2259
      %v2282 = vmul.f32 %v634, %v2259
      %v2283 = vmul.f32 %v686, %v2259
      %v2284 = vmul.f32 %v637, %v2259
      %v2285 = vmul.f32 %v687, %v2259
      %v2286 = vmul.f32 %v640, %v2259
      %v2287 = vmul.f32 %v688, %v2259
      %v2288 = vadd.f32 %v2231, %v2260
      %v2289 = vadd.f32 %v2232, %v2261
      %v2290 = vadd.f32 %v2233, %v2262
      %v2291 = vadd.f32 %v2234, %v2263
      %v2292 = vadd.f32 %v2235, %v2264
      %v2293 = vadd.f32 %v2236, %v2265
      %v2294 = vadd.f32 %v2237, %v2266
      %v2295 = vadd.f32 %v2238, %v2267
      %v2296 = vadd.f32 %v2239, %v2268
      %v2297 = vadd.f32 %v2240, %v2269
      %v2298 = vadd.f32 %v2241, %v2270
      %v2299 = vadd.f32 %v2242, %v2271
      %v2300 = vadd.f32 %v2243, %v2272
      %v2301 = vadd.f32 %v2244, %v2273
      %v2302 = vadd.f32 %v2245, %v2274
      %v2303 = vadd.f32 %v2246, %v2275
      %v2304 = vadd.f32 %v2247, %v2276
      %v2305 = vadd.f32 %v2248, %v2277
      %v2306 = vadd.f32 %v2249, %v2278
      %v2307 = vadd.f32 %v2250, %v2279
      %v2308 = vadd.f32 %v2251, %v2280
      %v2309 = vadd.f32 %v2252, %v2281
      %v2310 = vadd.f32 %v2253, %v2282
      %v2311 = vadd.f32 %v2254, %v2283
      %v2312 = vadd.f32 %v2255, %v2284
      %v2313 = vadd.f32 %v2256, %v2285
      %v2314 = vadd.f32 %v2257, %v2286
      %v2315 = vadd.f32 %v2258, %v2287
      %v2316 = vadd.f32 %v1999, %v2288
      %v2317 = vadd.f32 %v2000, %v2289
      %v2318 = vadd.f32 %v2001, %v2290
      %v2319 = vadd.f32 %v2002, %v2291
      %v2320 = vadd.f32 %v2003, %v2292
      %v2321 = vadd.f32 %v2004, %v2293
      %v2322 = vadd.f32 %v2005, %v2294
      %v2323 = vadd.f32 %v2006, %v2295
      %v2324 = vadd.f32 %v2007, %v2296
      %v2325 = vadd.f32 %v2008, %v2297
      %v2326 = vadd.f32 %v2009, %v2298
      %v2327 = vadd.f32 %v2010, %v2299
      %v2328 = vadd.f32 %v2011, %v2300
      %v2329 = vadd.f32 %v2012, %v2301
      %v2330 = vadd.f32 %v2013, %v2302
      %v2331 = vadd.f32 %v2014, %v2303
      %v2332 = vadd.f32 %v2015, %v2304
      %v2333 = vadd.f32 %v2016, %v2305
      %v2334 = vadd.f32 %v2017, %v2306
      %v2335 = vadd.f32 %v2018, %v2307
      %v2336 = vadd.f32 %v2019, %v2308
      %v2337 = vadd.f32 %v2020, %v2309
      %v2338 = vadd.f32 %v2021, %v2310
      %v2339 = vadd.f32 %v2022, %v2311
      %v2340 = vadd.f32 %v2023, %v2312
      %v2341 = vadd.f32 %v2024, %v2313
      %v2342 = vadd.f32 %v2025, %v2314
      %v2343 = vadd.f32 %v2026, %v2315
      %v2344 = vadd.f32 %v2027, 0.0
      %v2345 = vadd.f32 %v2028, 0.0
      %v2346 = vadd.f32 %v2029, 0.0
      %v2347 = vadd.f32 %v2030, 0.0
      %v2348 = vld [vmem:[%s224] sm:$0x1]
      %v2350 = vperm.slane %v2348, 0
      %v2352 = vadd.f32 %v2316, %v2350
      %v2353 = vadd.f32 %v2317, %v2350
      %v2354 = vadd.f32 %v2318, %v2350
      %v2355 = vadd.f32 %v2319, %v2350
      %v2356 = vadd.f32 %v2320, %v2350
      %v2357 = vadd.f32 %v2321, %v2350
      %v2358 = vadd.f32 %v2322, %v2350
      %v2359 = vadd.f32 %v2323, %v2350
      %v2360 = vadd.f32 %v2324, %v2350
      %v2361 = vadd.f32 %v2325, %v2350
      %v2362 = vadd.f32 %v2326, %v2350
      %v2363 = vadd.f32 %v2327, %v2350
      %v2364 = vadd.f32 %v2328, %v2350
      %v2365 = vadd.f32 %v2329, %v2350
      %v2366 = vadd.f32 %v2330, %v2350
      %v2367 = vadd.f32 %v2331, %v2350
      %v2368 = vadd.f32 %v2332, %v2350
      %v2369 = vadd.f32 %v2333, %v2350
      %v2370 = vadd.f32 %v2334, %v2350
      %v2371 = vadd.f32 %v2335, %v2350
      %v2372 = vadd.f32 %v2336, %v2350
      %v2373 = vadd.f32 %v2337, %v2350
      %v2374 = vadd.f32 %v2338, %v2350
      %v2375 = vadd.f32 %v2339, %v2350
      %v2376 = vadd.f32 %v2340, %v2350
      %v2377 = vadd.f32 %v2341, %v2350
      %v2378 = vadd.f32 %v2342, %v2350
      %v2379 = vadd.f32 %v2343, %v2350
      %v2380 = vadd.f32 %v2344, %v2350
      %v2381 = vadd.f32 %v2345, %v2350
      %v2382 = vadd.f32 %v2346, %v2350
      %v2383 = vadd.f32 %v2347, %v2350
      %v2384 = vxor.u32 %v2352, 2147483648
      %v2385 = vxor.u32 %v2353, 2147483648
      %v2386 = vxor.u32 %v2354, 2147483648
      %v2387 = vxor.u32 %v2355, 2147483648
      %v2388 = vxor.u32 %v2356, 2147483648
      %v2389 = vxor.u32 %v2357, 2147483648
      %v2390 = vxor.u32 %v2358, 2147483648
      %v2391 = vxor.u32 %v2359, 2147483648
      %v2392 = vxor.u32 %v2360, 2147483648
      %v2393 = vxor.u32 %v2361, 2147483648
      %v2394 = vxor.u32 %v2362, 2147483648
      %v2395 = vxor.u32 %v2363, 2147483648
      %v2396 = vxor.u32 %v2364, 2147483648
      %v2397 = vxor.u32 %v2365, 2147483648
      %v2398 = vxor.u32 %v2366, 2147483648
      %v2399 = vxor.u32 %v2367, 2147483648
      %v2400 = vxor.u32 %v2368, 2147483648
      %v2401 = vxor.u32 %v2369, 2147483648
      %v2402 = vxor.u32 %v2370, 2147483648
      %v2403 = vxor.u32 %v2371, 2147483648
      %v2404 = vxor.u32 %v2372, 2147483648
      %v2405 = vxor.u32 %v2373, 2147483648
      %v2406 = vxor.u32 %v2374, 2147483648
      %v2407 = vxor.u32 %v2375, 2147483648
      %v2408 = vxor.u32 %v2376, 2147483648
      %v2409 = vxor.u32 %v2377, 2147483648
      %v2410 = vxor.u32 %v2378, 2147483648
      %v2411 = vxor.u32 %v2379, 2147483648
      %v2412 = vxor.u32 %v2380, 2147483648
      %v2413 = vxor.u32 %v2381, 2147483648
      %v2414 = vxor.u32 %v2382, 2147483648
      %v2415 = vxor.u32 %v2383, 2147483648
      %v2416 = vmul.f32 %v2384, 1.442695
      %v2417 = vpow.pop %v2416
      %v2418 = vmul.f32 %v2385, 1.442695
      %v2419 = vpow.pop %v2418
      %v2420 = vmul.f32 %v2386, 1.442695
      %v2421 = vpow.pop %v2420
      %v2422 = vmul.f32 %v2387, 1.442695
      %v2423 = vpow.pop %v2422
      %v2424 = vmul.f32 %v2388, 1.442695
      %v2425 = vpow.pop %v2424
      %v2426 = vmul.f32 %v2389, 1.442695
      %v2427 = vpow.pop %v2426
      %v2428 = vmul.f32 %v2390, 1.442695
      %v2429 = vpow.pop %v2428
      %v2430 = vmul.f32 %v2391, 1.442695
      %v2431 = vpow.pop %v2430
      %v2432 = vmul.f32 %v2392, 1.442695
      %v2433 = vpow.pop %v2432
      %v2434 = vmul.f32 %v2393, 1.442695
      %v2435 = vpow.pop %v2434
      %v2436 = vmul.f32 %v2394, 1.442695
      %v2437 = vpow.pop %v2436
      %v2438 = vmul.f32 %v2395, 1.442695
      %v2439 = vpow.pop %v2438
      %v2440 = vmul.f32 %v2396, 1.442695
      %v2441 = vpow.pop %v2440
      %v2442 = vmul.f32 %v2397, 1.442695
      %v2443 = vpow.pop %v2442
      %v2444 = vmul.f32 %v2398, 1.442695
      %v2445 = vpow.pop %v2444
      %v2446 = vmul.f32 %v2399, 1.442695
      %v2447 = vpow.pop %v2446
      %v2448 = vmul.f32 %v2400, 1.442695
      %v2449 = vpow.pop %v2448
      %v2450 = vmul.f32 %v2401, 1.442695
      %v2451 = vpow.pop %v2450
      %v2452 = vmul.f32 %v2402, 1.442695
      %v2453 = vpow.pop %v2452
      %v2454 = vmul.f32 %v2403, 1.442695
      %v2455 = vpow.pop %v2454
      %v2456 = vmul.f32 %v2404, 1.442695
      %v2457 = vpow.pop %v2456
      %v2458 = vmul.f32 %v2405, 1.442695
      %v2459 = vpow.pop %v2458
      %v2460 = vmul.f32 %v2406, 1.442695
      %v2461 = vpow.pop %v2460
      %v2462 = vmul.f32 %v2407, 1.442695
      %v2463 = vpow.pop %v2462
      %v2464 = vmul.f32 %v2408, 1.442695
      %v2465 = vpow.pop %v2464
      %v2466 = vmul.f32 %v2409, 1.442695
      %v2467 = vpow.pop %v2466
      %v2468 = vmul.f32 %v2410, 1.442695
      %v2469 = vpow.pop %v2468
      %v2470 = vmul.f32 %v2411, 1.442695
      %v2471 = vpow.pop %v2470
      %v2472 = vmul.f32 %v2412, 1.442695
      %v2473 = vpow.pop %v2472
      %v2474 = vmul.f32 %v2413, 1.442695
      %v2475 = vpow.pop %v2474
      %v2476 = vmul.f32 %v2414, 1.442695
      %v2477 = vpow.pop %v2476
      %v2478 = vmul.f32 %v2415, 1.442695
      %v2479 = vpow.pop %v2478
      %v2480 = vadd.f32 %v2417, 1.0
      %v2481 = vadd.f32 %v2419, 1.0
      %v2482 = vadd.f32 %v2421, 1.0
      %v2483 = vadd.f32 %v2423, 1.0
      %v2484 = vadd.f32 %v2425, 1.0
      %v2485 = vadd.f32 %v2427, 1.0
      %v2486 = vadd.f32 %v2429, 1.0
      %v2487 = vadd.f32 %v2431, 1.0
      %v2488 = vadd.f32 %v2433, 1.0
      %v2489 = vadd.f32 %v2435, 1.0
      %v2490 = vadd.f32 %v2437, 1.0
      %v2491 = vadd.f32 %v2439, 1.0
      %v2492 = vadd.f32 %v2441, 1.0
      %v2493 = vadd.f32 %v2443, 1.0
      %v2494 = vadd.f32 %v2445, 1.0
      %v2495 = vadd.f32 %v2447, 1.0
      %v2496 = vadd.f32 %v2449, 1.0
      %v2497 = vadd.f32 %v2451, 1.0
      %v2498 = vadd.f32 %v2453, 1.0
      %v2499 = vadd.f32 %v2455, 1.0
      %v2500 = vadd.f32 %v2457, 1.0
      %v2501 = vadd.f32 %v2459, 1.0
      %v2502 = vadd.f32 %v2461, 1.0
      %v2503 = vadd.f32 %v2463, 1.0
      %v2504 = vadd.f32 %v2465, 1.0
      %v2505 = vadd.f32 %v2467, 1.0
      %v2506 = vadd.f32 %v2469, 1.0
      %v2507 = vadd.f32 %v2471, 1.0
      %v2508 = vadd.f32 %v2473, 1.0
      %v2509 = vadd.f32 %v2475, 1.0
      %v2510 = vadd.f32 %v2477, 1.0
      %v2511 = vadd.f32 %v2479, 1.0
      %v2512 = vrcp.pop %v2480
      %v2513 = vmul.f32 %v2480, %v2512
      %v2514 = vsub.f32 1.0, %v2513
      %v2515 = vmul.f32 %v2512, %v2514
      %v2516 = vadd.f32 %v2512, %v2515
      %vm2517 = vweird.f32 %v2480
      %vm2518 = vweird.f32 %v2512
      %vm2519 = vmor %vm2517, %vm2518
      %v2520 = vsel %vm2519, %v2512, %v2516
      %v2521 = vand.u32 2147483647, %v2480
      %vm2522 = vcmp.eq.f32.partialorder %v2521, 8.507059e+37
      %v2523 = vand.u32 %v2480, 2147483648
      %v2524 = vor.u32 1.1754944e-38, %v2523
      %v2525 = vsel %vm2522, %v2524, %v2520
      %v2526 = vmul.f32 1.0, %v2525
      %v2527 = vrcp.pop %v2481
      %v2528 = vmul.f32 %v2481, %v2527
      %v2529 = vsub.f32 1.0, %v2528
      %v2530 = vmul.f32 %v2527, %v2529
      %v2531 = vadd.f32 %v2527, %v2530
      %vm2532 = vweird.f32 %v2481
      %vm2533 = vweird.f32 %v2527
      %vm2534 = vmor %vm2532, %vm2533
      %v2535 = vsel %vm2534, %v2527, %v2531
      %v2536 = vand.u32 2147483647, %v2481
      %vm2537 = vcmp.eq.f32.partialorder %v2536, 8.507059e+37
      %v2538 = vand.u32 %v2481, 2147483648
      %v2539 = vor.u32 1.1754944e-38, %v2538
      %v2540 = vsel %vm2537, %v2539, %v2535
      %v2541 = vmul.f32 1.0, %v2540
      %v2542 = vrcp.pop %v2482
      %v2543 = vmul.f32 %v2482, %v2542
      %v2544 = vsub.f32 1.0, %v2543
      %v2545 = vmul.f32 %v2542, %v2544
      %v2546 = vadd.f32 %v2542, %v2545
      %vm2547 = vweird.f32 %v2482
      %vm2548 = vweird.f32 %v2542
      %vm2549 = vmor %vm2547, %vm2548
      %v2550 = vsel %vm2549, %v2542, %v2546
      %v2551 = vand.u32 2147483647, %v2482
      %vm2552 = vcmp.eq.f32.partialorder %v2551, 8.507059e+37
      %v2553 = vand.u32 %v2482, 2147483648
      %v2554 = vor.u32 1.1754944e-38, %v2553
      %v2555 = vsel %vm2552, %v2554, %v2550
      %v2556 = vmul.f32 1.0, %v2555
      %v2557 = vrcp.pop %v2483
      %v2558 = vmul.f32 %v2483, %v2557
      %v2559 = vsub.f32 1.0, %v2558
      %v2560 = vmul.f32 %v2557, %v2559
      %v2561 = vadd.f32 %v2557, %v2560
      %vm2562 = vweird.f32 %v2483
      %vm2563 = vweird.f32 %v2557
      %vm2564 = vmor %vm2562, %vm2563
      %v2565 = vsel %vm2564, %v2557, %v2561
      %v2566 = vand.u32 2147483647, %v2483
      %vm2567 = vcmp.eq.f32.partialorder %v2566, 8.507059e+37
      %v2568 = vand.u32 %v2483, 2147483648
      %v2569 = vor.u32 1.1754944e-38, %v2568
      %v2570 = vsel %vm2567, %v2569, %v2565
      %v2571 = vmul.f32 1.0, %v2570
      %v2572 = vrcp.pop %v2484
      %v2573 = vmul.f32 %v2484, %v2572
      %v2574 = vsub.f32 1.0, %v2573
      %v2575 = vmul.f32 %v2572, %v2574
      %v2576 = vadd.f32 %v2572, %v2575
      %vm2577 = vweird.f32 %v2484
      %vm2578 = vweird.f32 %v2572
      %vm2579 = vmor %vm2577, %vm2578
      %v2580 = vsel %vm2579, %v2572, %v2576
      %v2581 = vand.u32 2147483647, %v2484
      %vm2582 = vcmp.eq.f32.partialorder %v2581, 8.507059e+37
      %v2583 = vand.u32 %v2484, 2147483648
      %v2584 = vor.u32 1.1754944e-38, %v2583
      %v2585 = vsel %vm2582, %v2584, %v2580
      %v2586 = vmul.f32 1.0, %v2585
      %v2587 = vrcp.pop %v2485
      %v2588 = vmul.f32 %v2485, %v2587
      %v2589 = vsub.f32 1.0, %v2588
      %v2590 = vmul.f32 %v2587, %v2589
      %v2591 = vadd.f32 %v2587, %v2590
      %vm2592 = vweird.f32 %v2485
      %vm2593 = vweird.f32 %v2587
      %vm2594 = vmor %vm2592, %vm2593
      %v2595 = vsel %vm2594, %v2587, %v2591
      %v2596 = vand.u32 2147483647, %v2485
      %vm2597 = vcmp.eq.f32.partialorder %v2596, 8.507059e+37
      %v2598 = vand.u32 %v2485, 2147483648
      %v2599 = vor.u32 1.1754944e-38, %v2598
      %v2600 = vsel %vm2597, %v2599, %v2595
      %v2601 = vmul.f32 1.0, %v2600
      %v2602 = vrcp.pop %v2486
      %v2603 = vmul.f32 %v2486, %v2602
      %v2604 = vsub.f32 1.0, %v2603
      %v2605 = vmul.f32 %v2602, %v2604
      %v2606 = vadd.f32 %v2602, %v2605
      %vm2607 = vweird.f32 %v2486
      %vm2608 = vweird.f32 %v2602
      %vm2609 = vmor %vm2607, %vm2608
      %v2610 = vsel %vm2609, %v2602, %v2606
      %v2611 = vand.u32 2147483647, %v2486
      %vm2612 = vcmp.eq.f32.partialorder %v2611, 8.507059e+37
      %v2613 = vand.u32 %v2486, 2147483648
      %v2614 = vor.u32 1.1754944e-38, %v2613
      %v2615 = vsel %vm2612, %v2614, %v2610
      %v2616 = vmul.f32 1.0, %v2615
      %v2617 = vrcp.pop %v2487
      %v2618 = vmul.f32 %v2487, %v2617
      %v2619 = vsub.f32 1.0, %v2618
      %v2620 = vmul.f32 %v2617, %v2619
      %v2621 = vadd.f32 %v2617, %v2620
      %vm2622 = vweird.f32 %v2487
      %vm2623 = vweird.f32 %v2617
      %vm2624 = vmor %vm2622, %vm2623
      %v2625 = vsel %vm2624, %v2617, %v2621
      %v2626 = vand.u32 2147483647, %v2487
      %vm2627 = vcmp.eq.f32.partialorder %v2626, 8.507059e+37
      %v2628 = vand.u32 %v2487, 2147483648
      %v2629 = vor.u32 1.1754944e-38, %v2628
      %v2630 = vsel %vm2627, %v2629, %v2625
      %v2631 = vmul.f32 1.0, %v2630
      %v2632 = vrcp.pop %v2488
      %v2633 = vmul.f32 %v2488, %v2632
      %v2634 = vsub.f32 1.0, %v2633
      %v2635 = vmul.f32 %v2632, %v2634
      %v2636 = vadd.f32 %v2632, %v2635
      %vm2637 = vweird.f32 %v2488
      %vm2638 = vweird.f32 %v2632
      %vm2639 = vmor %vm2637, %vm2638
      %v2640 = vsel %vm2639, %v2632, %v2636
      %v2641 = vand.u32 2147483647, %v2488
      %vm2642 = vcmp.eq.f32.partialorder %v2641, 8.507059e+37
      %v2643 = vand.u32 %v2488, 2147483648
      %v2644 = vor.u32 1.1754944e-38, %v2643
      %v2645 = vsel %vm2642, %v2644, %v2640
      %v2646 = vmul.f32 1.0, %v2645
      %v2647 = vrcp.pop %v2489
      %v2648 = vmul.f32 %v2489, %v2647
      %v2649 = vsub.f32 1.0, %v2648
      %v2650 = vmul.f32 %v2647, %v2649
      %v2651 = vadd.f32 %v2647, %v2650
      %vm2652 = vweird.f32 %v2489
      %vm2653 = vweird.f32 %v2647
      %vm2654 = vmor %vm2652, %vm2653
      %v2655 = vsel %vm2654, %v2647, %v2651
      %v2656 = vand.u32 2147483647, %v2489
      %vm2657 = vcmp.eq.f32.partialorder %v2656, 8.507059e+37
      %v2658 = vand.u32 %v2489, 2147483648
      %v2659 = vor.u32 1.1754944e-38, %v2658
      %v2660 = vsel %vm2657, %v2659, %v2655
      %v2661 = vmul.f32 1.0, %v2660
      %v2662 = vrcp.pop %v2490
      %v2663 = vmul.f32 %v2490, %v2662
      %v2664 = vsub.f32 1.0, %v2663
      %v2665 = vmul.f32 %v2662, %v2664
      %v2666 = vadd.f32 %v2662, %v2665
      %vm2667 = vweird.f32 %v2490
      %vm2668 = vweird.f32 %v2662
      %vm2669 = vmor %vm2667, %vm2668
      %v2670 = vsel %vm2669, %v2662, %v2666
      %v2671 = vand.u32 2147483647, %v2490
      %vm2672 = vcmp.eq.f32.partialorder %v2671, 8.507059e+37
      %v2673 = vand.u32 %v2490, 2147483648
      %v2674 = vor.u32 1.1754944e-38, %v2673
      %v2675 = vsel %vm2672, %v2674, %v2670
      %v2676 = vmul.f32 1.0, %v2675
      %v2677 = vrcp.pop %v2491
      %v2678 = vmul.f32 %v2491, %v2677
      %v2679 = vsub.f32 1.0, %v2678
      %v2680 = vmul.f32 %v2677, %v2679
      %v2681 = vadd.f32 %v2677, %v2680
      %vm2682 = vweird.f32 %v2491
      %vm2683 = vweird.f32 %v2677
      %vm2684 = vmor %vm2682, %vm2683
      %v2685 = vsel %vm2684, %v2677, %v2681
      %v2686 = vand.u32 2147483647, %v2491
      %vm2687 = vcmp.eq.f32.partialorder %v2686, 8.507059e+37
      %v2688 = vand.u32 %v2491, 2147483648
      %v2689 = vor.u32 1.1754944e-38, %v2688
      %v2690 = vsel %vm2687, %v2689, %v2685
      %v2691 = vmul.f32 1.0, %v2690
      %v2692 = vrcp.pop %v2492
      %v2693 = vmul.f32 %v2492, %v2692
      %v2694 = vsub.f32 1.0, %v2693
      %v2695 = vmul.f32 %v2692, %v2694
      %v2696 = vadd.f32 %v2692, %v2695
      %vm2697 = vweird.f32 %v2492
      %vm2698 = vweird.f32 %v2692
      %vm2699 = vmor %vm2697, %vm2698
      %v2700 = vsel %vm2699, %v2692, %v2696
      %v2701 = vand.u32 2147483647, %v2492
      %vm2702 = vcmp.eq.f32.partialorder %v2701, 8.507059e+37
      %v2703 = vand.u32 %v2492, 2147483648
      %v2704 = vor.u32 1.1754944e-38, %v2703
      %v2705 = vsel %vm2702, %v2704, %v2700
      %v2706 = vmul.f32 1.0, %v2705
      %v2707 = vrcp.pop %v2493
      %v2708 = vmul.f32 %v2493, %v2707
      %v2709 = vsub.f32 1.0, %v2708
      %v2710 = vmul.f32 %v2707, %v2709
      %v2711 = vadd.f32 %v2707, %v2710
      %vm2712 = vweird.f32 %v2493
      %vm2713 = vweird.f32 %v2707
      %vm2714 = vmor %vm2712, %vm2713
      %v2715 = vsel %vm2714, %v2707, %v2711
      %v2716 = vand.u32 2147483647, %v2493
      %vm2717 = vcmp.eq.f32.partialorder %v2716, 8.507059e+37
      %v2718 = vand.u32 %v2493, 2147483648
      %v2719 = vor.u32 1.1754944e-38, %v2718
      %v2720 = vsel %vm2717, %v2719, %v2715
      %v2721 = vmul.f32 1.0, %v2720
      %v2722 = vrcp.pop %v2494
      %v2723 = vmul.f32 %v2494, %v2722
      %v2724 = vsub.f32 1.0, %v2723
      %v2725 = vmul.f32 %v2722, %v2724
      %v2726 = vadd.f32 %v2722, %v2725
      %vm2727 = vweird.f32 %v2494
      %vm2728 = vweird.f32 %v2722
      %vm2729 = vmor %vm2727, %vm2728
      %v2730 = vsel %vm2729, %v2722, %v2726
      %v2731 = vand.u32 2147483647, %v2494
      %vm2732 = vcmp.eq.f32.partialorder %v2731, 8.507059e+37
      %v2733 = vand.u32 %v2494, 2147483648
      %v2734 = vor.u32 1.1754944e-38, %v2733
      %v2735 = vsel %vm2732, %v2734, %v2730
      %v2736 = vmul.f32 1.0, %v2735
      %v2737 = vrcp.pop %v2495
      %v2738 = vmul.f32 %v2495, %v2737
      %v2739 = vsub.f32 1.0, %v2738
      %v2740 = vmul.f32 %v2737, %v2739
      %v2741 = vadd.f32 %v2737, %v2740
      %vm2742 = vweird.f32 %v2495
      %vm2743 = vweird.f32 %v2737
      %vm2744 = vmor %vm2742, %vm2743
      %v2745 = vsel %vm2744, %v2737, %v2741
      %v2746 = vand.u32 2147483647, %v2495
      %vm2747 = vcmp.eq.f32.partialorder %v2746, 8.507059e+37
      %v2748 = vand.u32 %v2495, 2147483648
      %v2749 = vor.u32 1.1754944e-38, %v2748
      %v2750 = vsel %vm2747, %v2749, %v2745
      %v2751 = vmul.f32 1.0, %v2750
      %v2752 = vrcp.pop %v2496
      %v2753 = vmul.f32 %v2496, %v2752
      %v2754 = vsub.f32 1.0, %v2753
      %v2755 = vmul.f32 %v2752, %v2754
      %v2756 = vadd.f32 %v2752, %v2755
      %vm2757 = vweird.f32 %v2496
      %vm2758 = vweird.f32 %v2752
      %vm2759 = vmor %vm2757, %vm2758
      %v2760 = vsel %vm2759, %v2752, %v2756
      %v2761 = vand.u32 2147483647, %v2496
      %vm2762 = vcmp.eq.f32.partialorder %v2761, 8.507059e+37
      %v2763 = vand.u32 %v2496, 2147483648
      %v2764 = vor.u32 1.1754944e-38, %v2763
      %v2765 = vsel %vm2762, %v2764, %v2760
      %v2766 = vmul.f32 1.0, %v2765
      %v2767 = vrcp.pop %v2497
      %v2768 = vmul.f32 %v2497, %v2767
      %v2769 = vsub.f32 1.0, %v2768
      %v2770 = vmul.f32 %v2767, %v2769
      %v2771 = vadd.f32 %v2767, %v2770
      %vm2772 = vweird.f32 %v2497
      %vm2773 = vweird.f32 %v2767
      %vm2774 = vmor %vm2772, %vm2773
      %v2775 = vsel %vm2774, %v2767, %v2771
      %v2776 = vand.u32 2147483647, %v2497
      %vm2777 = vcmp.eq.f32.partialorder %v2776, 8.507059e+37
      %v2778 = vand.u32 %v2497, 2147483648
      %v2779 = vor.u32 1.1754944e-38, %v2778
      %v2780 = vsel %vm2777, %v2779, %v2775
      %v2781 = vmul.f32 1.0, %v2780
      %v2782 = vrcp.pop %v2498
      %v2783 = vmul.f32 %v2498, %v2782
      %v2784 = vsub.f32 1.0, %v2783
      %v2785 = vmul.f32 %v2782, %v2784
      %v2786 = vadd.f32 %v2782, %v2785
      %vm2787 = vweird.f32 %v2498
      %vm2788 = vweird.f32 %v2782
      %vm2789 = vmor %vm2787, %vm2788
      %v2790 = vsel %vm2789, %v2782, %v2786
      %v2791 = vand.u32 2147483647, %v2498
      %vm2792 = vcmp.eq.f32.partialorder %v2791, 8.507059e+37
      %v2793 = vand.u32 %v2498, 2147483648
      %v2794 = vor.u32 1.1754944e-38, %v2793
      %v2795 = vsel %vm2792, %v2794, %v2790
      %v2796 = vmul.f32 1.0, %v2795
      %v2797 = vrcp.pop %v2499
      %v2798 = vmul.f32 %v2499, %v2797
      %v2799 = vsub.f32 1.0, %v2798
      %v2800 = vmul.f32 %v2797, %v2799
      %v2801 = vadd.f32 %v2797, %v2800
      %vm2802 = vweird.f32 %v2499
      %vm2803 = vweird.f32 %v2797
      %vm2804 = vmor %vm2802, %vm2803
      %v2805 = vsel %vm2804, %v2797, %v2801
      %v2806 = vand.u32 2147483647, %v2499
      %vm2807 = vcmp.eq.f32.partialorder %v2806, 8.507059e+37
      %v2808 = vand.u32 %v2499, 2147483648
      %v2809 = vor.u32 1.1754944e-38, %v2808
      %v2810 = vsel %vm2807, %v2809, %v2805
      %v2811 = vmul.f32 1.0, %v2810
      %v2812 = vrcp.pop %v2500
      %v2813 = vmul.f32 %v2500, %v2812
      %v2814 = vsub.f32 1.0, %v2813
      %v2815 = vmul.f32 %v2812, %v2814
      %v2816 = vadd.f32 %v2812, %v2815
      %vm2817 = vweird.f32 %v2500
      %vm2818 = vweird.f32 %v2812
      %vm2819 = vmor %vm2817, %vm2818
      %v2820 = vsel %vm2819, %v2812, %v2816
      %v2821 = vand.u32 2147483647, %v2500
      %vm2822 = vcmp.eq.f32.partialorder %v2821, 8.507059e+37
      %v2823 = vand.u32 %v2500, 2147483648
      %v2824 = vor.u32 1.1754944e-38, %v2823
      %v2825 = vsel %vm2822, %v2824, %v2820
      %v2826 = vmul.f32 1.0, %v2825
      %v2827 = vrcp.pop %v2501
      %v2828 = vmul.f32 %v2501, %v2827
      %v2829 = vsub.f32 1.0, %v2828
      %v2830 = vmul.f32 %v2827, %v2829
      %v2831 = vadd.f32 %v2827, %v2830
      %vm2832 = vweird.f32 %v2501
      %vm2833 = vweird.f32 %v2827
      %vm2834 = vmor %vm2832, %vm2833
      %v2835 = vsel %vm2834, %v2827, %v2831
      %v2836 = vand.u32 2147483647, %v2501
      %vm2837 = vcmp.eq.f32.partialorder %v2836, 8.507059e+37
      %v2838 = vand.u32 %v2501, 2147483648
      %v2839 = vor.u32 1.1754944e-38, %v2838
      %v2840 = vsel %vm2837, %v2839, %v2835
      %v2841 = vmul.f32 1.0, %v2840
      %v2842 = vrcp.pop %v2502
      %v2843 = vmul.f32 %v2502, %v2842
      %v2844 = vsub.f32 1.0, %v2843
      %v2845 = vmul.f32 %v2842, %v2844
      %v2846 = vadd.f32 %v2842, %v2845
      %vm2847 = vweird.f32 %v2502
      %vm2848 = vweird.f32 %v2842
      %vm2849 = vmor %vm2847, %vm2848
      %v2850 = vsel %vm2849, %v2842, %v2846
      %v2851 = vand.u32 2147483647, %v2502
      %vm2852 = vcmp.eq.f32.partialorder %v2851, 8.507059e+37
      %v2853 = vand.u32 %v2502, 2147483648
      %v2854 = vor.u32 1.1754944e-38, %v2853
      %v2855 = vsel %vm2852, %v2854, %v2850
      %v2856 = vmul.f32 1.0, %v2855
      %v2857 = vrcp.pop %v2503
      %v2858 = vmul.f32 %v2503, %v2857
      %v2859 = vsub.f32 1.0, %v2858
      %v2860 = vmul.f32 %v2857, %v2859
      %v2861 = vadd.f32 %v2857, %v2860
      %vm2862 = vweird.f32 %v2503
      %vm2863 = vweird.f32 %v2857
      %vm2864 = vmor %vm2862, %vm2863
      %v2865 = vsel %vm2864, %v2857, %v2861
      %v2866 = vand.u32 2147483647, %v2503
      %vm2867 = vcmp.eq.f32.partialorder %v2866, 8.507059e+37
      %v2868 = vand.u32 %v2503, 2147483648
      %v2869 = vor.u32 1.1754944e-38, %v2868
      %v2870 = vsel %vm2867, %v2869, %v2865
      %v2871 = vmul.f32 1.0, %v2870
      %v2872 = vrcp.pop %v2504
      %v2873 = vmul.f32 %v2504, %v2872
      %v2874 = vsub.f32 1.0, %v2873
      %v2875 = vmul.f32 %v2872, %v2874
      %v2876 = vadd.f32 %v2872, %v2875
      %vm2877 = vweird.f32 %v2504
      %vm2878 = vweird.f32 %v2872
      %vm2879 = vmor %vm2877, %vm2878
      %v2880 = vsel %vm2879, %v2872, %v2876
      %v2881 = vand.u32 2147483647, %v2504
      %vm2882 = vcmp.eq.f32.partialorder %v2881, 8.507059e+37
      %v2883 = vand.u32 %v2504, 2147483648
      %v2884 = vor.u32 1.1754944e-38, %v2883
      %v2885 = vsel %vm2882, %v2884, %v2880
      %v2886 = vmul.f32 1.0, %v2885
      %v2887 = vrcp.pop %v2505
      %v2888 = vmul.f32 %v2505, %v2887
      %v2889 = vsub.f32 1.0, %v2888
      %v2890 = vmul.f32 %v2887, %v2889
      %v2891 = vadd.f32 %v2887, %v2890
      %vm2892 = vweird.f32 %v2505
      %vm2893 = vweird.f32 %v2887
      %vm2894 = vmor %vm2892, %vm2893
      %v2895 = vsel %vm2894, %v2887, %v2891
      %v2896 = vand.u32 2147483647, %v2505
      %vm2897 = vcmp.eq.f32.partialorder %v2896, 8.507059e+37
      %v2898 = vand.u32 %v2505, 2147483648
      %v2899 = vor.u32 1.1754944e-38, %v2898
      %v2900 = vsel %vm2897, %v2899, %v2895
      %v2901 = vmul.f32 1.0, %v2900
      %v2902 = vrcp.pop %v2506
      %v2903 = vmul.f32 %v2506, %v2902
      %v2904 = vsub.f32 1.0, %v2903
      %v2905 = vmul.f32 %v2902, %v2904
      %v2906 = vadd.f32 %v2902, %v2905
      %vm2907 = vweird.f32 %v2506
      %vm2908 = vweird.f32 %v2902
      %vm2909 = vmor %vm2907, %vm2908
      %v2910 = vsel %vm2909, %v2902, %v2906
      %v2911 = vand.u32 2147483647, %v2506
      %vm2912 = vcmp.eq.f32.partialorder %v2911, 8.507059e+37
      %v2913 = vand.u32 %v2506, 2147483648
      %v2914 = vor.u32 1.1754944e-38, %v2913
      %v2915 = vsel %vm2912, %v2914, %v2910
      %v2916 = vmul.f32 1.0, %v2915
      %v2917 = vrcp.pop %v2507
      %v2918 = vmul.f32 %v2507, %v2917
      %v2919 = vsub.f32 1.0, %v2918
      %v2920 = vmul.f32 %v2917, %v2919
      %v2921 = vadd.f32 %v2917, %v2920
      %vm2922 = vweird.f32 %v2507
      %vm2923 = vweird.f32 %v2917
      %vm2924 = vmor %vm2922, %vm2923
      %v2925 = vsel %vm2924, %v2917, %v2921
      %v2926 = vand.u32 2147483647, %v2507
      %vm2927 = vcmp.eq.f32.partialorder %v2926, 8.507059e+37
      %v2928 = vand.u32 %v2507, 2147483648
      %v2929 = vor.u32 1.1754944e-38, %v2928
      %v2930 = vsel %vm2927, %v2929, %v2925
      %v2931 = vmul.f32 1.0, %v2930
      %v2932 = vrcp.pop %v2508
      %v2933 = vmul.f32 %v2508, %v2932
      %v2934 = vsub.f32 1.0, %v2933
      %v2935 = vmul.f32 %v2932, %v2934
      %v2936 = vadd.f32 %v2932, %v2935
      %vm2937 = vweird.f32 %v2508
      %vm2938 = vweird.f32 %v2932
      %vm2939 = vmor %vm2937, %vm2938
      %v2940 = vsel %vm2939, %v2932, %v2936
      %v2941 = vand.u32 2147483647, %v2508
      %vm2942 = vcmp.eq.f32.partialorder %v2941, 8.507059e+37
      %v2943 = vand.u32 %v2508, 2147483648
      %v2944 = vor.u32 1.1754944e-38, %v2943
      %v2945 = vsel %vm2942, %v2944, %v2940
      %v2946 = vmul.f32 1.0, %v2945
      %v2947 = vrcp.pop %v2509
      %v2948 = vmul.f32 %v2509, %v2947
      %v2949 = vsub.f32 1.0, %v2948
      %v2950 = vmul.f32 %v2947, %v2949
      %v2951 = vadd.f32 %v2947, %v2950
      %vm2952 = vweird.f32 %v2509
      %vm2953 = vweird.f32 %v2947
      %vm2954 = vmor %vm2952, %vm2953
      %v2955 = vsel %vm2954, %v2947, %v2951
      %v2956 = vand.u32 2147483647, %v2509
      %vm2957 = vcmp.eq.f32.partialorder %v2956, 8.507059e+37
      %v2958 = vand.u32 %v2509, 2147483648
      %v2959 = vor.u32 1.1754944e-38, %v2958
      %v2960 = vsel %vm2957, %v2959, %v2955
      %v2961 = vmul.f32 1.0, %v2960
      %v2962 = vrcp.pop %v2510
      %v2963 = vmul.f32 %v2510, %v2962
      %v2964 = vsub.f32 1.0, %v2963
      %v2965 = vmul.f32 %v2962, %v2964
      %v2966 = vadd.f32 %v2962, %v2965
      %vm2967 = vweird.f32 %v2510
      %vm2968 = vweird.f32 %v2962
      %vm2969 = vmor %vm2967, %vm2968
      %v2970 = vsel %vm2969, %v2962, %v2966
      %v2971 = vand.u32 2147483647, %v2510
      %vm2972 = vcmp.eq.f32.partialorder %v2971, 8.507059e+37
      %v2973 = vand.u32 %v2510, 2147483648
      %v2974 = vor.u32 1.1754944e-38, %v2973
      %v2975 = vsel %vm2972, %v2974, %v2970
      %v2976 = vmul.f32 1.0, %v2975
      %v2977 = vrcp.pop %v2511
      %v2978 = vmul.f32 %v2511, %v2977
      %v2979 = vsub.f32 1.0, %v2978
      %v2980 = vmul.f32 %v2977, %v2979
      %v2981 = vadd.f32 %v2977, %v2980
      %vm2982 = vweird.f32 %v2511
      %vm2983 = vweird.f32 %v2977
      %vm2984 = vmor %vm2982, %vm2983
      %v2985 = vsel %vm2984, %v2977, %v2981
      %v2986 = vand.u32 2147483647, %v2511
      %vm2987 = vcmp.eq.f32.partialorder %v2986, 8.507059e+37
      %v2988 = vand.u32 %v2511, 2147483648
      %v2989 = vor.u32 1.1754944e-38, %v2988
      %v2990 = vsel %vm2987, %v2989, %v2985
      %v2991 = vmul.f32 1.0, %v2990
      %v2992 = vmul.f32 %v2352, %v2526
      %v2993 = vmul.f32 %v2353, %v2541
      %v2994 = vmul.f32 %v2354, %v2556
      %v2995 = vmul.f32 %v2355, %v2571
      %v2996 = vmul.f32 %v2356, %v2586
      %v2997 = vmul.f32 %v2357, %v2601
      %v2998 = vmul.f32 %v2358, %v2616
      %v2999 = vmul.f32 %v2359, %v2631
      %v3000 = vmul.f32 %v2360, %v2646
      %v3001 = vmul.f32 %v2361, %v2661
      %v3002 = vmul.f32 %v2362, %v2676
      %v3003 = vmul.f32 %v2363, %v2691
      %v3004 = vmul.f32 %v2364, %v2706
      %v3005 = vmul.f32 %v2365, %v2721
      %v3006 = vmul.f32 %v2366, %v2736
      %v3007 = vmul.f32 %v2367, %v2751
      %v3008 = vmul.f32 %v2368, %v2766
      %v3009 = vmul.f32 %v2369, %v2781
      %v3010 = vmul.f32 %v2370, %v2796
      %v3011 = vmul.f32 %v2371, %v2811
      %v3012 = vmul.f32 %v2372, %v2826
      %v3013 = vmul.f32 %v2373, %v2841
      %v3014 = vmul.f32 %v2374, %v2856
      %v3015 = vmul.f32 %v2375, %v2871
      %v3016 = vmul.f32 %v2376, %v2886
      %v3017 = vmul.f32 %v2377, %v2901
      %v3018 = vmul.f32 %v2378, %v2916
      %v3019 = vmul.f32 %v2379, %v2931
      %v3020 = vmul.f32 %v2380, %v2946
      %v3021 = vmul.f32 %v2381, %v2961
      %v3022 = vmul.f32 %v2382, %v2976
      %v3023 = vmul.f32 %v2383, %v2991
      %vm3024 = vcmask 31744
      %3025 = vst.msk [vmem:[%s232] sm:$0xff] %vm3024, %v233
      %3026 = vst.msk [vmem:[%s232 + $0x8] sm:$0xff] %vm3024, %v234
      %3027 = vst.msk [vmem:[%s232 + $0x10] sm:$0xff] %vm3024, %v235
      %3028 = vst.msk [vmem:[%s232 + $0x18] sm:$0xff] %vm3024, %v236
      %3029 = vst.msk [vmem:[%s232 + $0x20] sm:$0xff] %vm3024, %v237
      %3030 = vst.msk [vmem:[%s232 + $0x28] sm:$0xff] %vm3024, %v238
      %3031 = vst.msk [vmem:[%s232 + $0x30] sm:$0xff] %vm3024, %v239
      %3032 = vst.msk [vmem:[%s232 + $0x38] sm:$0xff] %vm3024, %v240
      %3033 = vst.msk [vmem:[%s232 + $0x40] sm:$0xff] %vm3024, %v241
      %3034 = vst.msk [vmem:[%s232 + $0x48] sm:$0xff] %vm3024, %v242
      %3035 = vst.msk [vmem:[%s232 + $0x50] sm:$0xff] %vm3024, %v243
      %3036 = vst.msk [vmem:[%s232 + $0x58] sm:$0xff] %vm3024, %v244
      %3037 = vst.msk [vmem:[%s232 + $0x60] sm:$0xff] %vm3024, %v245
      %3038 = vst.msk [vmem:[%s232 + $0x68] sm:$0xff] %vm3024, %v246
      %3039 = vst.msk [vmem:[%s232 + $0x70] sm:$0xff] %vm3024, %v247
      %3040 = vst.msk [vmem:[%s232 + $0x78] sm:$0xff] %vm3024, %v248
      %3041 = vst.msk [vmem:[%s232 + $0x80] sm:$0xff] %vm3024, %v249
      %3042 = vst.msk [vmem:[%s232 + $0x88] sm:$0xff] %vm3024, %v250
      %3043 = vst.msk [vmem:[%s232 + $0x90] sm:$0xff] %vm3024, %v251
      %3044 = vst.msk [vmem:[%s232 + $0x98] sm:$0xff] %vm3024, %v252
      %3045 = vst.msk [vmem:[%s232 + $0xa0] sm:$0xff] %vm3024, %v253
      %3046 = vst.msk [vmem:[%s232 + $0xa8] sm:$0xff] %vm3024, %v254
      %3047 = vst.msk [vmem:[%s232 + $0xb0] sm:$0xff] %vm3024, %v255
      %3048 = vst.msk [vmem:[%s232 + $0xb8] sm:$0xff] %vm3024, %v256
      %3049 = vst.msk [vmem:[%s232 + $0xc0] sm:$0xff] %vm3024, %v257
      %3050 = vst.msk [vmem:[%s232 + $0xc8] sm:$0xff] %vm3024, %v258
      %3051 = vst.msk [vmem:[%s232 + $0xd0] sm:$0xff] %vm3024, %v259
      %3052 = vst.msk [vmem:[%s232 + $0xd8] sm:$0xff] %vm3024, %v260
      %3053 = vst.msk [vmem:[%s232 + $0xe0] sm:$0xff] %vm3024, %v261
      %3054 = vst.msk [vmem:[%s232 + $0xe8] sm:$0xff] %vm3024, %v262
      %3055 = vst.msk [vmem:[%s232 + $0xf0] sm:$0xff] %vm3024, %v263
      %3056 = vst.msk [vmem:[%s232 + $0xf8] sm:$0xff] %vm3024, %v264
      %s3057 = scalar_lea.vmem %s232, 256
      %3058 = vst.msk [vmem:[%s3057] sm:$0xff] %vm3024, %v2992
      %3059 = vst.msk [vmem:[%s3057 + $0x8] sm:$0xff] %vm3024, %v2993
      %3060 = vst.msk [vmem:[%s3057 + $0x10] sm:$0xff] %vm3024, %v2994
      %3061 = vst.msk [vmem:[%s3057 + $0x18] sm:$0xff] %vm3024, %v2995
      %3062 = vst.msk [vmem:[%s3057 + $0x20] sm:$0xff] %vm3024, %v2996
      %3063 = vst.msk [vmem:[%s3057 + $0x28] sm:$0xff] %vm3024, %v2997
      %3064 = vst.msk [vmem:[%s3057 + $0x30] sm:$0xff] %vm3024, %v2998
      %3065 = vst.msk [vmem:[%s3057 + $0x38] sm:$0xff] %vm3024, %v2999
      %3066 = vst.msk [vmem:[%s3057 + $0x40] sm:$0xff] %vm3024, %v3000
      %3067 = vst.msk [vmem:[%s3057 + $0x48] sm:$0xff] %vm3024, %v3001
      %3068 = vst.msk [vmem:[%s3057 + $0x50] sm:$0xff] %vm3024, %v3002
      %3069 = vst.msk [vmem:[%s3057 + $0x58] sm:$0xff] %vm3024, %v3003
      %3070 = vst.msk [vmem:[%s3057 + $0x60] sm:$0xff] %vm3024, %v3004
      %3071 = vst.msk [vmem:[%s3057 + $0x68] sm:$0xff] %vm3024, %v3005
      %3072 = vst.msk [vmem:[%s3057 + $0x70] sm:$0xff] %vm3024, %v3006
      %3073 = vst.msk [vmem:[%s3057 + $0x78] sm:$0xff] %vm3024, %v3007
      %3074 = vst.msk [vmem:[%s3057 + $0x80] sm:$0xff] %vm3024, %v3008
      %3075 = vst.msk [vmem:[%s3057 + $0x88] sm:$0xff] %vm3024, %v3009
      %3076 = vst.msk [vmem:[%s3057 + $0x90] sm:$0xff] %vm3024, %v3010
      %3077 = vst.msk [vmem:[%s3057 + $0x98] sm:$0xff] %vm3024, %v3011
      %3078 = vst.msk [vmem:[%s3057 + $0xa0] sm:$0xff] %vm3024, %v3012
      %3079 = vst.msk [vmem:[%s3057 + $0xa8] sm:$0xff] %vm3024, %v3013
      %3080 = vst.msk [vmem:[%s3057 + $0xb0] sm:$0xff] %vm3024, %v3014
      %3081 = vst.msk [vmem:[%s3057 + $0xb8] sm:$0xff] %vm3024, %v3015
      %3082 = vst.msk [vmem:[%s3057 + $0xc0] sm:$0xff] %vm3024, %v3016
      %3083 = vst.msk [vmem:[%s3057 + $0xc8] sm:$0xff] %vm3024, %v3017
      %3084 = vst.msk [vmem:[%s3057 + $0xd0] sm:$0xff] %vm3024, %v3018
      %3085 = vst.msk [vmem:[%s3057 + $0xd8] sm:$0xff] %vm3024, %v3019
      %3086 = vst.msk [vmem:[%s3057 + $0xe0] sm:$0xff] %vm3024, %v3020
      %3087 = vst.msk [vmem:[%s3057 + $0xe8] sm:$0xff] %vm3024, %v3021
      %3088 = vst.msk [vmem:[%s3057 + $0xf0] sm:$0xff] %vm3024, %v3022
      %3089 = vst.msk [vmem:[%s3057 + $0xf8] sm:$0xff] %vm3024, %v3023
      %p3090 = scmp.lt.s32.totalorder %s18, 1
      %s3091 = scalar_select %p3090, %s18, 1
      %p3092 = scmp.lt.s32.totalorder %s19, 0
      %s3093 = scalar_select %p3092, %s19, 0
      %s3094 = smul.addr %s3091, 64
      %s3095 = sadd.s32 %s3093, %s3094
      %s3096 = smul.addr %s3095, 8
      %s3097 = scalar_lea.vmem %s3, %s3096
      // Predicated region
      $region33: #{gsconv_forward.3} parent=31 // pred_check
        %p3098 = pneg %p126
      $region34: #{gsconv_forward.3} parent=31 // pred_check_branch
        %3100 = sbr.rel (%p3098) target = $region36
      $region35: #{gsconv_forward.3} parent=31 // pred_region
        _
      $region36: #{gsconv_forward.3} parent=31 // pred_fallthru
        _
    $region32: #{gsconv_forward.3} parent=5 // pred_fallthru
      _
    %p3101 = scmp.le.s32.totalorder 2, %s9
    // Predicated region
    $region37: #{gsconv_forward.3} parent=5 // pred_check
      %p3102 = pneg %p3101
    $region38: #{gsconv_forward.3} parent=5 // pred_check_branch
      %3104 = sbr.rel (%p3102) target = $region40
    $region39: #{gsconv_forward.3} parent=5 // pred_region
      %s3105 = ssub.s32 %s9, 2
      // Predicated region
      $region41: #{gsconv_forward.3} parent=39 // pred_check
        %p3106 = pneg %p132
      $region42: #{gsconv_forward.3} parent=39 // pred_check_branch
        %3108 = sbr.rel (%p3106) target = $region44
      $region43: #{gsconv_forward.3} parent=39 // pred_region
        %p3109 = scmp.lt.s32.totalorder %s20, 1
        %s3110 = scalar_select %p3109, %s20, 1
        %p3111 = scmp.lt.s32.totalorder %s21, 0
        %s3112 = scalar_select %p3111, %s21, 0
        %s3113 = smul.addr %s3110, 64
        %s3114 = sadd.s32 %s3112, %s3113
        %s3115 = smul.addr %s3114, 8
        %s3116 = scalar_lea.vmem %s3, %s3115
      $region44: #{gsconv_forward.3} parent=39 // pred_fallthru
        _
    $region40: #{gsconv_forward.3} parent=5 // pred_fallthru
      _
  $region6: #{gsconv_forward.3} parent=0 // loop_footer
    %s13 = sadd.s32 1, %s9
  $region7: #{gsconv_forward.3} parent=0 // loop_footer_branch
    %8 = sbr.rel target = $region3
  $region8: #{gsconv_forward.3} parent=0 // loop_exit
    _

</llo_original>
